<compile_context>
chip_gen: v6e
topology: v6e:2x2x1
jax: 0.10.0
libtpu: 0.0.40
codegen_flags: <defaults>
</compile_context>

<pallas_src>
import functools

import jax
import jax.numpy as jnp
from jax.experimental import pallas as pl
from jax.experimental.pallas import tpu as pltpu


def _const_spec(shape):
    # Whole (small) array as one resident block; fetched once, block index
    # constant across the grid.
    return pl.BlockSpec(shape, lambda j: tuple(0 for _ in shape))


# ---------------------------------------------------------------------------
# Fused kernel, executed once per decoder output-column tile j:
#   h      = relu(x @ W1 + b1)                     (B rows, bf16 matmul)
#   stats  = h @ [Wmu | Wlv] + [bmu | blv]         (packed mu || logvar)
#   std    = exp(0.5 * logvar)
#   z      = tile_K(mu) + eps * tile_K(std)        (K-major rows, matches eps)
#   h_dec  = relu(z @ Wd1 + bd1)
#   x_hat[:, j*tn:(j+1)*tn] = sigmoid(h_dec @ Wd2_tile + bd2_tile)
# Encoder/reparam/h_dec are tiny and fully resident, so recomputing them every
# step costs ~nothing and keeps the column axis embarrassingly parallel.
# ---------------------------------------------------------------------------
def iwae_fused_kernel(x_ref, w1_ref, b1_ref, wh_ref, bh_ref, eps_ref,
                      wd1_ref, bd1_ref, wd2_ref, bd2_ref,
                      stats_ref, z_ref, xhat_ref):
    L = eps_ref.shape[1]
    B = stats_ref.shape[0]
    K_rep = eps_ref.shape[0] // B          # static Python int at trace time

    # --- encoder (B un-replicated rows) ---
    h = jnp.dot(x_ref[...].astype(jnp.bfloat16), w1_ref[...],
                preferred_element_type=jnp.float32)
    h = jnp.maximum(h + b1_ref[...], 0.0)                       # f32
    # fused mu || logvar head: one (H, 2L) matmul, lane-packed output
    stats = jnp.dot(h.astype(jnp.bfloat16), wh_ref[...],
                    preferred_element_type=jnp.float32) + bh_ref[...]
    stats_ref[...] = stats                 # idempotent across grid steps
    mu = stats[:, :L]
    logvar = stats[:, L:]

    # --- reparameterize: broadcast across K inside the kernel ---
    std = jnp.exp(0.5 * logvar)            # EUP, f32
    mu_rep = jnp.tile(mu, (K_rep, 1))      # rows k*B + b == mu[b]  (K-major)
    std_rep = jnp.tile(std, (K_rep, 1))
    z = mu_rep + eps_ref[...] * std_rep
    z_ref[...] = z                         # idempotent across grid steps

    # --- decoder hidden ---
    hd = jnp.dot(z.astype(jnp.bfloat16), wd1_ref[...],
                 preferred_element_type=jnp.float32) + bd1_ref[...]
    hd = jnp.maximum(hd, 0.0).astype(jnp.bfloat16)

    # --- decoder output: this grid step's wd2 column tile ---
    logits = jnp.dot(hd, wd2_ref[...],
                     preferred_element_type=jnp.float32) + bd2_ref[...]
    # TODO(synk): `soft_cipping_activation` / `s` semantics unknown; standard
    # sigmoid output (required to be in (0,1) for the BCE likelihood in loss()).
    xhat_ref[...] = jax.nn.sigmoid(logits)


def pack_params(raw):
    """One-time weight packing (bf16 + fused mu|logvar head). Call once, reuse."""
    f32 = jnp.float32
    bf16 = jnp.bfloat16
    return {
        "w1":  raw["w1"].astype(bf16),
        "b1":  raw["b1"].astype(f32).reshape(1, -1),
        "wh":  jnp.concatenate([raw["wmu"], raw["wlv"]], axis=1).astype(bf16),
        "bh":  jnp.concatenate([raw["bmu"].reshape(1, -1),
                                raw["blv"].reshape(1, -1)], axis=1).astype(f32),
        "wd1": raw["wd1"].astype(bf16),
        "bd1": raw["bd1"].astype(f32).reshape(1, -1),
        "wd2": raw["wd2"].astype(bf16),
        "bd2": raw["bd2"].astype(f32).reshape(1, -1),
    }


def iwae_forward(x, packed, eps, *, K, tn=1536):
    """Forward pass: returns (x_hat, mu, logvar, z) matching the torch module."""
    B, C, IH, IW = x.shape
    D = C * IH * IW
    H = packed["w1"].shape[1]
    L = packed["wh"].shape[1] // 2
    KB = K * B
    assert D % tn == 0 and tn % 128 == 0
    n_col = D // tn

    x2d = x.reshape(B, D).astype(jnp.float32)       # flatten NCHW (free reshape)
    eps2d = eps.reshape(KB, L).astype(jnp.float32)  # K-major rows

    def col_spec(shape):
        # Triple-buffer the big wd2/bd2 streams when there are enough tiles
        # for it to matter; with 2 tiles default double buffering is optimal.
        if n_col >= 3:
            return pl.BlockSpec(shape, lambda j: (0, j),
                                pipeline_mode=pl.Buffered(3))
        return pl.BlockSpec(shape, lambda j: (0, j))

    stats, z2d, xhat2d = pl.pallas_call(
        iwae_fused_kernel,
        out_shape=(jax.ShapeDtypeStruct((B, 2 * L), jnp.float32),   # mu||logvar
                   jax.ShapeDtypeStruct((KB, L), jnp.float32),      # z (flat)
                   jax.ShapeDtypeStruct((KB, D), jnp.float32)),     # x_hat (flat)
        grid=(n_col,),
        in_specs=[_const_spec((B, D)),            # x (flattened)
                  _const_spec((D, H)),            # w1
                  _const_spec((1, H)),            # b1
                  _const_spec((H, 2 * L)),        # [Wmu | Wlv]
                  _const_spec((1, 2 * L)),        # [bmu | blv]
                  _const_spec((KB, L)),           # eps (K-major)
                  _const_spec((L, H)),            # wd1
                  _const_spec((1, H)),            # bd1
                  col_spec((H, tn)),              # wd2 column tile
                  col_spec((1, tn))],             # bd2 column tile
        out_specs=(_const_spec((B, 2 * L)),
                   _const_spec((KB, L)),
                   pl.BlockSpec((KB, tn), lambda j: (0, j))),
        compiler_params=pltpu.CompilerParams(
            # Column tiles are independent (encoder recomputed per step) ->
            # v7x can shard them across its two TensorCores.
            dimension_semantics=("parallel",)),
    )(x2d, packed["w1"], packed["b1"], packed["wh"], packed["bh"],
      eps2d, packed["wd1"], packed["bd1"], packed["wd2"], packed["bd2"])

    mu = stats[:, :L]
    logvar = stats[:, L:]
    z = z2d.reshape(K, B, L)
    x_hat = xhat2d.reshape(K, B, C, IH, IW)
    return x_hat, mu, logvar, z


def iwae_reference(x, packed, eps, K):
    """Pure-JAX reference using the same bf16-packed weights (tolerance check)."""
    B = x.shape[0]
    x2d = x.reshape(B, -1)
    L = packed["wh"].shape[1] // 2
    h = jnp.maximum(jnp.dot(x2d.astype(jnp.bfloat16), packed["w1"],
                            preferred_element_type=jnp.float32) + packed["b1"], 0.0)
    stats = jnp.dot(h.astype(jnp.bfloat16), packed["wh"],
                    preferred_element_type=jnp.float32) + packed["bh"]
    mu, logvar = stats[:, :L], stats[:, L:]
    std = jnp.exp(0.5 * logvar)
    z = mu[None] + eps * std[None]                       # (K, B, L)
    z2 = z.reshape(K * B, L)
    hd = jnp.maximum(jnp.dot(z2.astype(jnp.bfloat16), packed["wd1"],
                             preferred_element_type=jnp.float32) + packed["bd1"], 0.0)
    logits = jnp.dot(hd.astype(jnp.bfloat16), packed["wd2"],
                     preferred_element_type=jnp.float32) + packed["bd2"]
    x_hat = jax.nn.sigmoid(logits).reshape(K, B, 3, 32, 32)
    return x_hat, mu, logvar, z


if __name__ == "__main__":
    # Small, deterministic configuration (decode() hard-codes 3x32x32).
    B, K, L, H = 2, 4, 16, 256
    C, IH, IW = 3, 32, 32
    D = C * IH * IW  # 3072

    key = jax.random.PRNGKey(0)
    ks = jax.random.split(key, 8)

    x = jax.random.uniform(ks[0], (B, C, IH, IW), dtype=jnp.float32)

    raw_params = {
        "w1":  (jax.random.normal(ks[1], (D, H), jnp.float32) * 0.02),
        "b1":  jnp.zeros((1, H), jnp.float32),
        "wmu": (jax.random.normal(ks[2], (H, L), jnp.float32) * 0.02),
        "bmu": jnp.zeros((1, L), jnp.float32),
        "wlv": (jax.random.normal(ks[3], (H, L), jnp.float32) * 0.02),
        "blv": jnp.zeros((1, L), jnp.float32),
        "wd1": (jax.random.normal(ks[4], (L, H), jnp.float32) * 0.02),
        "bd1": jnp.zeros((1, H), jnp.float32),
        "wd2": (jax.random.normal(ks[5], (H, D), jnp.float32) * 0.02),
        "bd2": jnp.zeros((1, D), jnp.float32),
    }

    # One-time weight packing outside the per-call path (perf review item 1).
    packed = pack_params(raw_params)
    jax.block_until_ready(packed)

    # eps ~ N(0,1), shape (K, B, L) as in torch.randn(self.K, *mu.size())
    eps = jax.random.normal(ks[6], (K, B, L), jnp.float32)

    fwd = jax.jit(iwae_forward, static_argnames=("K", "tn"))

    # Default configuration: 2 column tiles (even split for v7x megacore).
    x_hat, mu, logvar, z = fwd(x, packed, eps, K=K, tn=1536)
    jax.block_until_ready((x_hat, mu, logvar, z))

    assert x_hat.shape == (K, B, 3, 32, 32)
    assert mu.shape == (B, L) and logvar.shape == (B, L)
    assert z.shape == (K, B, L)
    assert bool(jnp.all(jnp.isfinite(x_hat)))
    assert bool(jnp.all((x_hat > 0.0) & (x_hat < 1.0)))

    # Smaller-tile configuration exercises the pl.Buffered(3) wd2/bd2 path.
    x_hat2, mu2, logvar2, z2 = fwd(x, packed, eps, K=K, tn=768)
    jax.block_until_ready(x_hat2)

    # Pure-JAX reference with identical bf16 packing.
    r_xhat, r_mu, r_logvar, r_z = iwae_reference(x, packed, eps, K)

    def close(a, b, tol=2e-2):
        return bool(jnp.allclose(a, b, atol=tol, rtol=tol))

    assert close(x_hat, r_xhat) and close(mu, r_mu)
    assert close(logvar, r_logvar) and close(z, r_z)
    assert close(x_hat, x_hat2, 1e-4) and close(mu, mu2, 1e-4)
    assert close(logvar, logvar2, 1e-4) and close(z, z2, 1e-4)

    print("KERNEL_OK")
</pallas_src>

<mosaic_0001>
module attributes {stable_mosaic.version = 11 : i64} {
  func.func @iwae_fused_kernel(%arg0: i32, %arg1: memref<2x3072xf32, #tpu.memory_space<vmem>>, %arg2: memref<3072x256xbf16, #tpu.memory_space<vmem>>, %arg3: memref<1x256xf32, #tpu.memory_space<vmem>>, %arg4: memref<256x32xbf16, #tpu.memory_space<vmem>>, %arg5: memref<1x32xf32, #tpu.memory_space<vmem>>, %arg6: memref<8x16xf32, #tpu.memory_space<vmem>>, %arg7: memref<16x256xbf16, #tpu.memory_space<vmem>>, %arg8: memref<1x256xf32, #tpu.memory_space<vmem>>, %arg9: memref<256x1536xbf16, #tpu.memory_space<vmem>>, %arg10: memref<1x1536xf32, #tpu.memory_space<vmem>>, %arg11: memref<2x32xf32, #tpu.memory_space<vmem>>, %arg12: memref<8x16xf32, #tpu.memory_space<vmem>>, %arg13: memref<8x1536xf32, #tpu.memory_space<vmem>>) attributes {dimension_semantics = [#tpu.dimension_semantics<parallel>], iteration_bounds = array<i64: 2>, scalar_prefetch = 0 : i64, scratch_operands = 0 : i64, tpu.core_type = #tpu.core_type<tc>, window_params = [{pipeline_mode = #tpu.pipeline_mode<synchronous>, transform_indices = @transform_0, window_bounds = array<i64: 2, 3072>}, {pipeline_mode = #tpu.pipeline_mode<synchronous>, transform_indices = @transform_1, window_bounds = array<i64: 3072, 256>}, {pipeline_mode = #tpu.pipeline_mode<synchronous>, transform_indices = @transform_2, window_bounds = array<i64: 1, 256>}, {pipeline_mode = #tpu.pipeline_mode<synchronous>, transform_indices = @transform_3, window_bounds = array<i64: 256, 32>}, {pipeline_mode = #tpu.pipeline_mode<synchronous>, transform_indices = @transform_4, window_bounds = array<i64: 1, 32>}, {pipeline_mode = #tpu.pipeline_mode<synchronous>, transform_indices = @transform_5, window_bounds = array<i64: 8, 16>}, {pipeline_mode = #tpu.pipeline_mode<synchronous>, transform_indices = @transform_6, window_bounds = array<i64: 16, 256>}, {pipeline_mode = #tpu.pipeline_mode<synchronous>, transform_indices = @transform_7, window_bounds = array<i64: 1, 256>}, {transform_indices = @transform_8, window_bounds = array<i64: 256, 1536>}, {transform_indices = @transform_9, window_bounds = array<i64: 1, 1536>}, {pipeline_mode = #tpu.pipeline_mode<synchronous>, transform_indices = @transform_10, window_bounds = array<i64: 2, 32>}, {pipeline_mode = #tpu.pipeline_mode<synchronous>, transform_indices = @transform_11, window_bounds = array<i64: 8, 16>}, {transform_indices = @transform_12, window_bounds = array<i64: 8, 1536>}]} {
    %c0 = arith.constant 0 : index
    %c0_0 = arith.constant 0 : index
    %0 = vector.load %arg1[%c0, %c0_0] : memref<2x3072xf32, #tpu.memory_space<vmem>>, vector<2x3072xf32>
    %1 = arith.truncf %0 : vector<2x3072xf32> to vector<2x3072xbf16>
    %c0_1 = arith.constant 0 : index
    %c0_2 = arith.constant 0 : index
    %2 = vector.load %arg2[%c0_1, %c0_2] : memref<3072x256xbf16, #tpu.memory_space<vmem>>, vector<3072x256xbf16>
    %cst = arith.constant dense<0.000000e+00> : vector<2x256xf32>
    %3 = tpu.matmul %1, %2, %cst {dimension_numbers = #tpu.dot_dimension_numbers<[1], [0], [0], [1], [0, 0, 1, 1], [], []>} : vector<2x3072xbf16>, vector<3072x256xbf16>, vector<2x256xf32> -> vector<2x256xf32>
    %c0_3 = arith.constant 0 : index
    %c0_4 = arith.constant 0 : index
    %4 = vector.load %arg3[%c0_3, %c0_4] : memref<1x256xf32, #tpu.memory_space<vmem>>, vector<1x256xf32>
    %5 = vector.broadcast %4 : vector<1x256xf32> to vector<2x256xf32>
    %6 = arith.addf %3, %5 : vector<2x256xf32>
    %cst_5 = arith.constant 0.000000e+00 : f32
    %7 = vector.broadcast %cst_5 : f32 to vector<2x256xf32>
    %8 = arith.maximumf %6, %7 : vector<2x256xf32>
    %9 = arith.truncf %8 : vector<2x256xf32> to vector<2x256xbf16>
    %c0_6 = arith.constant 0 : index
    %c0_7 = arith.constant 0 : index
    %10 = vector.load %arg4[%c0_6, %c0_7] : memref<256x32xbf16, #tpu.memory_space<vmem>>, vector<256x32xbf16>
    %cst_8 = arith.constant dense<0.000000e+00> : vector<2x32xf32>
    %11 = tpu.matmul %9, %10, %cst_8 {dimension_numbers = #tpu.dot_dimension_numbers<[1], [0], [0], [1], [0, 0, 1, 1], [], []>} : vector<2x256xbf16>, vector<256x32xbf16>, vector<2x32xf32> -> vector<2x32xf32>
    %c0_9 = arith.constant 0 : index
    %c0_10 = arith.constant 0 : index
    %12 = vector.load %arg5[%c0_9, %c0_10] : memref<1x32xf32, #tpu.memory_space<vmem>>, vector<1x32xf32>
    %13 = vector.broadcast %12 : vector<1x32xf32> to vector<2x32xf32>
    %14 = arith.addf %11, %13 : vector<2x32xf32>
    %c0_11 = arith.constant 0 : index
    %c0_12 = arith.constant 0 : index
    %15 = vector.load %arg11[%c0_11, %c0_12] : memref<2x32xf32, #tpu.memory_space<vmem>>, vector<2x32xf32>
    tpu.vector_store %arg11[%c0_11, %c0_12], %14 {strides = array<i32>} : memref<2x32xf32, #tpu.memory_space<vmem>>, vector<2x32xf32>,
    %16 = vector.extract_strided_slice %14 {offsets = [0, 0], sizes = [2, 16], strides = [1, 1]} : vector<2x32xf32> to vector<2x16xf32>
    %17 = vector.extract_strided_slice %14 {offsets = [0, 16], sizes = [2, 16], strides = [1, 1]} : vector<2x32xf32> to vector<2x16xf32>
    %cst_13 = arith.constant 5.000000e-01 : f32
    %18 = vector.broadcast %cst_13 : f32 to vector<2x16xf32>
    %19 = arith.mulf %18, %17 : vector<2x16xf32>
    %20 = math.exp %19 : vector<2x16xf32>
    %21 = tpu.concatenate %16, %16, %16, %16 in 0 : vector<2x16xf32>, vector<2x16xf32>, vector<2x16xf32>, vector<2x16xf32> -> vector<8x16xf32>
    %22 = tpu.concatenate %20, %20, %20, %20 in 0 : vector<2x16xf32>, vector<2x16xf32>, vector<2x16xf32>, vector<2x16xf32> -> vector<8x16xf32>
    %c0_14 = arith.constant 0 : index
    %c0_15 = arith.constant 0 : index
    %23 = vector.load %arg6[%c0_14, %c0_15] : memref<8x16xf32, #tpu.memory_space<vmem>>, vector<8x16xf32>
    %24 = arith.mulf %23, %22 : vector<8x16xf32>
    %25 = arith.addf %21, %24 : vector<8x16xf32>
    %c0_16 = arith.constant 0 : index
    %c0_17 = arith.constant 0 : index
    %26 = vector.load %arg12[%c0_16, %c0_17] : memref<8x16xf32, #tpu.memory_space<vmem>>, vector<8x16xf32>
    tpu.vector_store %arg12[%c0_16, %c0_17], %25 {strides = array<i32>} : memref<8x16xf32, #tpu.memory_space<vmem>>, vector<8x16xf32>,
    %27 = arith.truncf %25 : vector<8x16xf32> to vector<8x16xbf16>
    %c0_18 = arith.constant 0 : index
    %c0_19 = arith.constant 0 : index
    %28 = vector.load %arg7[%c0_18, %c0_19] : memref<16x256xbf16, #tpu.memory_space<vmem>>, vector<16x256xbf16>
    %cst_20 = arith.constant dense<0.000000e+00> : vector<8x256xf32>
    %29 = tpu.matmul %27, %28, %cst_20 {dimension_numbers = #tpu.dot_dimension_numbers<[1], [0], [0], [1], [0, 0, 1, 1], [], []>} : vector<8x16xbf16>, vector<16x256xbf16>, vector<8x256xf32> -> vector<8x256xf32>
    %c0_21 = arith.constant 0 : index
    %c0_22 = arith.constant 0 : index
    %30 = vector.load %arg8[%c0_21, %c0_22] : memref<1x256xf32, #tpu.memory_space<vmem>>, vector<1x256xf32>
    %31 = vector.broadcast %30 : vector<1x256xf32> to vector<8x256xf32>
    %32 = arith.addf %29, %31 : vector<8x256xf32>
    %cst_23 = arith.constant 0.000000e+00 : f32
    %33 = vector.broadcast %cst_23 : f32 to vector<8x256xf32>
    %34 = arith.maximumf %32, %33 : vector<8x256xf32>
    %35 = arith.truncf %34 : vector<8x256xf32> to vector<8x256xbf16>
    %c0_24 = arith.constant 0 : index
    %c0_25 = arith.constant 0 : index
    %36 = vector.load %arg9[%c0_24, %c0_25] : memref<256x1536xbf16, #tpu.memory_space<vmem>>, vector<256x1536xbf16>
    %cst_26 = arith.constant dense<0.000000e+00> : vector<8x1536xf32>
    %37 = tpu.matmul %35, %36, %cst_26 {dimension_numbers = #tpu.dot_dimension_numbers<[1], [0], [0], [1], [0, 0, 1, 1], [], []>} : vector<8x256xbf16>, vector<256x1536xbf16>, vector<8x1536xf32> -> vector<8x1536xf32>
    %c0_27 = arith.constant 0 : index
    %c0_28 = arith.constant 0 : index
    %38 = vector.load %arg10[%c0_27, %c0_28] : memref<1x1536xf32, #tpu.memory_space<vmem>>, vector<1x1536xf32>
    %39 = vector.broadcast %38 : vector<1x1536xf32> to vector<8x1536xf32>
    %40 = arith.addf %37, %39 : vector<8x1536xf32>
    %41 = arith.negf %40 : vector<8x1536xf32>
    %42 = math.exp %41 : vector<8x1536xf32>
    %cst_29 = arith.constant 1.000000e+00 : f32
    %43 = vector.broadcast %cst_29 : f32 to vector<8x1536xf32>
    %44 = arith.addf %43, %42 : vector<8x1536xf32>
    %45 = arith.divf %43, %44 : vector<8x1536xf32>
    %c0_30 = arith.constant 0 : index
    %c0_31 = arith.constant 0 : index
    %46 = vector.load %arg13[%c0_30, %c0_31] : memref<8x1536xf32, #tpu.memory_space<vmem>>, vector<8x1536xf32>
    tpu.vector_store %arg13[%c0_30, %c0_31], %45 {strides = array<i32>} : memref<8x1536xf32, #tpu.memory_space<vmem>>, vector<8x1536xf32>,
    return
  }
  func.func @transform_0(%arg0: i32) -> (i32, i32) {
    %c0_i32 = arith.constant 0 : i32
    %c0_i32_0 = arith.constant 0 : i32
    %c0_i32_1 = arith.constant 0 : i32
    return %c0_i32, %c0_i32_0 : i32, i32
  }
  func.func @transform_1(%arg0: i32) -> (i32, i32) {
    %c0_i32 = arith.constant 0 : i32
    %c0_i32_0 = arith.constant 0 : i32
    %c0_i32_1 = arith.constant 0 : i32
    return %c0_i32, %c0_i32_0 : i32, i32
  }
  func.func @transform_2(%arg0: i32) -> (i32, i32) {
    %c0_i32 = arith.constant 0 : i32
    %c0_i32_0 = arith.constant 0 : i32
    %c0_i32_1 = arith.constant 0 : i32
    return %c0_i32, %c0_i32_0 : i32, i32
  }
  func.func @transform_3(%arg0: i32) -> (i32, i32) {
    %c0_i32 = arith.constant 0 : i32
    %c0_i32_0 = arith.constant 0 : i32
    %c0_i32_1 = arith.constant 0 : i32
    return %c0_i32, %c0_i32_0 : i32, i32
  }
  func.func @transform_4(%arg0: i32) -> (i32, i32) {
    %c0_i32 = arith.constant 0 : i32
    %c0_i32_0 = arith.constant 0 : i32
    %c0_i32_1 = arith.constant 0 : i32
    return %c0_i32, %c0_i32_0 : i32, i32
  }
  func.func @transform_5(%arg0: i32) -> (i32, i32) {
    %c0_i32 = arith.constant 0 : i32
    %c0_i32_0 = arith.constant 0 : i32
    %c0_i32_1 = arith.constant 0 : i32
    return %c0_i32, %c0_i32_0 : i32, i32
  }
  func.func @transform_6(%arg0: i32) -> (i32, i32) {
    %c0_i32 = arith.constant 0 : i32
    %c0_i32_0 = arith.constant 0 : i32
    %c0_i32_1 = arith.constant 0 : i32
    return %c0_i32, %c0_i32_0 : i32, i32
  }
  func.func @transform_7(%arg0: i32) -> (i32, i32) {
    %c0_i32 = arith.constant 0 : i32
    %c0_i32_0 = arith.constant 0 : i32
    %c0_i32_1 = arith.constant 0 : i32
    return %c0_i32, %c0_i32_0 : i32, i32
  }
  func.func @transform_8(%arg0: i32) -> (i32, i32) {
    %c0_i32 = arith.constant 0 : i32
    %c0_i32_0 = arith.constant 0 : i32
    return %c0_i32, %arg0 : i32, i32
  }
  func.func @transform_9(%arg0: i32) -> (i32, i32) {
    %c0_i32 = arith.constant 0 : i32
    %c0_i32_0 = arith.constant 0 : i32
    return %c0_i32, %arg0 : i32, i32
  }
  func.func @transform_10(%arg0: i32) -> (i32, i32) {
    %c0_i32 = arith.constant 0 : i32
    %c0_i32_0 = arith.constant 0 : i32
    %c0_i32_1 = arith.constant 0 : i32
    return %c0_i32, %c0_i32_0 : i32, i32
  }
  func.func @transform_11(%arg0: i32) -> (i32, i32) {
    %c0_i32 = arith.constant 0 : i32
    %c0_i32_0 = arith.constant 0 : i32
    %c0_i32_1 = arith.constant 0 : i32
    return %c0_i32, %c0_i32_0 : i32, i32
  }
  func.func @transform_12(%arg0: i32) -> (i32, i32) {
    %c0_i32 = arith.constant 0 : i32
    %c0_i32_0 = arith.constant 0 : i32
    return %c0_i32, %arg0 : i32, i32
  }
}

</mosaic_0001>

<llo_original>
// kernel: iwae_forward.1
$region0: #{iwae_forward.1}
  #allocation0 [shape = 'u32[]', space=smem, size = 0x4, offset = 0x4, fixed_abs, tag = 'smem constant byte address 0x4 - core index']
  #allocation1 [shape = 'u32[144,128]{1,0:T(1,128)}', space=vmem, size = 0x12000, scoped, tag = 'internal scratch']
  %s0 = inlined_call_operand.vmem [shape: f32[2,3072], index: 0, kind: input, shape index: {}]
  %s1 = inlined_call_operand.hbm [shape: bf16[3072,256], index: 1, kind: input, shape index: {}]
  %s2 = inlined_call_operand.hbm [shape: f32[1,256], index: 2, kind: input, shape index: {}]
  %s3 = inlined_call_operand.vmem [shape: bf16[256,32], index: 3, kind: input, shape index: {}]
  %s4 = inlined_call_operand.hbm [shape: f32[1,32], index: 4, kind: input, shape index: {}]
  %s5 = inlined_call_operand.hbm [shape: f32[8,16], index: 5, kind: input, shape index: {}]
  %s6 = inlined_call_operand.hbm [shape: bf16[16,256], index: 6, kind: input, shape index: {}]
  %s7 = inlined_call_operand.hbm [shape: f32[1,256], index: 7, kind: input, shape index: {}]
  %s8 = inlined_call_operand.hbm [shape: bf16[256,3072], index: 8, kind: input, shape index: {}]
  %s9 = inlined_call_operand.hbm [shape: f32[1,3072], index: 9, kind: input, shape index: {}]
  %s10 = inlined_call_operand.vmem [shape: f32[2,32], index: 10, kind: output, shape index: {0}]
  %s11 = inlined_call_operand.hbm [shape: f32[8,16], index: 11, kind: output, shape index: {1}]
  %s12 = inlined_call_operand.vmem [shape: f32[8,3072], index: 12, kind: output, shape index: {2}]
  %13 = xla_tuple %s10, %s11, %s12
  %s14 = sld [smem:[#allocation0]]
  $region121: #{iwae_forward.1} parent=0
    _
  %s16 = ssub.s32 1, %s14
  %s17 = scalar_select 0, %s16, %s14
  $region1: #{iwae_forward.1} parent=0
    #allocation2 [shape = 'u8[1572864]{0}', space=vmem, size = 0x180000, scoped, tag = 'input window, operand 1, single buffered']
    #allocation3 [shape = 's32[2]{0}', space=sflag, size = 0x8, scoped, tag = 'scoped memory for iwae_forward.1']
    #allocation4 [shape = 's32[2]{0}', space=sflag, size = 0x8, scoped, tag = 'scoped memory for iwae_forward.1']
    #allocation5 [shape = 'u8[1024]{0}', space=vmem, size = 0x400, scoped, tag = 'input window, operand 2, single buffered']
    #allocation6 [shape = 's32[1]{0}', space=sflag, size = 0x4, scoped, tag = 'scoped memory for iwae_forward.1']
    #allocation7 [shape = 'u8[512]{0}', space=vmem, size = 0x400, scoped, tag = 'input window, operand 4, single buffered']
    #allocation8 [shape = 'u8[4096]{0}', space=vmem, size = 0x1000, scoped, tag = 'input window, operand 5, single buffered']
    #allocation9 [shape = 's32[1]{0}', space=sflag, size = 0x4, scoped, tag = 'scoped memory for iwae_forward.1']
    #allocation10 [shape = 'u8[8192]{0}', space=vmem, size = 0x2000, scoped, tag = 'input window, operand 6, single buffered']
    #allocation11 [shape = 'u8[1024]{0}', space=vmem, size = 0x400, scoped, tag = 'input window, operand 7, single buffered']
    #allocation12 [shape = 's32[1]{0}', space=sflag, size = 0x4, scoped, tag = 'scoped memory for iwae_forward.1']
    #allocation13 [shape = 'u8[1572864]{0}', space=vmem, size = 0x180000, scoped, tag = 'input window, operand 8']
    #allocation14 [shape = 'u8[12288]{0}', space=vmem, size = 0x3000, scoped, tag = 'input window, operand 9']
    #allocation15 [shape = 'u8[4096]{0}', space=vmem, size = 0x1000, scoped, tag = 'output window, operand 1, single buffered']
    %18 = vsyncpa [#allocation3], 0
    %19 = vsyncpa [#allocation6], 0
    %20 = vsyncpa [#allocation9], 0
    %21 = vsyncpa [#allocation12], 0
    %22 = vsyncpa [#allocation4], 0
    loop: start=0, step=1, limit=4
    $region2: #{iwae_forward.1} parent=1 // loop_pre_header
      _
    $region3: #{iwae_forward.1} parent=1 // loop_header
      %s24 = sphi 0, %s28
      %p25 = scmp.ge.s32.totalorder %s24, 4
      %s32 = sphi 0, %s32
      %s34 = sphi 0, %s32
      %s35 = sphi 0, %s34
      %s49 = sphi 0, %s35
      %s53 = sphi 0, %s53
      %s55 = sphi 0, %s53
      %s56 = sphi 0, %s55
      %s70 = sphi 0, %s56
      %s74 = sphi 0, %s74
      %s76 = sphi 0, %s74
      %s77 = sphi 0, %s76
      %s91 = sphi 0, %s77
      %s95 = sphi 0, %s95
      %s97 = sphi 0, %s95
      %s98 = sphi 0, %s97
      %s112 = sphi 0, %s98
      %s116 = sphi 0, %s116
      %s118 = sphi 0, %s116
      %s119 = sphi 0, %s118
      %s133 = sphi 0, %s119
      %s137 = sphi 0, %s137
      %s139 = sphi 0, %s137
      %s140 = sphi 0, %s139
      %s154 = sphi 0, %s140
      %s158 = sphi 0, %s158
      %s160 = sphi 0, %s158
      %s161 = sphi 0, %s160
      %s175 = sphi 0, %s161
      %s179 = sphi 0, %s179
      %s181 = sphi 0, %s179
      %s182 = sphi 0, %s181
      %s196 = sphi 0, %s182
      %s202 = sphi 0, %s204
      %s205 = sphi 0, %s202
      %s206 = sphi 0, %s205
      %s222 = sphi 0, %s206
      %s228 = sphi 0, %s230
      %s231 = sphi 0, %s228
      %s232 = sphi 0, %s231
      %s248 = sphi 0, %s232
      %s252 = sphi 0, %s252
      %s254 = sphi 0, %s252
      %s255 = sphi 0, %s254
      %s269 = sphi 0, %s255
      %s273 = sphi 0, %s273
      %s275 = sphi 0, %s273
      %s276 = sphi 0, %s275
      %s290 = sphi 0, %s276
      %s296 = sphi 0, %s298
      %s299 = sphi 0, %s296
      %s300 = sphi 0, %s299
      %s316 = sphi 0, %s300
    $region4: #{iwae_forward.1} parent=1 // loop_header_branch
      %27 = sbr.rel (%p25) target = $region8
    $region5: #{iwae_forward.1} parent=1 // loop_body
      %s29 = ssub.s32 %s24, 1
      %s30 = ssub.s32 %s24, 2
      %s31 = sadd.s32 %s24, 1
      %s33 = sadd.s32 %s32, 1
      %p36 = scmp.eq.s32.totalorder %s24, 1
      %p37 = scmp.ne.s32.totalorder %s32, %s34
      %p38 = scmp.eq.s32.totalorder %s24, 0
      %p39 = por %p37, %p38
      %p40 = scmp.ne.s32.totalorder %s32, %s34
      %p41 = scmp.eq.s32.totalorder %s29, 1
      %p42 = por %p40, %p41
      %p43 = scmp.ne.s32.totalorder %s34, %s35
      %p44 = scmp.eq.s32.totalorder %s29, 0
      %p45 = por %p43, %p44
      %p46 = scmp.ne.s32.totalorder %s34, %s35
      %p47 = scmp.eq.s32.totalorder %s30, 1
      %p48 = por %p46, %p47
      %p50 = scmp.ne.s32.totalorder %s35, %s49
      %p51 = scmp.eq.s32.totalorder %s30, 0
      %p52 = por %p50, %p51
      %s54 = sadd.s32 %s53, 1
      %p57 = scmp.eq.s32.totalorder %s24, 1
      %p58 = scmp.ne.s32.totalorder %s53, %s55
      %p59 = scmp.eq.s32.totalorder %s24, 0
      %p60 = por %p58, %p59
      %p61 = scmp.ne.s32.totalorder %s53, %s55
      %p62 = scmp.eq.s32.totalorder %s29, 1
      %p63 = por %p61, %p62
      %p64 = scmp.ne.s32.totalorder %s55, %s56
      %p65 = scmp.eq.s32.totalorder %s29, 0
      %p66 = por %p64, %p65
      %p67 = scmp.ne.s32.totalorder %s55, %s56
      %p68 = scmp.eq.s32.totalorder %s30, 1
      %p69 = por %p67, %p68
      %p71 = scmp.ne.s32.totalorder %s56, %s70
      %p72 = scmp.eq.s32.totalorder %s30, 0
      %p73 = por %p71, %p72
      %s75 = sadd.s32 %s74, 1
      %p78 = scmp.eq.s32.totalorder %s24, 1
      %p79 = scmp.ne.s32.totalorder %s74, %s76
      %p80 = scmp.eq.s32.totalorder %s24, 0
      %p81 = por %p79, %p80
      %p82 = scmp.ne.s32.totalorder %s74, %s76
      %p83 = scmp.eq.s32.totalorder %s29, 1
      %p84 = por %p82, %p83
      %p85 = scmp.ne.s32.totalorder %s76, %s77
      %p86 = scmp.eq.s32.totalorder %s29, 0
      %p87 = por %p85, %p86
      %p88 = scmp.ne.s32.totalorder %s76, %s77
      %p89 = scmp.eq.s32.totalorder %s30, 1
      %p90 = por %p88, %p89
      %p92 = scmp.ne.s32.totalorder %s77, %s91
      %p93 = scmp.eq.s32.totalorder %s30, 0
      %p94 = por %p92, %p93
      %s96 = sadd.s32 %s95, 1
      %p99 = scmp.eq.s32.totalorder %s24, 1
      %p100 = scmp.ne.s32.totalorder %s95, %s97
      %p101 = scmp.eq.s32.totalorder %s24, 0
      %p102 = por %p100, %p101
      %p103 = scmp.ne.s32.totalorder %s95, %s97
      %p104 = scmp.eq.s32.totalorder %s29, 1
      %p105 = por %p103, %p104
      %p106 = scmp.ne.s32.totalorder %s97, %s98
      %p107 = scmp.eq.s32.totalorder %s29, 0
      %p108 = por %p106, %p107
      %p109 = scmp.ne.s32.totalorder %s97, %s98
      %p110 = scmp.eq.s32.totalorder %s30, 1
      %p111 = por %p109, %p110
      %p113 = scmp.ne.s32.totalorder %s98, %s112
      %p114 = scmp.eq.s32.totalorder %s30, 0
      %p115 = por %p113, %p114
      %s117 = sadd.s32 %s116, 1
      %p120 = scmp.eq.s32.totalorder %s24, 1
      %p121 = scmp.ne.s32.totalorder %s116, %s118
      %p122 = scmp.eq.s32.totalorder %s24, 0
      %p123 = por %p121, %p122
      %p124 = scmp.ne.s32.totalorder %s116, %s118
      %p125 = scmp.eq.s32.totalorder %s29, 1
      %p126 = por %p124, %p125
      %p127 = scmp.ne.s32.totalorder %s118, %s119
      %p128 = scmp.eq.s32.totalorder %s29, 0
      %p129 = por %p127, %p128
      %p130 = scmp.ne.s32.totalorder %s118, %s119
      %p131 = scmp.eq.s32.totalorder %s30, 1
      %p132 = por %p130, %p131
      %p134 = scmp.ne.s32.totalorder %s119, %s133
      %p135 = scmp.eq.s32.totalorder %s30, 0
      %p136 = por %p134, %p135
      %s138 = sadd.s32 %s137, 1
      %p141 = scmp.eq.s32.totalorder %s24, 1
      %p142 = scmp.ne.s32.totalorder %s137, %s139
      %p143 = scmp.eq.s32.totalorder %s24, 0
      %p144 = por %p142, %p143
      %p145 = scmp.ne.s32.totalorder %s137, %s139
      %p146 = scmp.eq.s32.totalorder %s29, 1
      %p147 = por %p145, %p146
      %p148 = scmp.ne.s32.totalorder %s139, %s140
      %p149 = scmp.eq.s32.totalorder %s29, 0
      %p150 = por %p148, %p149
      %p151 = scmp.ne.s32.totalorder %s139, %s140
      %p152 = scmp.eq.s32.totalorder %s30, 1
      %p153 = por %p151, %p152
      %p155 = scmp.ne.s32.totalorder %s140, %s154
      %p156 = scmp.eq.s32.totalorder %s30, 0
      %p157 = por %p155, %p156
      %s159 = sadd.s32 %s158, 1
      %p162 = scmp.eq.s32.totalorder %s24, 1
      %p163 = scmp.ne.s32.totalorder %s158, %s160
      %p164 = scmp.eq.s32.totalorder %s24, 0
      %p165 = por %p163, %p164
      %p166 = scmp.ne.s32.totalorder %s158, %s160
      %p167 = scmp.eq.s32.totalorder %s29, 1
      %p168 = por %p166, %p167
      %p169 = scmp.ne.s32.totalorder %s160, %s161
      %p170 = scmp.eq.s32.totalorder %s29, 0
      %p171 = por %p169, %p170
      %p172 = scmp.ne.s32.totalorder %s160, %s161
      %p173 = scmp.eq.s32.totalorder %s30, 1
      %p174 = por %p172, %p173
      %p176 = scmp.ne.s32.totalorder %s161, %s175
      %p177 = scmp.eq.s32.totalorder %s30, 0
      %p178 = por %p176, %p177
      %s180 = sadd.s32 %s179, 1
      %p183 = scmp.eq.s32.totalorder %s24, 1
      %p184 = scmp.ne.s32.totalorder %s179, %s181
      %p185 = scmp.eq.s32.totalorder %s24, 0
      %p186 = por %p184, %p185
      %p187 = scmp.ne.s32.totalorder %s179, %s181
      %p188 = scmp.eq.s32.totalorder %s29, 1
      %p189 = por %p187, %p188
      %p190 = scmp.ne.s32.totalorder %s181, %s182
      %p191 = scmp.eq.s32.totalorder %s29, 0
      %p192 = por %p190, %p191
      %p193 = scmp.ne.s32.totalorder %s181, %s182
      %p194 = scmp.eq.s32.totalorder %s30, 1
      %p195 = por %p193, %p194
      %p197 = scmp.ne.s32.totalorder %s182, %s196
      %p198 = scmp.eq.s32.totalorder %s30, 0
      %p199 = por %p197, %p198
      %s200 = ssub.s32 %s24, %s31
      %p201 = scmp.eq.s32.totalorder %s200, 0
      %s203 = sadd.s32 %s202, 1
      %s204 = scalar_select %p201, %s202, %s203
      %p207 = pneg %p201
      %p208 = scmp.eq.s32.totalorder %s24, 1
      %p209 = por %p207, %p208
      %p210 = scmp.ne.s32.totalorder %s202, %s205
      %p211 = scmp.eq.s32.totalorder %s24, 0
      %p212 = por %p210, %p211
      %p213 = scmp.ne.s32.totalorder %s202, %s205
      %p214 = scmp.eq.s32.totalorder %s29, 1
      %p215 = por %p213, %p214
      %p216 = scmp.ne.s32.totalorder %s205, %s206
      %p217 = scmp.eq.s32.totalorder %s29, 0
      %p218 = por %p216, %p217
      %p219 = scmp.ne.s32.totalorder %s205, %s206
      %p220 = scmp.eq.s32.totalorder %s30, 1
      %p221 = por %p219, %p220
      %p223 = scmp.ne.s32.totalorder %s206, %s222
      %p224 = scmp.eq.s32.totalorder %s30, 0
      %p225 = por %p223, %p224
      %s226 = ssub.s32 %s24, %s31
      %p227 = scmp.eq.s32.totalorder %s226, 0
      %s229 = sadd.s32 %s228, 1
      %s230 = scalar_select %p227, %s228, %s229
      %p233 = pneg %p227
      %p234 = scmp.eq.s32.totalorder %s24, 1
      %p235 = por %p233, %p234
      %p236 = scmp.ne.s32.totalorder %s228, %s231
      %p237 = scmp.eq.s32.totalorder %s24, 0
      %p238 = por %p236, %p237
      %p239 = scmp.ne.s32.totalorder %s228, %s231
      %p240 = scmp.eq.s32.totalorder %s29, 1
      %p241 = por %p239, %p240
      %p242 = scmp.ne.s32.totalorder %s231, %s232
      %p243 = scmp.eq.s32.totalorder %s29, 0
      %p244 = por %p242, %p243
      %p245 = scmp.ne.s32.totalorder %s231, %s232
      %p246 = scmp.eq.s32.totalorder %s30, 1
      %p247 = por %p245, %p246
      %p249 = scmp.ne.s32.totalorder %s232, %s248
      %p250 = scmp.eq.s32.totalorder %s30, 0
      %p251 = por %p249, %p250
      %s253 = sadd.s32 %s252, 1
      %p256 = scmp.eq.s32.totalorder %s24, 1
      %p257 = scmp.ne.s32.totalorder %s252, %s254
      %p258 = scmp.eq.s32.totalorder %s24, 0
      %p259 = por %p257, %p258
      %p260 = scmp.ne.s32.totalorder %s252, %s254
      %p261 = scmp.eq.s32.totalorder %s29, 1
      %p262 = por %p260, %p261
      %p263 = scmp.ne.s32.totalorder %s254, %s255
      %p264 = scmp.eq.s32.totalorder %s29, 0
      %p265 = por %p263, %p264
      %p266 = scmp.ne.s32.totalorder %s254, %s255
      %p267 = scmp.eq.s32.totalorder %s30, 1
      %p268 = por %p266, %p267
      %p270 = scmp.ne.s32.totalorder %s255, %s269
      %p271 = scmp.eq.s32.totalorder %s30, 0
      %p272 = por %p270, %p271
      %s274 = sadd.s32 %s273, 1
      %p277 = scmp.eq.s32.totalorder %s24, 1
      %p278 = scmp.ne.s32.totalorder %s273, %s275
      %p279 = scmp.eq.s32.totalorder %s24, 0
      %p280 = por %p278, %p279
      %p281 = scmp.ne.s32.totalorder %s273, %s275
      %p282 = scmp.eq.s32.totalorder %s29, 1
      %p283 = por %p281, %p282
      %p284 = scmp.ne.s32.totalorder %s275, %s276
      %p285 = scmp.eq.s32.totalorder %s29, 0
      %p286 = por %p284, %p285
      %p287 = scmp.ne.s32.totalorder %s275, %s276
      %p288 = scmp.eq.s32.totalorder %s30, 1
      %p289 = por %p287, %p288
      %p291 = scmp.ne.s32.totalorder %s276, %s290
      %p292 = scmp.eq.s32.totalorder %s30, 0
      %p293 = por %p291, %p292
      %s294 = ssub.s32 %s24, %s31
      %p295 = scmp.eq.s32.totalorder %s294, 0
      %s297 = sadd.s32 %s296, 1
      %s298 = scalar_select %p295, %s296, %s297
      %p301 = pneg %p295
      %p302 = scmp.eq.s32.totalorder %s24, 1
      %p303 = por %p301, %p302
      %p304 = scmp.ne.s32.totalorder %s296, %s299
      %p305 = scmp.eq.s32.totalorder %s24, 0
      %p306 = por %p304, %p305
      %p307 = scmp.ne.s32.totalorder %s296, %s299
      %p308 = scmp.eq.s32.totalorder %s29, 1
      %p309 = por %p307, %p308
      %p310 = scmp.ne.s32.totalorder %s299, %s300
      %p311 = scmp.eq.s32.totalorder %s29, 0
      %p312 = por %p310, %p311
      %p313 = scmp.ne.s32.totalorder %s299, %s300
      %p314 = scmp.eq.s32.totalorder %s30, 1
      %p315 = por %p313, %p314
      %p317 = scmp.ne.s32.totalorder %s300, %s316
      %p318 = scmp.eq.s32.totalorder %s30, 0
      %p319 = por %p317, %p318
      %p320 = scmp.le.s32.totalorder 1, %s24
      %p321 = scmp.lt.s32.totalorder %s24, 3
      %p322 = pnand %p320, %p321
      %p323 = pneg %p322
      // Predicated region
      $region9: #{iwae_forward.1} parent=5 // pred_check
        _
      $region10: #{iwae_forward.1} parent=5 // pred_check_branch
        %325 = sbr.rel (%p322) target = $region12
      $region11: #{iwae_forward.1} parent=5 // pred_region
        %s326 = ssub.s32 %s24, 1
        // Predicated region
        $region13: #{iwae_forward.1} parent=11 // pred_check
          %p327 = pneg %p45
        $region14: #{iwae_forward.1} parent=11 // pred_check_branch
          %329 = sbr.rel (%p327) target = $region16
        $region15: #{iwae_forward.1} parent=11 // pred_region
          _
        $region16: #{iwae_forward.1} parent=11 // pred_fallthru
          _
        // Predicated region
        $region17: #{iwae_forward.1} parent=11 // pred_check
          %p330 = pneg %p66
        $region18: #{iwae_forward.1} parent=11 // pred_check_branch
          %332 = sbr.rel (%p330) target = $region20
        $region19: #{iwae_forward.1} parent=11 // pred_region
          %s334 = ssub.s32 49152, 49152
          %335 = vsyncadd [#allocation3], %s334
          %s336 = sshll.u32 [#allocation2], 4
          %s337 = int_to_ptr.vmem [resolvable:$true] %s336
          %342 = dma.hbm_to_vmem [thread:$0]  %s1, 49152, %s337, [#allocation3], 128, 128, 8
        $region20: #{iwae_forward.1} parent=11 // pred_fallthru
          _
        // Predicated region
        $region21: #{iwae_forward.1} parent=11 // pred_check
          %p343 = pneg %p87
        $region22: #{iwae_forward.1} parent=11 // pred_check_branch
          %345 = sbr.rel (%p343) target = $region24
        $region23: #{iwae_forward.1} parent=11 // pred_region
          %s347 = ssub.s32 32, 32
          %348 = vsyncadd [#allocation6], %s347
          %s350 = sshll.u32 [#allocation5], 4
          %s351 = int_to_ptr.vmem [resolvable:$true] %s350
          %353 = dma.hbm_to_vmem [thread:$0]  %s2, 32, %s351, [#allocation6]
        $region24: #{iwae_forward.1} parent=11 // pred_fallthru
          _
        // Predicated region
        $region25: #{iwae_forward.1} parent=11 // pred_check
          %p354 = pneg %p108
        $region26: #{iwae_forward.1} parent=11 // pred_check_branch
          %356 = sbr.rel (%p354) target = $region28
        $region27: #{iwae_forward.1} parent=11 // pred_region
          _
        $region28: #{iwae_forward.1} parent=11 // pred_fallthru
          _
        // Predicated region
        $region29: #{iwae_forward.1} parent=11 // pred_check
          %p357 = pneg %p129
        $region30: #{iwae_forward.1} parent=11 // pred_check_branch
          %359 = sbr.rel (%p357) target = $region32
        $region31: #{iwae_forward.1} parent=11 // pred_region
          %s361 = ssub.s32 16, 16
          %362 = vsyncadd [#allocation6], %s361
          %s364 = sshll.u32 [#allocation7], 4
          %s365 = int_to_ptr.vmem [resolvable:$true] %s364
          %367 = dma.hbm_to_vmem [thread:$0]  %s4, 16, %s365, [#allocation6]
        $region32: #{iwae_forward.1} parent=11 // pred_fallthru
          _
        // Predicated region
        $region33: #{iwae_forward.1} parent=11 // pred_check
          %p368 = pneg %p150
        $region34: #{iwae_forward.1} parent=11 // pred_check_branch
          %370 = sbr.rel (%p368) target = $region36
        $region35: #{iwae_forward.1} parent=11 // pred_region
          %s372 = ssub.s32 128, 128
          %373 = vsyncadd [#allocation9], %s372
          %s375 = sshll.u32 [#allocation8], 4
          %s376 = int_to_ptr.vmem [resolvable:$true] %s375
          %378 = dma.hbm_to_vmem [thread:$0]  %s5, 128, %s376, [#allocation9]
        $region36: #{iwae_forward.1} parent=11 // pred_fallthru
          _
        // Predicated region
        $region37: #{iwae_forward.1} parent=11 // pred_check
          %p379 = pneg %p171
        $region38: #{iwae_forward.1} parent=11 // pred_check_branch
          %381 = sbr.rel (%p379) target = $region40
        $region39: #{iwae_forward.1} parent=11 // pred_region
          %s383 = ssub.s32 256, 256
          %384 = vsyncadd [#allocation9], %s383
          %s385 = sshll.u32 [#allocation10], 4
          %s386 = int_to_ptr.vmem [resolvable:$true] %s385
          %391 = dma.hbm_to_vmem [thread:$0]  %s6, 256, %s386, [#allocation9], 128, 128, 8
        $region40: #{iwae_forward.1} parent=11 // pred_fallthru
          _
        // Predicated region
        $region41: #{iwae_forward.1} parent=11 // pred_check
          %p392 = pneg %p192
        $region42: #{iwae_forward.1} parent=11 // pred_check_branch
          %394 = sbr.rel (%p392) target = $region44
        $region43: #{iwae_forward.1} parent=11 // pred_region
          %s396 = ssub.s32 32, 32
          %397 = vsyncadd [#allocation12], %s396
          %s399 = sshll.u32 [#allocation11], 4
          %s400 = int_to_ptr.vmem [resolvable:$true] %s399
          %402 = dma.hbm_to_vmem [thread:$0]  %s7, 32, %s400, [#allocation12]
        $region44: #{iwae_forward.1} parent=11 // pred_fallthru
          _
      $region12: #{iwae_forward.1} parent=5 // pred_fallthru
        _
      %p403 = scmp.lt.s32.totalorder %s24, 2
      // Predicated region
      $region45: #{iwae_forward.1} parent=5 // pred_check
        %p404 = pneg %p403
      $region46: #{iwae_forward.1} parent=5 // pred_check_branch
        %406 = sbr.rel (%p404) target = $region48
      $region47: #{iwae_forward.1} parent=5 // pred_region
        // Predicated region
        $region49: #{iwae_forward.1} parent=47 // pred_check
          %p407 = pneg %p212
        $region50: #{iwae_forward.1} parent=47 // pred_check_branch
          %409 = sbr.rel (%p407) target = $region52
        $region51: #{iwae_forward.1} parent=47 // pred_region
          %s410 = sand.u32 %s24, 1
          %s411 = scalar_lea.sflag [#allocation3], %s410
          %s412 = sand.u32 %s202, 1
          %s413 = smul.addr %s412, 1536
          %s414 = scalar_lea.vmem [#allocation13], %s413
          %s415 = smul.u32 12, %s24
          %s417 = ssub.s32 24576, 24576
          %418 = vsyncadd %s411, %s417
          %s419 = smul.addr %s415, 64
          %s420 = scalar_lea.hbm %s8, %s419
          %s421 = sshll.u32 %s414, 4
          %s422 = int_to_ptr.vmem [resolvable:$true] %s421
          %427 = dma.hbm_to_vmem [thread:$0]  %s420, 24576, %s422, %s411, 1536, 768, 48
        $region52: #{iwae_forward.1} parent=47 // pred_fallthru
          _
        // Predicated region
        $region53: #{iwae_forward.1} parent=47 // pred_check
          %p428 = pneg %p238
        $region54: #{iwae_forward.1} parent=47 // pred_check_branch
          %430 = sbr.rel (%p428) target = $region56
        $region55: #{iwae_forward.1} parent=47 // pred_region
          %s431 = sand.u32 %s24, 1
          %s432 = scalar_lea.sflag [#allocation3], %s431
          %s433 = sand.u32 %s228, 1
          %s434 = smul.addr %s433, 12
          %s435 = scalar_lea.vmem [#allocation14], %s434
          %s436 = smul.u32 12, %s24
          %s438 = ssub.s32 192, 192
          %439 = vsyncadd %s432, %s438
          %s440 = smul.addr %s436, 16
          %s441 = scalar_lea.hbm %s9, %s440
          %s443 = sshll.u32 %s435, 4
          %s444 = int_to_ptr.vmem [resolvable:$true] %s443
          %446 = dma.hbm_to_vmem [thread:$0]  %s441, 192, %s444, %s432
        $region56: #{iwae_forward.1} parent=47 // pred_fallthru
          _
      $region48: #{iwae_forward.1} parent=5 // pred_fallthru
        _
      %p447 = scmp.le.s32.totalorder 1, %s24
      %p448 = scmp.lt.s32.totalorder %s24, 3
      %p449 = pnand %p447, %p448
      %p450 = pneg %p449
      // Predicated region
      $region57: #{iwae_forward.1} parent=5 // pred_check
        _
      $region58: #{iwae_forward.1} parent=5 // pred_check_branch
        %452 = sbr.rel (%p449) target = $region60
      $region59: #{iwae_forward.1} parent=5 // pred_region
        %s453 = ssub.s32 %s24, 1
        // Predicated region
        $region61: #{iwae_forward.1} parent=59 // pred_check
          %p454 = pneg %p66
        $region62: #{iwae_forward.1} parent=59 // pred_check_branch
          %456 = sbr.rel (%p454) target = $region64
        $region63: #{iwae_forward.1} parent=59 // pred_region
          %457 = dma.done [#allocation3], 49152
        $region64: #{iwae_forward.1} parent=59 // pred_fallthru
          _
        // Predicated region
        $region65: #{iwae_forward.1} parent=59 // pred_check
          %p458 = pneg %p87
        $region66: #{iwae_forward.1} parent=59 // pred_check_branch
          %460 = sbr.rel (%p458) target = $region68
        $region67: #{iwae_forward.1} parent=59 // pred_region
          %461 = dma.done [#allocation6], 32
        $region68: #{iwae_forward.1} parent=59 // pred_fallthru
          _
        // Predicated region
        $region69: #{iwae_forward.1} parent=59 // pred_check
          %p462 = pneg %p129
        $region70: #{iwae_forward.1} parent=59 // pred_check_branch
          %464 = sbr.rel (%p462) target = $region72
        $region71: #{iwae_forward.1} parent=59 // pred_region
          %465 = dma.done [#allocation6], 16
        $region72: #{iwae_forward.1} parent=59 // pred_fallthru
          _
        // Predicated region
        $region73: #{iwae_forward.1} parent=59 // pred_check
          %p466 = pneg %p150
        $region74: #{iwae_forward.1} parent=59 // pred_check_branch
          %468 = sbr.rel (%p466) target = $region76
        $region75: #{iwae_forward.1} parent=59 // pred_region
          %469 = dma.done [#allocation9], 128
        $region76: #{iwae_forward.1} parent=59 // pred_fallthru
          _
        // Predicated region
        $region77: #{iwae_forward.1} parent=59 // pred_check
          %p470 = pneg %p171
        $region78: #{iwae_forward.1} parent=59 // pred_check_branch
          %472 = sbr.rel (%p470) target = $region80
        $region79: #{iwae_forward.1} parent=59 // pred_region
          %473 = dma.done [#allocation9], 256
        $region80: #{iwae_forward.1} parent=59 // pred_fallthru
          _
        // Predicated region
        $region81: #{iwae_forward.1} parent=59 // pred_check
          %p474 = pneg %p192
        $region82: #{iwae_forward.1} parent=59 // pred_check_branch
          %476 = sbr.rel (%p474) target = $region84
        $region83: #{iwae_forward.1} parent=59 // pred_region
          %477 = dma.done [#allocation12], 32
        $region84: #{iwae_forward.1} parent=59 // pred_fallthru
          _
        %s478 = sand.u32 %s29, 1
        %s479 = scalar_lea.sflag [#allocation3], %s478
        %s480 = sand.u32 %s205, 1
        %s481 = smul.addr %s480, 1536
        %s482 = scalar_lea.vmem [#allocation13], %s481
        // Predicated region
        $region85: #{iwae_forward.1} parent=59 // pred_check
          %p483 = pneg %p218
        $region86: #{iwae_forward.1} parent=59 // pred_check_branch
          %485 = sbr.rel (%p483) target = $region88
        $region87: #{iwae_forward.1} parent=59 // pred_region
          %486 = dma.done %s479, 24576
        $region88: #{iwae_forward.1} parent=59 // pred_fallthru
          _
        %s487 = sand.u32 %s29, 1
        %s488 = scalar_lea.sflag [#allocation3], %s487
        %s489 = sand.u32 %s231, 1
        %s490 = smul.addr %s489, 12
        %s491 = scalar_lea.vmem [#allocation14], %s490
        // Predicated region
        $region89: #{iwae_forward.1} parent=59 // pred_check
          %p492 = pneg %p244
        $region90: #{iwae_forward.1} parent=59 // pred_check_branch
          %494 = sbr.rel (%p492) target = $region92
        $region91: #{iwae_forward.1} parent=59 // pred_region
          %495 = dma.done %s488, 192
        $region92: #{iwae_forward.1} parent=59 // pred_fallthru
          _
        %p496 = pneg %p45
        %p497 = pneg %p42
        %p498 = pneg %p66
        %p499 = pneg %p63
        %p500 = pneg %p87
        %p501 = pneg %p84
        %p502 = pneg %p108
        %p503 = pneg %p105
        %p504 = pneg %p129
        %p505 = pneg %p126
        %p506 = pneg %p150
        %p507 = pneg %p147
        %p508 = pneg %p171
        %p509 = pneg %p168
        %p510 = pneg %p192
        %p511 = pneg %p189
        %s512 = sand.u32 %s29, 1
        %s513 = scalar_lea.sflag [#allocation3], %s512
        %s514 = sand.u32 %s205, 1
        %s515 = smul.addr %s514, 1536
        %s516 = scalar_lea.vmem [#allocation13], %s515
        %p517 = pneg %p218
        %p518 = pneg %p215
        %s519 = sand.u32 %s29, 1
        %s520 = scalar_lea.sflag [#allocation3], %s519
        %s521 = sand.u32 %s231, 1
        %s522 = smul.addr %s521, 12
        %s523 = scalar_lea.vmem [#allocation14], %s522
        %p524 = pneg %p244
        %p525 = pneg %p241
        %p526 = pneg %p265
        %p527 = pneg %p262
        %p528 = pneg %p286
        %p529 = pneg %p283
        %p530 = pneg %p312
        %p531 = pneg %p309
        %s532 = smul.u32 12, %s29
        %p533 = scmp.lt.s32.totalorder %s532, 23
        %s534 = scalar_select %p533, %s532, 23
        %s535 = smul.addr %s534, 8
        %s536 = scalar_lea.vmem %s12, %s535
        %s537 = smul.u32 12, %s29
        %s538 = smul.u32 12, %s29
        %s539 = smul.u32 12, %s29
        %p540 = scmp.lt.s32.totalorder %s539, 23
        %s541 = scalar_select %p540, %s539, 23
        %s542 = smul.addr %s541, 8
        %s543 = scalar_lea.vmem %s12, %s542
        %s544 = smul.u32 12, %s29
        %v546 = vld [vmem:[%s0] sm:$0xff]
        %v547 = vld [vmem:[%s0 + $0x8] sm:$0xff]
        %v548 = vld [vmem:[%s0 + $0x10] sm:$0xff]
        %v549 = vld [vmem:[%s0 + $0x18] sm:$0xff]
        %v550 = vld [vmem:[%s0 + $0x20] sm:$0xff]
        %v551 = vld [vmem:[%s0 + $0x28] sm:$0xff]
        %v558 = vcombine.high %v546, %v546
        %v560 = vunpack.c.l.s4 1983009808
        %v561 = vunpack.c.0.s8 %v560
        %v562 = vlaneseq
        %v563 = vshrl.u32 %v562, 7
        %v564 = vsub.s32 %v561, %v563
        %v565 = vrot.slane %v546, %v564
        %v567 = vunpack.c.l.s4 1983009808
        %v568 = vunpack.c.0.s8 %v567
        %v569 = vlaneseq
        %v570 = vshrl.u32 %v569, 7
        %v571 = vsub.s32 %v568, %v570
        %v572 = vrot.slane %v558, %v571
        %v573 = vcombine.high %v565, %v565
        %v574 = vcombine.high %v572, %v572
        %v575 = vcombine.high %v547, %v547
        %v577 = vunpack.c.l.s4 1983009808
        %v578 = vunpack.c.0.s8 %v577
        %v579 = vlaneseq
        %v580 = vshrl.u32 %v579, 7
        %v581 = vsub.s32 %v578, %v580
        %v582 = vrot.slane %v547, %v581
        %v584 = vunpack.c.l.s4 1983009808
        %v585 = vunpack.c.0.s8 %v584
        %v586 = vlaneseq
        %v587 = vshrl.u32 %v586, 7
        %v588 = vsub.s32 %v585, %v587
        %v589 = vrot.slane %v575, %v588
        %v590 = vcombine.high %v582, %v582
        %v591 = vcombine.high %v589, %v589
        %v592 = vcombine.high %v548, %v548
        %v594 = vunpack.c.l.s4 1983009808
        %v595 = vunpack.c.0.s8 %v594
        %v596 = vlaneseq
        %v597 = vshrl.u32 %v596, 7
        %v598 = vsub.s32 %v595, %v597
        %v599 = vrot.slane %v548, %v598
        %v601 = vunpack.c.l.s4 1983009808
        %v602 = vunpack.c.0.s8 %v601
        %v603 = vlaneseq
        %v604 = vshrl.u32 %v603, 7
        %v605 = vsub.s32 %v602, %v604
        %v606 = vrot.slane %v592, %v605
        %v607 = vcombine.high %v599, %v599
        %v608 = vcombine.high %v606, %v606
        %v609 = vcombine.high %v549, %v549
        %v611 = vunpack.c.l.s4 1983009808
        %v612 = vunpack.c.0.s8 %v611
        %v613 = vlaneseq
        %v614 = vshrl.u32 %v613, 7
        %v615 = vsub.s32 %v612, %v614
        %v616 = vrot.slane %v549, %v615
        %v618 = vunpack.c.l.s4 1983009808
        %v619 = vunpack.c.0.s8 %v618
        %v620 = vlaneseq
        %v621 = vshrl.u32 %v620, 7
        %v622 = vsub.s32 %v619, %v621
        %v623 = vrot.slane %v609, %v622
        %v624 = vcombine.high %v616, %v616
        %v625 = vcombine.high %v623, %v623
        %v626 = vcombine.high %v550, %v550
        %v628 = vunpack.c.l.s4 1983009808
        %v629 = vunpack.c.0.s8 %v628
        %v630 = vlaneseq
        %v631 = vshrl.u32 %v630, 7
        %v632 = vsub.s32 %v629, %v631
        %v633 = vrot.slane %v550, %v632
        %v635 = vunpack.c.l.s4 1983009808
        %v636 = vunpack.c.0.s8 %v635
        %v637 = vlaneseq
        %v638 = vshrl.u32 %v637, 7
        %v639 = vsub.s32 %v636, %v638
        %v640 = vrot.slane %v626, %v639
        %v641 = vcombine.high %v633, %v633
        %v642 = vcombine.high %v640, %v640
        %v643 = vcombine.high %v551, %v551
        %v645 = vunpack.c.l.s4 1983009808
        %v646 = vunpack.c.0.s8 %v645
        %v647 = vlaneseq
        %v648 = vshrl.u32 %v647, 7
        %v649 = vsub.s32 %v646, %v648
        %v650 = vrot.slane %v551, %v649
        %v652 = vunpack.c.l.s4 1983009808
        %v653 = vunpack.c.0.s8 %v652
        %v654 = vlaneseq
        %v655 = vshrl.u32 %v654, 7
        %v656 = vsub.s32 %v653, %v655
        %v657 = vrot.slane %v643, %v656
        %v658 = vcombine.high %v650, %v650
        %v659 = vcombine.high %v657, %v657
        %v684 = vpack.c.bf16 %v565, %v565
        %v685 = vpack.c.bf16 %v573, %v573
        %v686 = vpack.c.bf16 %v572, %v572
        %v687 = vpack.c.bf16 %v574, %v574
        %v688 = vpack.c.bf16 %v582, %v582
        %v689 = vpack.c.bf16 %v590, %v590
        %v690 = vpack.c.bf16 %v589, %v589
        %v691 = vpack.c.bf16 %v591, %v591
        %v692 = vpack.c.bf16 %v599, %v599
        %v693 = vpack.c.bf16 %v607, %v607
        %v694 = vpack.c.bf16 %v606, %v606
        %v695 = vpack.c.bf16 %v608, %v608
        %v696 = vpack.c.bf16 %v616, %v616
        %v697 = vpack.c.bf16 %v624, %v624
        %v698 = vpack.c.bf16 %v623, %v623
        %v699 = vpack.c.bf16 %v625, %v625
        %v700 = vpack.c.bf16 %v633, %v633
        %v701 = vpack.c.bf16 %v641, %v641
        %v702 = vpack.c.bf16 %v640, %v640
        %v703 = vpack.c.bf16 %v642, %v642
        %v704 = vpack.c.bf16 %v650, %v650
        %v705 = vpack.c.bf16 %v658, %v658
        %v706 = vpack.c.bf16 %v657, %v657
        %v707 = vpack.c.bf16 %v659, %v659
        %v708 = vld [vmem:[#allocation2] sm:$0xff]
        %v709 = vld [vmem:[#allocation2 + $0x8] sm:$0xff]
        %v710 = vld [vmem:[#allocation2 + $0x10] sm:$0xff]
        %v711 = vld [vmem:[#allocation2 + $0x18] sm:$0xff]
        %v712 = vld [vmem:[#allocation2 + $0x20] sm:$0xff]
        %v713 = vld [vmem:[#allocation2 + $0x28] sm:$0xff]
        %v714 = vld [vmem:[#allocation2 + $0x30] sm:$0xff]
        %v715 = vld [vmem:[#allocation2 + $0x38] sm:$0xff]
        %v716 = vld [vmem:[#allocation2 + $0x40] sm:$0xff]
        %v717 = vld [vmem:[#allocation2 + $0x48] sm:$0xff]
        %v718 = vld [vmem:[#allocation2 + $0x50] sm:$0xff]
        %v719 = vld [vmem:[#allocation2 + $0x58] sm:$0xff]
        %v720 = vld [vmem:[#allocation2 + $0x60] sm:$0xff]
        %v721 = vld [vmem:[#allocation2 + $0x68] sm:$0xff]
        %v722 = vld [vmem:[#allocation2 + $0x70] sm:$0xff]
        %v723 = vld [vmem:[#allocation2 + $0x78] sm:$0xff]
        %v724 = vld [vmem:[#allocation2 + $0x80] sm:$0xff]
        %v725 = vld [vmem:[#allocation2 + $0x88] sm:$0xff]
        %v726 = vld [vmem:[#allocation2 + $0x90] sm:$0xff]
        %v727 = vld [vmem:[#allocation2 + $0x98] sm:$0xff]
        %v728 = vld [vmem:[#allocation2 + $0xa0] sm:$0xff]
        %v729 = vld [vmem:[#allocation2 + $0xa8] sm:$0xff]
        %v730 = vld [vmem:[#allocation2 + $0xb0] sm:$0xff]
        %v731 = vld [vmem:[#allocation2 + $0xb8] sm:$0xff]
        %v732 = vld [vmem:[#allocation2 + $0xc0] sm:$0xff]
        %v733 = vld [vmem:[#allocation2 + $0xc8] sm:$0xff]
        %v734 = vld [vmem:[#allocation2 + $0xd0] sm:$0xff]
        %v735 = vld [vmem:[#allocation2 + $0xd8] sm:$0xff]
        %v736 = vld [vmem:[#allocation2 + $0xe0] sm:$0xff]
        %v737 = vld [vmem:[#allocation2 + $0xe8] sm:$0xff]
        %v738 = vld [vmem:[#allocation2 + $0xf0] sm:$0xff]
        %v739 = vld [vmem:[#allocation2 + $0xf8] sm:$0xff]
        %v740 = vld [vmem:[#allocation2 + $0x100] sm:$0xff]
        %v741 = vld [vmem:[#allocation2 + $0x108] sm:$0xff]
        %v742 = vld [vmem:[#allocation2 + $0x110] sm:$0xff]
        %v743 = vld [vmem:[#allocation2 + $0x118] sm:$0xff]
        %v744 = vld [vmem:[#allocation2 + $0x120] sm:$0xff]
        %v745 = vld [vmem:[#allocation2 + $0x128] sm:$0xff]
        %v746 = vld [vmem:[#allocation2 + $0x130] sm:$0xff]
        %v747 = vld [vmem:[#allocation2 + $0x138] sm:$0xff]
        %v748 = vld [vmem:[#allocation2 + $0x140] sm:$0xff]
        %v749 = vld [vmem:[#allocation2 + $0x148] sm:$0xff]
        %v750 = vld [vmem:[#allocation2 + $0x150] sm:$0xff]
        %v751 = vld [vmem:[#allocation2 + $0x158] sm:$0xff]
        %v752 = vld [vmem:[#allocation2 + $0x160] sm:$0xff]
        %v753 = vld [vmem:[#allocation2 + $0x168] sm:$0xff]
        %v754 = vld [vmem:[#allocation2 + $0x170] sm:$0xff]
        %v755 = vld [vmem:[#allocation2 + $0x178] sm:$0xff]
        %v756 = vld [vmem:[#allocation2 + $0x180] sm:$0xff]
        %v757 = vld [vmem:[#allocation2 + $0x188] sm:$0xff]
        %v758 = vld [vmem:[#allocation2 + $0x190] sm:$0xff]
        %v759 = vld [vmem:[#allocation2 + $0x198] sm:$0xff]
        %v760 = vld [vmem:[#allocation2 + $0x1a0] sm:$0xff]
        %v761 = vld [vmem:[#allocation2 + $0x1a8] sm:$0xff]
        %v762 = vld [vmem:[#allocation2 + $0x1b0] sm:$0xff]
        %v763 = vld [vmem:[#allocation2 + $0x1b8] sm:$0xff]
        %v764 = vld [vmem:[#allocation2 + $0x1c0] sm:$0xff]
        %v765 = vld [vmem:[#allocation2 + $0x1c8] sm:$0xff]
        %v766 = vld [vmem:[#allocation2 + $0x1d0] sm:$0xff]
        %v767 = vld [vmem:[#allocation2 + $0x1d8] sm:$0xff]
        %v768 = vld [vmem:[#allocation2 + $0x1e0] sm:$0xff]
        %v769 = vld [vmem:[#allocation2 + $0x1e8] sm:$0xff]
        %v770 = vld [vmem:[#allocation2 + $0x1f0] sm:$0xff]
        %v771 = vld [vmem:[#allocation2 + $0x1f8] sm:$0xff]
        %v772 = vld [vmem:[#allocation2 + $0x200] sm:$0xff]
        %v773 = vld [vmem:[#allocation2 + $0x208] sm:$0xff]
        %v774 = vld [vmem:[#allocation2 + $0x210] sm:$0xff]
        %v775 = vld [vmem:[#allocation2 + $0x218] sm:$0xff]
        %v776 = vld [vmem:[#allocation2 + $0x220] sm:$0xff]
        %v777 = vld [vmem:[#allocation2 + $0x228] sm:$0xff]
        %v778 = vld [vmem:[#allocation2 + $0x230] sm:$0xff]
        %v779 = vld [vmem:[#allocation2 + $0x238] sm:$0xff]
        %v780 = vld [vmem:[#allocation2 + $0x240] sm:$0xff]
        %v781 = vld [vmem:[#allocation2 + $0x248] sm:$0xff]
        %v782 = vld [vmem:[#allocation2 + $0x250] sm:$0xff]
        %v783 = vld [vmem:[#allocation2 + $0x258] sm:$0xff]
        %v784 = vld [vmem:[#allocation2 + $0x260] sm:$0xff]
        %v785 = vld [vmem:[#allocation2 + $0x268] sm:$0xff]
        %v786 = vld [vmem:[#allocation2 + $0x270] sm:$0xff]
        %v787 = vld [vmem:[#allocation2 + $0x278] sm:$0xff]
        %v788 = vld [vmem:[#allocation2 + $0x280] sm:$0xff]
        %v789 = vld [vmem:[#allocation2 + $0x288] sm:$0xff]
        %v790 = vld [vmem:[#allocation2 + $0x290] sm:$0xff]
        %v791 = vld [vmem:[#allocation2 + $0x298] sm:$0xff]
        %v792 = vld [vmem:[#allocation2 + $0x2a0] sm:$0xff]
        %v793 = vld [vmem:[#allocation2 + $0x2a8] sm:$0xff]
        %v794 = vld [vmem:[#allocation2 + $0x2b0] sm:$0xff]
        %v795 = vld [vmem:[#allocation2 + $0x2b8] sm:$0xff]
        %v796 = vld [vmem:[#allocation2 + $0x2c0] sm:$0xff]
        %v797 = vld [vmem:[#allocation2 + $0x2c8] sm:$0xff]
        %v798 = vld [vmem:[#allocation2 + $0x2d0] sm:$0xff]
        %v799 = vld [vmem:[#allocation2 + $0x2d8] sm:$0xff]
        %v800 = vld [vmem:[#allocation2 + $0x2e0] sm:$0xff]
        %v801 = vld [vmem:[#allocation2 + $0x2e8] sm:$0xff]
        %v802 = vld [vmem:[#allocation2 + $0x2f0] sm:$0xff]
        %v803 = vld [vmem:[#allocation2 + $0x2f8] sm:$0xff]
        %v804 = vld [vmem:[#allocation2 + $0x300] sm:$0xff]
        %v805 = vld [vmem:[#allocation2 + $0x308] sm:$0xff]
        %v806 = vld [vmem:[#allocation2 + $0x310] sm:$0xff]
        %v807 = vld [vmem:[#allocation2 + $0x318] sm:$0xff]
        %v808 = vld [vmem:[#allocation2 + $0x320] sm:$0xff]
        %v809 = vld [vmem:[#allocation2 + $0x328] sm:$0xff]
        %v810 = vld [vmem:[#allocation2 + $0x330] sm:$0xff]
        %v811 = vld [vmem:[#allocation2 + $0x338] sm:$0xff]
        %v812 = vld [vmem:[#allocation2 + $0x340] sm:$0xff]
        %v813 = vld [vmem:[#allocation2 + $0x348] sm:$0xff]
        %v814 = vld [vmem:[#allocation2 + $0x350] sm:$0xff]
        %v815 = vld [vmem:[#allocation2 + $0x358] sm:$0xff]
        %v816 = vld [vmem:[#allocation2 + $0x360] sm:$0xff]
        %v817 = vld [vmem:[#allocation2 + $0x368] sm:$0xff]
        %v818 = vld [vmem:[#allocation2 + $0x370] sm:$0xff]
        %v819 = vld [vmem:[#allocation2 + $0x378] sm:$0xff]
        %v820 = vld [vmem:[#allocation2 + $0x380] sm:$0xff]
        %v821 = vld [vmem:[#allocation2 + $0x388] sm:$0xff]
        %v822 = vld [vmem:[#allocation2 + $0x390] sm:$0xff]
        %v823 = vld [vmem:[#allocation2 + $0x398] sm:$0xff]
        %v824 = vld [vmem:[#allocation2 + $0x3a0] sm:$0xff]
        %v825 = vld [vmem:[#allocation2 + $0x3a8] sm:$0xff]
        %v826 = vld [vmem:[#allocation2 + $0x3b0] sm:$0xff]
        %v827 = vld [vmem:[#allocation2 + $0x3b8] sm:$0xff]
        %v828 = vld [vmem:[#allocation2 + $0x3c0] sm:$0xff]
        %v829 = vld [vmem:[#allocation2 + $0x3c8] sm:$0xff]
        %v830 = vld [vmem:[#allocation2 + $0x3d0] sm:$0xff]
        %v831 = vld [vmem:[#allocation2 + $0x3d8] sm:$0xff]
        %v832 = vld [vmem:[#allocation2 + $0x3e0] sm:$0xff]
        %v833 = vld [vmem:[#allocation2 + $0x3e8] sm:$0xff]
        %v834 = vld [vmem:[#allocation2 + $0x3f0] sm:$0xff]
        %v835 = vld [vmem:[#allocation2 + $0x3f8] sm:$0xff]
        %v836 = vld [vmem:[#allocation2 + $0x400] sm:$0xff]
        %v837 = vld [vmem:[#allocation2 + $0x408] sm:$0xff]
        %v838 = vld [vmem:[#allocation2 + $0x410] sm:$0xff]
        %v839 = vld [vmem:[#allocation2 + $0x418] sm:$0xff]
        %v840 = vld [vmem:[#allocation2 + $0x420] sm:$0xff]
        %v841 = vld [vmem:[#allocation2 + $0x428] sm:$0xff]
        %v842 = vld [vmem:[#allocation2 + $0x430] sm:$0xff]
        %v843 = vld [vmem:[#allocation2 + $0x438] sm:$0xff]
        %v844 = vld [vmem:[#allocation2 + $0x440] sm:$0xff]
        %v845 = vld [vmem:[#allocation2 + $0x448] sm:$0xff]
        %v846 = vld [vmem:[#allocation2 + $0x450] sm:$0xff]
        %v847 = vld [vmem:[#allocation2 + $0x458] sm:$0xff]
        %v848 = vld [vmem:[#allocation2 + $0x460] sm:$0xff]
        %v849 = vld [vmem:[#allocation2 + $0x468] sm:$0xff]
        %v850 = vld [vmem:[#allocation2 + $0x470] sm:$0xff]
        %v851 = vld [vmem:[#allocation2 + $0x478] sm:$0xff]
        %v852 = vld [vmem:[#allocation2 + $0x480] sm:$0xff]
        %v853 = vld [vmem:[#allocation2 + $0x488] sm:$0xff]
        %v854 = vld [vmem:[#allocation2 + $0x490] sm:$0xff]
        %v855 = vld [vmem:[#allocation2 + $0x498] sm:$0xff]
        %v856 = vld [vmem:[#allocation2 + $0x4a0] sm:$0xff]
        %v857 = vld [vmem:[#allocation2 + $0x4a8] sm:$0xff]
        %v858 = vld [vmem:[#allocation2 + $0x4b0] sm:$0xff]
        %v859 = vld [vmem:[#allocation2 + $0x4b8] sm:$0xff]
        %v860 = vld [vmem:[#allocation2 + $0x4c0] sm:$0xff]
        %v861 = vld [vmem:[#allocation2 + $0x4c8] sm:$0xff]
        %v862 = vld [vmem:[#allocation2 + $0x4d0] sm:$0xff]
        %v863 = vld [vmem:[#allocation2 + $0x4d8] sm:$0xff]
        %v864 = vld [vmem:[#allocation2 + $0x4e0] sm:$0xff]
        %v865 = vld [vmem:[#allocation2 + $0x4e8] sm:$0xff]
        %v866 = vld [vmem:[#allocation2 + $0x4f0] sm:$0xff]
        %v867 = vld [vmem:[#allocation2 + $0x4f8] sm:$0xff]
        %v868 = vld [vmem:[#allocation2 + $0x500] sm:$0xff]
        %v869 = vld [vmem:[#allocation2 + $0x508] sm:$0xff]
        %v870 = vld [vmem:[#allocation2 + $0x510] sm:$0xff]
        %v871 = vld [vmem:[#allocation2 + $0x518] sm:$0xff]
        %v872 = vld [vmem:[#allocation2 + $0x520] sm:$0xff]
        %v873 = vld [vmem:[#allocation2 + $0x528] sm:$0xff]
        %v874 = vld [vmem:[#allocation2 + $0x530] sm:$0xff]
        %v875 = vld [vmem:[#allocation2 + $0x538] sm:$0xff]
        %v876 = vld [vmem:[#allocation2 + $0x540] sm:$0xff]
        %v877 = vld [vmem:[#allocation2 + $0x548] sm:$0xff]
        %v878 = vld [vmem:[#allocation2 + $0x550] sm:$0xff]
        %v879 = vld [vmem:[#allocation2 + $0x558] sm:$0xff]
        %v880 = vld [vmem:[#allocation2 + $0x560] sm:$0xff]
        %v881 = vld [vmem:[#allocation2 + $0x568] sm:$0xff]
        %v882 = vld [vmem:[#allocation2 + $0x570] sm:$0xff]
        %v883 = vld [vmem:[#allocation2 + $0x578] sm:$0xff]
        %v884 = vld [vmem:[#allocation2 + $0x580] sm:$0xff]
        %v885 = vld [vmem:[#allocation2 + $0x588] sm:$0xff]
        %v886 = vld [vmem:[#allocation2 + $0x590] sm:$0xff]
        %v887 = vld [vmem:[#allocation2 + $0x598] sm:$0xff]
        %v888 = vld [vmem:[#allocation2 + $0x5a0] sm:$0xff]
        %v889 = vld [vmem:[#allocation2 + $0x5a8] sm:$0xff]
        %v890 = vld [vmem:[#allocation2 + $0x5b0] sm:$0xff]
        %v891 = vld [vmem:[#allocation2 + $0x5b8] sm:$0xff]
        %v892 = vld [vmem:[#allocation2 + $0x5c0] sm:$0xff]
        %v893 = vld [vmem:[#allocation2 + $0x5c8] sm:$0xff]
        %v894 = vld [vmem:[#allocation2 + $0x5d0] sm:$0xff]
        %v895 = vld [vmem:[#allocation2 + $0x5d8] sm:$0xff]
        %v896 = vld [vmem:[#allocation2 + $0x5e0] sm:$0xff]
        %v897 = vld [vmem:[#allocation2 + $0x5e8] sm:$0xff]
        %v898 = vld [vmem:[#allocation2 + $0x5f0] sm:$0xff]
        %v899 = vld [vmem:[#allocation2 + $0x5f8] sm:$0xff]
        %v900 = vld [vmem:[#allocation2 + $0x600] sm:$0xff]
        %v901 = vld [vmem:[#allocation2 + $0x608] sm:$0xff]
        %v902 = vld [vmem:[#allocation2 + $0x610] sm:$0xff]
        %v903 = vld [vmem:[#allocation2 + $0x618] sm:$0xff]
        %v904 = vld [vmem:[#allocation2 + $0x620] sm:$0xff]
        %v905 = vld [vmem:[#allocation2 + $0x628] sm:$0xff]
        %v906 = vld [vmem:[#allocation2 + $0x630] sm:$0xff]
        %v907 = vld [vmem:[#allocation2 + $0x638] sm:$0xff]
        %v908 = vld [vmem:[#allocation2 + $0x640] sm:$0xff]
        %v909 = vld [vmem:[#allocation2 + $0x648] sm:$0xff]
        %v910 = vld [vmem:[#allocation2 + $0x650] sm:$0xff]
        %v911 = vld [vmem:[#allocation2 + $0x658] sm:$0xff]
        %v912 = vld [vmem:[#allocation2 + $0x660] sm:$0xff]
        %v913 = vld [vmem:[#allocation2 + $0x668] sm:$0xff]
        %v914 = vld [vmem:[#allocation2 + $0x670] sm:$0xff]
        %v915 = vld [vmem:[#allocation2 + $0x678] sm:$0xff]
        %v916 = vld [vmem:[#allocation2 + $0x680] sm:$0xff]
        %v917 = vld [vmem:[#allocation2 + $0x688] sm:$0xff]
        %v918 = vld [vmem:[#allocation2 + $0x690] sm:$0xff]
        %v919 = vld [vmem:[#allocation2 + $0x698] sm:$0xff]
        %v920 = vld [vmem:[#allocation2 + $0x6a0] sm:$0xff]
        %v921 = vld [vmem:[#allocation2 + $0x6a8] sm:$0xff]
        %v922 = vld [vmem:[#allocation2 + $0x6b0] sm:$0xff]
        %v923 = vld [vmem:[#allocation2 + $0x6b8] sm:$0xff]
        %v924 = vld [vmem:[#allocation2 + $0x6c0] sm:$0xff]
        %v925 = vld [vmem:[#allocation2 + $0x6c8] sm:$0xff]
        %v926 = vld [vmem:[#allocation2 + $0x6d0] sm:$0xff]
        %v927 = vld [vmem:[#allocation2 + $0x6d8] sm:$0xff]
        %v928 = vld [vmem:[#allocation2 + $0x6e0] sm:$0xff]
        %v929 = vld [vmem:[#allocation2 + $0x6e8] sm:$0xff]
        %v930 = vld [vmem:[#allocation2 + $0x6f0] sm:$0xff]
        %v931 = vld [vmem:[#allocation2 + $0x6f8] sm:$0xff]
        %v932 = vld [vmem:[#allocation2 + $0x700] sm:$0xff]
        %v933 = vld [vmem:[#allocation2 + $0x708] sm:$0xff]
        %v934 = vld [vmem:[#allocation2 + $0x710] sm:$0xff]
        %v935 = vld [vmem:[#allocation2 + $0x718] sm:$0xff]
        %v936 = vld [vmem:[#allocation2 + $0x720] sm:$0xff]
        %v937 = vld [vmem:[#allocation2 + $0x728] sm:$0xff]
        %v938 = vld [vmem:[#allocation2 + $0x730] sm:$0xff]
        %v939 = vld [vmem:[#allocation2 + $0x738] sm:$0xff]
        %v940 = vld [vmem:[#allocation2 + $0x740] sm:$0xff]
        %v941 = vld [vmem:[#allocation2 + $0x748] sm:$0xff]
        %v942 = vld [vmem:[#allocation2 + $0x750] sm:$0xff]
        %v943 = vld [vmem:[#allocation2 + $0x758] sm:$0xff]
        %v944 = vld [vmem:[#allocation2 + $0x760] sm:$0xff]
        %v945 = vld [vmem:[#allocation2 + $0x768] sm:$0xff]
        %v946 = vld [vmem:[#allocation2 + $0x770] sm:$0xff]
        %v947 = vld [vmem:[#allocation2 + $0x778] sm:$0xff]
        %v948 = vld [vmem:[#allocation2 + $0x780] sm:$0xff]
        %v949 = vld [vmem:[#allocation2 + $0x788] sm:$0xff]
        %v950 = vld [vmem:[#allocation2 + $0x790] sm:$0xff]
        %v951 = vld [vmem:[#allocation2 + $0x798] sm:$0xff]
        %v952 = vld [vmem:[#allocation2 + $0x7a0] sm:$0xff]
        %v953 = vld [vmem:[#allocation2 + $0x7a8] sm:$0xff]
        %v954 = vld [vmem:[#allocation2 + $0x7b0] sm:$0xff]
        %v955 = vld [vmem:[#allocation2 + $0x7b8] sm:$0xff]
        %v956 = vld [vmem:[#allocation2 + $0x7c0] sm:$0xff]
        %v957 = vld [vmem:[#allocation2 + $0x7c8] sm:$0xff]
        %v958 = vld [vmem:[#allocation2 + $0x7d0] sm:$0xff]
        %v959 = vld [vmem:[#allocation2 + $0x7d8] sm:$0xff]
        %v960 = vld [vmem:[#allocation2 + $0x7e0] sm:$0xff]
        %v961 = vld [vmem:[#allocation2 + $0x7e8] sm:$0xff]
        %v962 = vld [vmem:[#allocation2 + $0x7f0] sm:$0xff]
        %v963 = vld [vmem:[#allocation2 + $0x7f8] sm:$0xff]
        %v964 = vld [vmem:[#allocation2 + $0x800] sm:$0xff]
        %v965 = vld [vmem:[#allocation2 + $0x808] sm:$0xff]
        %v966 = vld [vmem:[#allocation2 + $0x810] sm:$0xff]
        %v967 = vld [vmem:[#allocation2 + $0x818] sm:$0xff]
        %v968 = vld [vmem:[#allocation2 + $0x820] sm:$0xff]
        %v969 = vld [vmem:[#allocation2 + $0x828] sm:$0xff]
        %v970 = vld [vmem:[#allocation2 + $0x830] sm:$0xff]
        %v971 = vld [vmem:[#allocation2 + $0x838] sm:$0xff]
        %v972 = vld [vmem:[#allocation2 + $0x840] sm:$0xff]
        %v973 = vld [vmem:[#allocation2 + $0x848] sm:$0xff]
        %v974 = vld [vmem:[#allocation2 + $0x850] sm:$0xff]
        %v975 = vld [vmem:[#allocation2 + $0x858] sm:$0xff]
        %v976 = vld [vmem:[#allocation2 + $0x860] sm:$0xff]
        %v977 = vld [vmem:[#allocation2 + $0x868] sm:$0xff]
        %v978 = vld [vmem:[#allocation2 + $0x870] sm:$0xff]
        %v979 = vld [vmem:[#allocation2 + $0x878] sm:$0xff]
        %v980 = vld [vmem:[#allocation2 + $0x880] sm:$0xff]
        %v981 = vld [vmem:[#allocation2 + $0x888] sm:$0xff]
        %v982 = vld [vmem:[#allocation2 + $0x890] sm:$0xff]
        %v983 = vld [vmem:[#allocation2 + $0x898] sm:$0xff]
        %v984 = vld [vmem:[#allocation2 + $0x8a0] sm:$0xff]
        %v985 = vld [vmem:[#allocation2 + $0x8a8] sm:$0xff]
        %v986 = vld [vmem:[#allocation2 + $0x8b0] sm:$0xff]
        %v987 = vld [vmem:[#allocation2 + $0x8b8] sm:$0xff]
        %v988 = vld [vmem:[#allocation2 + $0x8c0] sm:$0xff]
        %v989 = vld [vmem:[#allocation2 + $0x8c8] sm:$0xff]
        %v990 = vld [vmem:[#allocation2 + $0x8d0] sm:$0xff]
        %v991 = vld [vmem:[#allocation2 + $0x8d8] sm:$0xff]
        %v992 = vld [vmem:[#allocation2 + $0x8e0] sm:$0xff]
        %v993 = vld [vmem:[#allocation2 + $0x8e8] sm:$0xff]
        %v994 = vld [vmem:[#allocation2 + $0x8f0] sm:$0xff]
        %v995 = vld [vmem:[#allocation2 + $0x8f8] sm:$0xff]
        %v996 = vld [vmem:[#allocation2 + $0x900] sm:$0xff]
        %v997 = vld [vmem:[#allocation2 + $0x908] sm:$0xff]
        %v998 = vld [vmem:[#allocation2 + $0x910] sm:$0xff]
        %v999 = vld [vmem:[#allocation2 + $0x918] sm:$0xff]
        %v1000 = vld [vmem:[#allocation2 + $0x920] sm:$0xff]
        %v1001 = vld [vmem:[#allocation2 + $0x928] sm:$0xff]
        %v1002 = vld [vmem:[#allocation2 + $0x930] sm:$0xff]
        %v1003 = vld [vmem:[#allocation2 + $0x938] sm:$0xff]
        %v1004 = vld [vmem:[#allocation2 + $0x940] sm:$0xff]
        %v1005 = vld [vmem:[#allocation2 + $0x948] sm:$0xff]
        %v1006 = vld [vmem:[#allocation2 + $0x950] sm:$0xff]
        %v1007 = vld [vmem:[#allocation2 + $0x958] sm:$0xff]
        %v1008 = vld [vmem:[#allocation2 + $0x960] sm:$0xff]
        %v1009 = vld [vmem:[#allocation2 + $0x968] sm:$0xff]
        %v1010 = vld [vmem:[#allocation2 + $0x970] sm:$0xff]
        %v1011 = vld [vmem:[#allocation2 + $0x978] sm:$0xff]
        %v1012 = vld [vmem:[#allocation2 + $0x980] sm:$0xff]
        %v1013 = vld [vmem:[#allocation2 + $0x988] sm:$0xff]
        %v1014 = vld [vmem:[#allocation2 + $0x990] sm:$0xff]
        %v1015 = vld [vmem:[#allocation2 + $0x998] sm:$0xff]
        %v1016 = vld [vmem:[#allocation2 + $0x9a0] sm:$0xff]
        %v1017 = vld [vmem:[#allocation2 + $0x9a8] sm:$0xff]
        %v1018 = vld [vmem:[#allocation2 + $0x9b0] sm:$0xff]
        %v1019 = vld [vmem:[#allocation2 + $0x9b8] sm:$0xff]
        %v1020 = vld [vmem:[#allocation2 + $0x9c0] sm:$0xff]
        %v1021 = vld [vmem:[#allocation2 + $0x9c8] sm:$0xff]
        %v1022 = vld [vmem:[#allocation2 + $0x9d0] sm:$0xff]
        %v1023 = vld [vmem:[#allocation2 + $0x9d8] sm:$0xff]
        %v1024 = vld [vmem:[#allocation2 + $0x9e0] sm:$0xff]
        %v1025 = vld [vmem:[#allocation2 + $0x9e8] sm:$0xff]
        %v1026 = vld [vmem:[#allocation2 + $0x9f0] sm:$0xff]
        %v1027 = vld [vmem:[#allocation2 + $0x9f8] sm:$0xff]
        %v1028 = vld [vmem:[#allocation2 + $0xa00] sm:$0xff]
        %v1029 = vld [vmem:[#allocation2 + $0xa08] sm:$0xff]
        %v1030 = vld [vmem:[#allocation2 + $0xa10] sm:$0xff]
        %v1031 = vld [vmem:[#allocation2 + $0xa18] sm:$0xff]
        %v1032 = vld [vmem:[#allocation2 + $0xa20] sm:$0xff]
        %v1033 = vld [vmem:[#allocation2 + $0xa28] sm:$0xff]
        %v1034 = vld [vmem:[#allocation2 + $0xa30] sm:$0xff]
        %v1035 = vld [vmem:[#allocation2 + $0xa38] sm:$0xff]
        %v1036 = vld [vmem:[#allocation2 + $0xa40] sm:$0xff]
        %v1037 = vld [vmem:[#allocation2 + $0xa48] sm:$0xff]
        %v1038 = vld [vmem:[#allocation2 + $0xa50] sm:$0xff]
        %v1039 = vld [vmem:[#allocation2 + $0xa58] sm:$0xff]
        %v1040 = vld [vmem:[#allocation2 + $0xa60] sm:$0xff]
        %v1041 = vld [vmem:[#allocation2 + $0xa68] sm:$0xff]
        %v1042 = vld [vmem:[#allocation2 + $0xa70] sm:$0xff]
        %v1043 = vld [vmem:[#allocation2 + $0xa78] sm:$0xff]
        %v1044 = vld [vmem:[#allocation2 + $0xa80] sm:$0xff]
        %v1045 = vld [vmem:[#allocation2 + $0xa88] sm:$0xff]
        %v1046 = vld [vmem:[#allocation2 + $0xa90] sm:$0xff]
        %v1047 = vld [vmem:[#allocation2 + $0xa98] sm:$0xff]
        %v1048 = vld [vmem:[#allocation2 + $0xaa0] sm:$0xff]
        %v1049 = vld [vmem:[#allocation2 + $0xaa8] sm:$0xff]
        %v1050 = vld [vmem:[#allocation2 + $0xab0] sm:$0xff]
        %v1051 = vld [vmem:[#allocation2 + $0xab8] sm:$0xff]
        %v1052 = vld [vmem:[#allocation2 + $0xac0] sm:$0xff]
        %v1053 = vld [vmem:[#allocation2 + $0xac8] sm:$0xff]
        %v1054 = vld [vmem:[#allocation2 + $0xad0] sm:$0xff]
        %v1055 = vld [vmem:[#allocation2 + $0xad8] sm:$0xff]
        %v1056 = vld [vmem:[#allocation2 + $0xae0] sm:$0xff]
        %v1057 = vld [vmem:[#allocation2 + $0xae8] sm:$0xff]
        %v1058 = vld [vmem:[#allocation2 + $0xaf0] sm:$0xff]
        %v1059 = vld [vmem:[#allocation2 + $0xaf8] sm:$0xff]
        %v1060 = vld [vmem:[#allocation2 + $0xb00] sm:$0xff]
        %v1061 = vld [vmem:[#allocation2 + $0xb08] sm:$0xff]
        %v1062 = vld [vmem:[#allocation2 + $0xb10] sm:$0xff]
        %v1063 = vld [vmem:[#allocation2 + $0xb18] sm:$0xff]
        %v1064 = vld [vmem:[#allocation2 + $0xb20] sm:$0xff]
        %v1065 = vld [vmem:[#allocation2 + $0xb28] sm:$0xff]
        %v1066 = vld [vmem:[#allocation2 + $0xb30] sm:$0xff]
        %v1067 = vld [vmem:[#allocation2 + $0xb38] sm:$0xff]
        %v1068 = vld [vmem:[#allocation2 + $0xb40] sm:$0xff]
        %v1069 = vld [vmem:[#allocation2 + $0xb48] sm:$0xff]
        %v1070 = vld [vmem:[#allocation2 + $0xb50] sm:$0xff]
        %v1071 = vld [vmem:[#allocation2 + $0xb58] sm:$0xff]
        %v1072 = vld [vmem:[#allocation2 + $0xb60] sm:$0xff]
        %v1073 = vld [vmem:[#allocation2 + $0xb68] sm:$0xff]
        %v1074 = vld [vmem:[#allocation2 + $0xb70] sm:$0xff]
        %v1075 = vld [vmem:[#allocation2 + $0xb78] sm:$0xff]
        %v1076 = vld [vmem:[#allocation2 + $0xb80] sm:$0xff]
        %v1077 = vld [vmem:[#allocation2 + $0xb88] sm:$0xff]
        %v1078 = vld [vmem:[#allocation2 + $0xb90] sm:$0xff]
        %v1079 = vld [vmem:[#allocation2 + $0xb98] sm:$0xff]
        %v1080 = vld [vmem:[#allocation2 + $0xba0] sm:$0xff]
        %v1081 = vld [vmem:[#allocation2 + $0xba8] sm:$0xff]
        %v1082 = vld [vmem:[#allocation2 + $0xbb0] sm:$0xff]
        %v1083 = vld [vmem:[#allocation2 + $0xbb8] sm:$0xff]
        %v1084 = vld [vmem:[#allocation2 + $0xbc0] sm:$0xff]
        %v1085 = vld [vmem:[#allocation2 + $0xbc8] sm:$0xff]
        %v1086 = vld [vmem:[#allocation2 + $0xbd0] sm:$0xff]
        %v1087 = vld [vmem:[#allocation2 + $0xbd8] sm:$0xff]
        %v1088 = vld [vmem:[#allocation2 + $0xbe0] sm:$0xff]
        %v1089 = vld [vmem:[#allocation2 + $0xbe8] sm:$0xff]
        %v1090 = vld [vmem:[#allocation2 + $0xbf0] sm:$0xff]
        %v1091 = vld [vmem:[#allocation2 + $0xbf8] sm:$0xff]
        %v1092 = vld [vmem:[#allocation5] sm:$0x3]
        %v1094 = vlaneseq
        %v1095 = vshrl.u32 %v1094, 7
        %v1096 = vsub.s32 0, %v1095
        %v1097 = vrot.slane %v1092, %v1096
        %v1098 = vlaneseq
        %v1099 = vshrl.u32 %v1098, 7
        %v1100 = vsub.s32 1, %v1099
        %v1101 = vrot.slane %v1092, %v1100
        %v1488 = vunpack.c.l.b16 %v708
        %v1489 = vunpack.c.h.b16 %v708
        %v1490 = vunpack.c.l.b16 %v709
        %v1491 = vunpack.c.h.b16 %v709
        %v1492 = vunpack.c.l.b16 %v710
        %v1493 = vunpack.c.h.b16 %v710
        %v1494 = vunpack.c.l.b16 %v711
        %v1495 = vunpack.c.h.b16 %v711
        %v1496 = vunpack.c.l.b16 %v712
        %v1497 = vunpack.c.h.b16 %v712
        %v1498 = vunpack.c.l.b16 %v713
        %v1499 = vunpack.c.h.b16 %v713
        %v1500 = vunpack.c.l.b16 %v714
        %v1501 = vunpack.c.h.b16 %v714
        %v1502 = vunpack.c.l.b16 %v715
        %v1503 = vunpack.c.h.b16 %v715
        %v1504 = vunpack.c.l.b16 %v716
        %v1505 = vunpack.c.h.b16 %v716
        %v1506 = vunpack.c.l.b16 %v717
        %v1507 = vunpack.c.h.b16 %v717
        %v1508 = vunpack.c.l.b16 %v718
        %v1509 = vunpack.c.h.b16 %v718
        %v1510 = vunpack.c.l.b16 %v719
        %v1511 = vunpack.c.h.b16 %v719
        %v1512 = vunpack.c.l.b16 %v720
        %v1513 = vunpack.c.h.b16 %v720
        %v1514 = vunpack.c.l.b16 %v721
        %v1515 = vunpack.c.h.b16 %v721
        %v1516 = vunpack.c.l.b16 %v722
        %v1517 = vunpack.c.h.b16 %v722
        %v1518 = vunpack.c.l.b16 %v723
        %v1519 = vunpack.c.h.b16 %v723
        %v1520 = vunpack.c.l.b16 %v724
        %v1521 = vunpack.c.h.b16 %v724
        %v1522 = vunpack.c.l.b16 %v725
        %v1523 = vunpack.c.h.b16 %v725
        %v1524 = vunpack.c.l.b16 %v726
        %v1525 = vunpack.c.h.b16 %v726
        %v1526 = vunpack.c.l.b16 %v727
        %v1527 = vunpack.c.h.b16 %v727
        %v1528 = vunpack.c.l.b16 %v728
        %v1529 = vunpack.c.h.b16 %v728
        %v1530 = vunpack.c.l.b16 %v729
        %v1531 = vunpack.c.h.b16 %v729
        %v1532 = vunpack.c.l.b16 %v730
        %v1533 = vunpack.c.h.b16 %v730
        %v1534 = vunpack.c.l.b16 %v731
        %v1535 = vunpack.c.h.b16 %v731
        %v1536 = vunpack.c.l.b16 %v732
        %v1537 = vunpack.c.h.b16 %v732
        %v1538 = vunpack.c.l.b16 %v733
        %v1539 = vunpack.c.h.b16 %v733
        %v1540 = vunpack.c.l.b16 %v734
        %v1541 = vunpack.c.h.b16 %v734
        %v1542 = vunpack.c.l.b16 %v735
        %v1543 = vunpack.c.h.b16 %v735
        %v1544 = vunpack.c.l.b16 %v736
        %v1545 = vunpack.c.h.b16 %v736
        %v1546 = vunpack.c.l.b16 %v737
        %v1547 = vunpack.c.h.b16 %v737
        %v1548 = vunpack.c.l.b16 %v738
        %v1549 = vunpack.c.h.b16 %v738
        %v1550 = vunpack.c.l.b16 %v739
        %v1551 = vunpack.c.h.b16 %v739
        %v1552 = vunpack.c.l.b16 %v740
        %v1553 = vunpack.c.h.b16 %v740
        %v1554 = vunpack.c.l.b16 %v741
        %v1555 = vunpack.c.h.b16 %v741
        %v1556 = vunpack.c.l.b16 %v742
        %v1557 = vunpack.c.h.b16 %v742
        %v1558 = vunpack.c.l.b16 %v743
        %v1559 = vunpack.c.h.b16 %v743
        %v1560 = vunpack.c.l.b16 %v744
        %v1561 = vunpack.c.h.b16 %v744
        %v1562 = vunpack.c.l.b16 %v745
        %v1563 = vunpack.c.h.b16 %v745
        %v1564 = vunpack.c.l.b16 %v746
        %v1565 = vunpack.c.h.b16 %v746
        %v1566 = vunpack.c.l.b16 %v747
        %v1567 = vunpack.c.h.b16 %v747
        %v1568 = vunpack.c.l.b16 %v748
        %v1569 = vunpack.c.h.b16 %v748
        %v1570 = vunpack.c.l.b16 %v749
        %v1571 = vunpack.c.h.b16 %v749
        %v1572 = vunpack.c.l.b16 %v750
        %v1573 = vunpack.c.h.b16 %v750
        %v1574 = vunpack.c.l.b16 %v751
        %v1575 = vunpack.c.h.b16 %v751
        %v1576 = vunpack.c.l.b16 %v752
        %v1577 = vunpack.c.h.b16 %v752
        %v1578 = vunpack.c.l.b16 %v753
        %v1579 = vunpack.c.h.b16 %v753
        %v1580 = vunpack.c.l.b16 %v754
        %v1581 = vunpack.c.h.b16 %v754
        %v1582 = vunpack.c.l.b16 %v755
        %v1583 = vunpack.c.h.b16 %v755
        %v1584 = vunpack.c.l.b16 %v756
        %v1585 = vunpack.c.h.b16 %v756
        %v1586 = vunpack.c.l.b16 %v757
        %v1587 = vunpack.c.h.b16 %v757
        %v1588 = vunpack.c.l.b16 %v758
        %v1589 = vunpack.c.h.b16 %v758
        %v1590 = vunpack.c.l.b16 %v759
        %v1591 = vunpack.c.h.b16 %v759
        %v1592 = vunpack.c.l.b16 %v760
        %v1593 = vunpack.c.h.b16 %v760
        %v1594 = vunpack.c.l.b16 %v761
        %v1595 = vunpack.c.h.b16 %v761
        %v1596 = vunpack.c.l.b16 %v762
        %v1597 = vunpack.c.h.b16 %v762
        %v1598 = vunpack.c.l.b16 %v763
        %v1599 = vunpack.c.h.b16 %v763
        %v1600 = vunpack.c.l.b16 %v764
        %v1601 = vunpack.c.h.b16 %v764
        %v1602 = vunpack.c.l.b16 %v765
        %v1603 = vunpack.c.h.b16 %v765
        %v1604 = vunpack.c.l.b16 %v766
        %v1605 = vunpack.c.h.b16 %v766
        %v1606 = vunpack.c.l.b16 %v767
        %v1607 = vunpack.c.h.b16 %v767
        %v1608 = vunpack.c.l.b16 %v768
        %v1609 = vunpack.c.h.b16 %v768
        %v1610 = vunpack.c.l.b16 %v769
        %v1611 = vunpack.c.h.b16 %v769
        %v1612 = vunpack.c.l.b16 %v770
        %v1613 = vunpack.c.h.b16 %v770
        %v1614 = vunpack.c.l.b16 %v771
        %v1615 = vunpack.c.h.b16 %v771
        %v1616 = vunpack.c.l.b16 %v772
        %v1617 = vunpack.c.h.b16 %v772
        %v1618 = vunpack.c.l.b16 %v773
        %v1619 = vunpack.c.h.b16 %v773
        %v1620 = vunpack.c.l.b16 %v774
        %v1621 = vunpack.c.h.b16 %v774
        %v1622 = vunpack.c.l.b16 %v775
        %v1623 = vunpack.c.h.b16 %v775
        %v1624 = vunpack.c.l.b16 %v776
        %v1625 = vunpack.c.h.b16 %v776
        %v1626 = vunpack.c.l.b16 %v777
        %v1627 = vunpack.c.h.b16 %v777
        %v1628 = vunpack.c.l.b16 %v778
        %v1629 = vunpack.c.h.b16 %v778
        %v1630 = vunpack.c.l.b16 %v779
        %v1631 = vunpack.c.h.b16 %v779
        %v1632 = vunpack.c.l.b16 %v780
        %v1633 = vunpack.c.h.b16 %v780
        %v1634 = vunpack.c.l.b16 %v781
        %v1635 = vunpack.c.h.b16 %v781
        %v1636 = vunpack.c.l.b16 %v782
        %v1637 = vunpack.c.h.b16 %v782
        %v1638 = vunpack.c.l.b16 %v783
        %v1639 = vunpack.c.h.b16 %v783
        %v1640 = vunpack.c.l.b16 %v784
        %v1641 = vunpack.c.h.b16 %v784
        %v1642 = vunpack.c.l.b16 %v785
        %v1643 = vunpack.c.h.b16 %v785
        %v1644 = vunpack.c.l.b16 %v786
        %v1645 = vunpack.c.h.b16 %v786
        %v1646 = vunpack.c.l.b16 %v787
        %v1647 = vunpack.c.h.b16 %v787
        %v1648 = vunpack.c.l.b16 %v788
        %v1649 = vunpack.c.h.b16 %v788
        %v1650 = vunpack.c.l.b16 %v789
        %v1651 = vunpack.c.h.b16 %v789
        %v1652 = vunpack.c.l.b16 %v790
        %v1653 = vunpack.c.h.b16 %v790
        %v1654 = vunpack.c.l.b16 %v791
        %v1655 = vunpack.c.h.b16 %v791
        %v1656 = vunpack.c.l.b16 %v792
        %v1657 = vunpack.c.h.b16 %v792
        %v1658 = vunpack.c.l.b16 %v793
        %v1659 = vunpack.c.h.b16 %v793
        %v1660 = vunpack.c.l.b16 %v794
        %v1661 = vunpack.c.h.b16 %v794
        %v1662 = vunpack.c.l.b16 %v795
        %v1663 = vunpack.c.h.b16 %v795
        %v1664 = vunpack.c.l.b16 %v796
        %v1665 = vunpack.c.h.b16 %v796
        %v1666 = vunpack.c.l.b16 %v797
        %v1667 = vunpack.c.h.b16 %v797
        %v1668 = vunpack.c.l.b16 %v798
        %v1669 = vunpack.c.h.b16 %v798
        %v1670 = vunpack.c.l.b16 %v799
        %v1671 = vunpack.c.h.b16 %v799
        %v1672 = vunpack.c.l.b16 %v800
        %v1673 = vunpack.c.h.b16 %v800
        %v1674 = vunpack.c.l.b16 %v801
        %v1675 = vunpack.c.h.b16 %v801
        %v1676 = vunpack.c.l.b16 %v802
        %v1677 = vunpack.c.h.b16 %v802
        %v1678 = vunpack.c.l.b16 %v803
        %v1679 = vunpack.c.h.b16 %v803
        %v1680 = vunpack.c.l.b16 %v804
        %v1681 = vunpack.c.h.b16 %v804
        %v1682 = vunpack.c.l.b16 %v805
        %v1683 = vunpack.c.h.b16 %v805
        %v1684 = vunpack.c.l.b16 %v806
        %v1685 = vunpack.c.h.b16 %v806
        %v1686 = vunpack.c.l.b16 %v807
        %v1687 = vunpack.c.h.b16 %v807
        %v1688 = vunpack.c.l.b16 %v808
        %v1689 = vunpack.c.h.b16 %v808
        %v1690 = vunpack.c.l.b16 %v809
        %v1691 = vunpack.c.h.b16 %v809
        %v1692 = vunpack.c.l.b16 %v810
        %v1693 = vunpack.c.h.b16 %v810
        %v1694 = vunpack.c.l.b16 %v811
        %v1695 = vunpack.c.h.b16 %v811
        %v1696 = vunpack.c.l.b16 %v812
        %v1697 = vunpack.c.h.b16 %v812
        %v1698 = vunpack.c.l.b16 %v813
        %v1699 = vunpack.c.h.b16 %v813
        %v1700 = vunpack.c.l.b16 %v814
        %v1701 = vunpack.c.h.b16 %v814
        %v1702 = vunpack.c.l.b16 %v815
        %v1703 = vunpack.c.h.b16 %v815
        %v1704 = vunpack.c.l.b16 %v816
        %v1705 = vunpack.c.h.b16 %v816
        %v1706 = vunpack.c.l.b16 %v817
        %v1707 = vunpack.c.h.b16 %v817
        %v1708 = vunpack.c.l.b16 %v818
        %v1709 = vunpack.c.h.b16 %v818
        %v1710 = vunpack.c.l.b16 %v819
        %v1711 = vunpack.c.h.b16 %v819
        %v1712 = vunpack.c.l.b16 %v820
        %v1713 = vunpack.c.h.b16 %v820
        %v1714 = vunpack.c.l.b16 %v821
        %v1715 = vunpack.c.h.b16 %v821
        %v1716 = vunpack.c.l.b16 %v822
        %v1717 = vunpack.c.h.b16 %v822
        %v1718 = vunpack.c.l.b16 %v823
        %v1719 = vunpack.c.h.b16 %v823
        %v1720 = vunpack.c.l.b16 %v824
        %v1721 = vunpack.c.h.b16 %v824
        %v1722 = vunpack.c.l.b16 %v825
        %v1723 = vunpack.c.h.b16 %v825
        %v1724 = vunpack.c.l.b16 %v826
        %v1725 = vunpack.c.h.b16 %v826
        %v1726 = vunpack.c.l.b16 %v827
        %v1727 = vunpack.c.h.b16 %v827
        %v1728 = vunpack.c.l.b16 %v828
        %v1729 = vunpack.c.h.b16 %v828
        %v1730 = vunpack.c.l.b16 %v829
        %v1731 = vunpack.c.h.b16 %v829
        %v1732 = vunpack.c.l.b16 %v830
        %v1733 = vunpack.c.h.b16 %v830
        %v1734 = vunpack.c.l.b16 %v831
        %v1735 = vunpack.c.h.b16 %v831
        %v1736 = vunpack.c.l.b16 %v832
        %v1737 = vunpack.c.h.b16 %v832
        %v1738 = vunpack.c.l.b16 %v833
        %v1739 = vunpack.c.h.b16 %v833
        %v1740 = vunpack.c.l.b16 %v834
        %v1741 = vunpack.c.h.b16 %v834
        %v1742 = vunpack.c.l.b16 %v835
        %v1743 = vunpack.c.h.b16 %v835
        %v1744 = vunpack.c.l.b16 %v836
        %v1745 = vunpack.c.h.b16 %v836
        %v1746 = vunpack.c.l.b16 %v837
        %v1747 = vunpack.c.h.b16 %v837
        %v1748 = vunpack.c.l.b16 %v838
        %v1749 = vunpack.c.h.b16 %v838
        %v1750 = vunpack.c.l.b16 %v839
        %v1751 = vunpack.c.h.b16 %v839
        %v1752 = vunpack.c.l.b16 %v840
        %v1753 = vunpack.c.h.b16 %v840
        %v1754 = vunpack.c.l.b16 %v841
        %v1755 = vunpack.c.h.b16 %v841
        %v1756 = vunpack.c.l.b16 %v842
        %v1757 = vunpack.c.h.b16 %v842
        %v1758 = vunpack.c.l.b16 %v843
        %v1759 = vunpack.c.h.b16 %v843
        %v1760 = vunpack.c.l.b16 %v844
        %v1761 = vunpack.c.h.b16 %v844
        %v1762 = vunpack.c.l.b16 %v845
        %v1763 = vunpack.c.h.b16 %v845
        %v1764 = vunpack.c.l.b16 %v846
        %v1765 = vunpack.c.h.b16 %v846
        %v1766 = vunpack.c.l.b16 %v847
        %v1767 = vunpack.c.h.b16 %v847
        %v1768 = vunpack.c.l.b16 %v848
        %v1769 = vunpack.c.h.b16 %v848
        %v1770 = vunpack.c.l.b16 %v849
        %v1771 = vunpack.c.h.b16 %v849
        %v1772 = vunpack.c.l.b16 %v850
        %v1773 = vunpack.c.h.b16 %v850
        %v1774 = vunpack.c.l.b16 %v851
        %v1775 = vunpack.c.h.b16 %v851
        %v1776 = vunpack.c.l.b16 %v852
        %v1777 = vunpack.c.h.b16 %v852
        %v1778 = vunpack.c.l.b16 %v853
        %v1779 = vunpack.c.h.b16 %v853
        %v1780 = vunpack.c.l.b16 %v854
        %v1781 = vunpack.c.h.b16 %v854
        %v1782 = vunpack.c.l.b16 %v855
        %v1783 = vunpack.c.h.b16 %v855
        %v1784 = vunpack.c.l.b16 %v856
        %v1785 = vunpack.c.h.b16 %v856
        %v1786 = vunpack.c.l.b16 %v857
        %v1787 = vunpack.c.h.b16 %v857
        %v1788 = vunpack.c.l.b16 %v858
        %v1789 = vunpack.c.h.b16 %v858
        %v1790 = vunpack.c.l.b16 %v859
        %v1791 = vunpack.c.h.b16 %v859
        %v1792 = vunpack.c.l.b16 %v860
        %v1793 = vunpack.c.h.b16 %v860
        %v1794 = vunpack.c.l.b16 %v861
        %v1795 = vunpack.c.h.b16 %v861
        %v1796 = vunpack.c.l.b16 %v862
        %v1797 = vunpack.c.h.b16 %v862
        %v1798 = vunpack.c.l.b16 %v863
        %v1799 = vunpack.c.h.b16 %v863
        %v1800 = vunpack.c.l.b16 %v864
        %v1801 = vunpack.c.h.b16 %v864
        %v1802 = vunpack.c.l.b16 %v865
        %v1803 = vunpack.c.h.b16 %v865
        %v1804 = vunpack.c.l.b16 %v866
        %v1805 = vunpack.c.h.b16 %v866
        %v1806 = vunpack.c.l.b16 %v867
        %v1807 = vunpack.c.h.b16 %v867
        %v1808 = vunpack.c.l.b16 %v868
        %v1809 = vunpack.c.h.b16 %v868
        %v1810 = vunpack.c.l.b16 %v869
        %v1811 = vunpack.c.h.b16 %v869
        %v1812 = vunpack.c.l.b16 %v870
        %v1813 = vunpack.c.h.b16 %v870
        %v1814 = vunpack.c.l.b16 %v871
        %v1815 = vunpack.c.h.b16 %v871
        %v1816 = vunpack.c.l.b16 %v872
        %v1817 = vunpack.c.h.b16 %v872
        %v1818 = vunpack.c.l.b16 %v873
        %v1819 = vunpack.c.h.b16 %v873
        %v1820 = vunpack.c.l.b16 %v874
        %v1821 = vunpack.c.h.b16 %v874
        %v1822 = vunpack.c.l.b16 %v875
        %v1823 = vunpack.c.h.b16 %v875
        %v1824 = vunpack.c.l.b16 %v876
        %v1825 = vunpack.c.h.b16 %v876
        %v1826 = vunpack.c.l.b16 %v877
        %v1827 = vunpack.c.h.b16 %v877
        %v1828 = vunpack.c.l.b16 %v878
        %v1829 = vunpack.c.h.b16 %v878
        %v1830 = vunpack.c.l.b16 %v879
        %v1831 = vunpack.c.h.b16 %v879
        %v1832 = vunpack.c.l.b16 %v880
        %v1833 = vunpack.c.h.b16 %v880
        %v1834 = vunpack.c.l.b16 %v881
        %v1835 = vunpack.c.h.b16 %v881
        %v1836 = vunpack.c.l.b16 %v882
        %v1837 = vunpack.c.h.b16 %v882
        %v1838 = vunpack.c.l.b16 %v883
        %v1839 = vunpack.c.h.b16 %v883
        %v1840 = vunpack.c.l.b16 %v884
        %v1841 = vunpack.c.h.b16 %v884
        %v1842 = vunpack.c.l.b16 %v885
        %v1843 = vunpack.c.h.b16 %v885
        %v1844 = vunpack.c.l.b16 %v886
        %v1845 = vunpack.c.h.b16 %v886
        %v1846 = vunpack.c.l.b16 %v887
        %v1847 = vunpack.c.h.b16 %v887
        %v1848 = vunpack.c.l.b16 %v888
        %v1849 = vunpack.c.h.b16 %v888
        %v1850 = vunpack.c.l.b16 %v889
        %v1851 = vunpack.c.h.b16 %v889
        %v1852 = vunpack.c.l.b16 %v890
        %v1853 = vunpack.c.h.b16 %v890
        %v1854 = vunpack.c.l.b16 %v891
        %v1855 = vunpack.c.h.b16 %v891
        %v1856 = vunpack.c.l.b16 %v892
        %v1857 = vunpack.c.h.b16 %v892
        %v1858 = vunpack.c.l.b16 %v893
        %v1859 = vunpack.c.h.b16 %v893
        %v1860 = vunpack.c.l.b16 %v894
        %v1861 = vunpack.c.h.b16 %v894
        %v1862 = vunpack.c.l.b16 %v895
        %v1863 = vunpack.c.h.b16 %v895
        %v1864 = vunpack.c.l.b16 %v896
        %v1865 = vunpack.c.h.b16 %v896
        %v1866 = vunpack.c.l.b16 %v897
        %v1867 = vunpack.c.h.b16 %v897
        %v1868 = vunpack.c.l.b16 %v898
        %v1869 = vunpack.c.h.b16 %v898
        %v1870 = vunpack.c.l.b16 %v899
        %v1871 = vunpack.c.h.b16 %v899
        %v1872 = vunpack.c.l.b16 %v900
        %v1873 = vunpack.c.h.b16 %v900
        %v1874 = vunpack.c.l.b16 %v901
        %v1875 = vunpack.c.h.b16 %v901
        %v1876 = vunpack.c.l.b16 %v902
        %v1877 = vunpack.c.h.b16 %v902
        %v1878 = vunpack.c.l.b16 %v903
        %v1879 = vunpack.c.h.b16 %v903
        %v1880 = vunpack.c.l.b16 %v904
        %v1881 = vunpack.c.h.b16 %v904
        %v1882 = vunpack.c.l.b16 %v905
        %v1883 = vunpack.c.h.b16 %v905
        %v1884 = vunpack.c.l.b16 %v906
        %v1885 = vunpack.c.h.b16 %v906
        %v1886 = vunpack.c.l.b16 %v907
        %v1887 = vunpack.c.h.b16 %v907
        %v1888 = vunpack.c.l.b16 %v908
        %v1889 = vunpack.c.h.b16 %v908
        %v1890 = vunpack.c.l.b16 %v909
        %v1891 = vunpack.c.h.b16 %v909
        %v1892 = vunpack.c.l.b16 %v910
        %v1893 = vunpack.c.h.b16 %v910
        %v1894 = vunpack.c.l.b16 %v911
        %v1895 = vunpack.c.h.b16 %v911
        %v1896 = vunpack.c.l.b16 %v912
        %v1897 = vunpack.c.h.b16 %v912
        %v1898 = vunpack.c.l.b16 %v913
        %v1899 = vunpack.c.h.b16 %v913
        %v1900 = vunpack.c.l.b16 %v914
        %v1901 = vunpack.c.h.b16 %v914
        %v1902 = vunpack.c.l.b16 %v915
        %v1903 = vunpack.c.h.b16 %v915
        %v1904 = vunpack.c.l.b16 %v916
        %v1905 = vunpack.c.h.b16 %v916
        %v1906 = vunpack.c.l.b16 %v917
        %v1907 = vunpack.c.h.b16 %v917
        %v1908 = vunpack.c.l.b16 %v918
        %v1909 = vunpack.c.h.b16 %v918
        %v1910 = vunpack.c.l.b16 %v919
        %v1911 = vunpack.c.h.b16 %v919
        %v1912 = vunpack.c.l.b16 %v920
        %v1913 = vunpack.c.h.b16 %v920
        %v1914 = vunpack.c.l.b16 %v921
        %v1915 = vunpack.c.h.b16 %v921
        %v1916 = vunpack.c.l.b16 %v922
        %v1917 = vunpack.c.h.b16 %v922
        %v1918 = vunpack.c.l.b16 %v923
        %v1919 = vunpack.c.h.b16 %v923
        %v1920 = vunpack.c.l.b16 %v924
        %v1921 = vunpack.c.h.b16 %v924
        %v1922 = vunpack.c.l.b16 %v925
        %v1923 = vunpack.c.h.b16 %v925
        %v1924 = vunpack.c.l.b16 %v926
        %v1925 = vunpack.c.h.b16 %v926
        %v1926 = vunpack.c.l.b16 %v927
        %v1927 = vunpack.c.h.b16 %v927
        %v1928 = vunpack.c.l.b16 %v928
        %v1929 = vunpack.c.h.b16 %v928
        %v1930 = vunpack.c.l.b16 %v929
        %v1931 = vunpack.c.h.b16 %v929
        %v1932 = vunpack.c.l.b16 %v930
        %v1933 = vunpack.c.h.b16 %v930
        %v1934 = vunpack.c.l.b16 %v931
        %v1935 = vunpack.c.h.b16 %v931
        %v1936 = vunpack.c.l.b16 %v932
        %v1937 = vunpack.c.h.b16 %v932
        %v1938 = vunpack.c.l.b16 %v933
        %v1939 = vunpack.c.h.b16 %v933
        %v1940 = vunpack.c.l.b16 %v934
        %v1941 = vunpack.c.h.b16 %v934
        %v1942 = vunpack.c.l.b16 %v935
        %v1943 = vunpack.c.h.b16 %v935
        %v1944 = vunpack.c.l.b16 %v936
        %v1945 = vunpack.c.h.b16 %v936
        %v1946 = vunpack.c.l.b16 %v937
        %v1947 = vunpack.c.h.b16 %v937
        %v1948 = vunpack.c.l.b16 %v938
        %v1949 = vunpack.c.h.b16 %v938
        %v1950 = vunpack.c.l.b16 %v939
        %v1951 = vunpack.c.h.b16 %v939
        %v1952 = vunpack.c.l.b16 %v940
        %v1953 = vunpack.c.h.b16 %v940
        %v1954 = vunpack.c.l.b16 %v941
        %v1955 = vunpack.c.h.b16 %v941
        %v1956 = vunpack.c.l.b16 %v942
        %v1957 = vunpack.c.h.b16 %v942
        %v1958 = vunpack.c.l.b16 %v943
        %v1959 = vunpack.c.h.b16 %v943
        %v1960 = vunpack.c.l.b16 %v944
        %v1961 = vunpack.c.h.b16 %v944
        %v1962 = vunpack.c.l.b16 %v945
        %v1963 = vunpack.c.h.b16 %v945
        %v1964 = vunpack.c.l.b16 %v946
        %v1965 = vunpack.c.h.b16 %v946
        %v1966 = vunpack.c.l.b16 %v947
        %v1967 = vunpack.c.h.b16 %v947
        %v1968 = vunpack.c.l.b16 %v948
        %v1969 = vunpack.c.h.b16 %v948
        %v1970 = vunpack.c.l.b16 %v949
        %v1971 = vunpack.c.h.b16 %v949
        %v1972 = vunpack.c.l.b16 %v950
        %v1973 = vunpack.c.h.b16 %v950
        %v1974 = vunpack.c.l.b16 %v951
        %v1975 = vunpack.c.h.b16 %v951
        %v1976 = vunpack.c.l.b16 %v952
        %v1977 = vunpack.c.h.b16 %v952
        %v1978 = vunpack.c.l.b16 %v953
        %v1979 = vunpack.c.h.b16 %v953
        %v1980 = vunpack.c.l.b16 %v954
        %v1981 = vunpack.c.h.b16 %v954
        %v1982 = vunpack.c.l.b16 %v955
        %v1983 = vunpack.c.h.b16 %v955
        %v1984 = vunpack.c.l.b16 %v956
        %v1985 = vunpack.c.h.b16 %v956
        %v1986 = vunpack.c.l.b16 %v957
        %v1987 = vunpack.c.h.b16 %v957
        %v1988 = vunpack.c.l.b16 %v958
        %v1989 = vunpack.c.h.b16 %v958
        %v1990 = vunpack.c.l.b16 %v959
        %v1991 = vunpack.c.h.b16 %v959
        %v1992 = vunpack.c.l.b16 %v960
        %v1993 = vunpack.c.h.b16 %v960
        %v1994 = vunpack.c.l.b16 %v961
        %v1995 = vunpack.c.h.b16 %v961
        %v1996 = vunpack.c.l.b16 %v962
        %v1997 = vunpack.c.h.b16 %v962
        %v1998 = vunpack.c.l.b16 %v963
        %v1999 = vunpack.c.h.b16 %v963
        %v2000 = vunpack.c.l.b16 %v964
        %v2001 = vunpack.c.h.b16 %v964
        %v2002 = vunpack.c.l.b16 %v965
        %v2003 = vunpack.c.h.b16 %v965
        %v2004 = vunpack.c.l.b16 %v966
        %v2005 = vunpack.c.h.b16 %v966
        %v2006 = vunpack.c.l.b16 %v967
        %v2007 = vunpack.c.h.b16 %v967
        %v2008 = vunpack.c.l.b16 %v968
        %v2009 = vunpack.c.h.b16 %v968
        %v2010 = vunpack.c.l.b16 %v969
        %v2011 = vunpack.c.h.b16 %v969
        %v2012 = vunpack.c.l.b16 %v970
        %v2013 = vunpack.c.h.b16 %v970
        %v2014 = vunpack.c.l.b16 %v971
        %v2015 = vunpack.c.h.b16 %v971
        %v2016 = vunpack.c.l.b16 %v972
        %v2017 = vunpack.c.h.b16 %v972
        %v2018 = vunpack.c.l.b16 %v973
        %v2019 = vunpack.c.h.b16 %v973
        %v2020 = vunpack.c.l.b16 %v974
        %v2021 = vunpack.c.h.b16 %v974
        %v2022 = vunpack.c.l.b16 %v975
        %v2023 = vunpack.c.h.b16 %v975
        %v2024 = vunpack.c.l.b16 %v976
        %v2025 = vunpack.c.h.b16 %v976
        %v2026 = vunpack.c.l.b16 %v977
        %v2027 = vunpack.c.h.b16 %v977
        %v2028 = vunpack.c.l.b16 %v978
        %v2029 = vunpack.c.h.b16 %v978
        %v2030 = vunpack.c.l.b16 %v979
        %v2031 = vunpack.c.h.b16 %v979
        %v2032 = vunpack.c.l.b16 %v980
        %v2033 = vunpack.c.h.b16 %v980
        %v2034 = vunpack.c.l.b16 %v981
        %v2035 = vunpack.c.h.b16 %v981
        %v2036 = vunpack.c.l.b16 %v982
        %v2037 = vunpack.c.h.b16 %v982
        %v2038 = vunpack.c.l.b16 %v983
        %v2039 = vunpack.c.h.b16 %v983
        %v2040 = vunpack.c.l.b16 %v984
        %v2041 = vunpack.c.h.b16 %v984
        %v2042 = vunpack.c.l.b16 %v985
        %v2043 = vunpack.c.h.b16 %v985
        %v2044 = vunpack.c.l.b16 %v986
        %v2045 = vunpack.c.h.b16 %v986
        %v2046 = vunpack.c.l.b16 %v987
        %v2047 = vunpack.c.h.b16 %v987
        %v2048 = vunpack.c.l.b16 %v988
        %v2049 = vunpack.c.h.b16 %v988
        %v2050 = vunpack.c.l.b16 %v989
        %v2051 = vunpack.c.h.b16 %v989
        %v2052 = vunpack.c.l.b16 %v990
        %v2053 = vunpack.c.h.b16 %v990
        %v2054 = vunpack.c.l.b16 %v991
        %v2055 = vunpack.c.h.b16 %v991
        %v2056 = vunpack.c.l.b16 %v992
        %v2057 = vunpack.c.h.b16 %v992
        %v2058 = vunpack.c.l.b16 %v993
        %v2059 = vunpack.c.h.b16 %v993
        %v2060 = vunpack.c.l.b16 %v994
        %v2061 = vunpack.c.h.b16 %v994
        %v2062 = vunpack.c.l.b16 %v995
        %v2063 = vunpack.c.h.b16 %v995
        %v2064 = vunpack.c.l.b16 %v996
        %v2065 = vunpack.c.h.b16 %v996
        %v2066 = vunpack.c.l.b16 %v997
        %v2067 = vunpack.c.h.b16 %v997
        %v2068 = vunpack.c.l.b16 %v998
        %v2069 = vunpack.c.h.b16 %v998
        %v2070 = vunpack.c.l.b16 %v999
        %v2071 = vunpack.c.h.b16 %v999
        %v2072 = vunpack.c.l.b16 %v1000
        %v2073 = vunpack.c.h.b16 %v1000
        %v2074 = vunpack.c.l.b16 %v1001
        %v2075 = vunpack.c.h.b16 %v1001
        %v2076 = vunpack.c.l.b16 %v1002
        %v2077 = vunpack.c.h.b16 %v1002
        %v2078 = vunpack.c.l.b16 %v1003
        %v2079 = vunpack.c.h.b16 %v1003
        %v2080 = vunpack.c.l.b16 %v1004
        %v2081 = vunpack.c.h.b16 %v1004
        %v2082 = vunpack.c.l.b16 %v1005
        %v2083 = vunpack.c.h.b16 %v1005
        %v2084 = vunpack.c.l.b16 %v1006
        %v2085 = vunpack.c.h.b16 %v1006
        %v2086 = vunpack.c.l.b16 %v1007
        %v2087 = vunpack.c.h.b16 %v1007
        %v2088 = vunpack.c.l.b16 %v1008
        %v2089 = vunpack.c.h.b16 %v1008
        %v2090 = vunpack.c.l.b16 %v1009
        %v2091 = vunpack.c.h.b16 %v1009
        %v2092 = vunpack.c.l.b16 %v1010
        %v2093 = vunpack.c.h.b16 %v1010
        %v2094 = vunpack.c.l.b16 %v1011
        %v2095 = vunpack.c.h.b16 %v1011
        %v2096 = vunpack.c.l.b16 %v1012
        %v2097 = vunpack.c.h.b16 %v1012
        %v2098 = vunpack.c.l.b16 %v1013
        %v2099 = vunpack.c.h.b16 %v1013
        %v2100 = vunpack.c.l.b16 %v1014
        %v2101 = vunpack.c.h.b16 %v1014
        %v2102 = vunpack.c.l.b16 %v1015
        %v2103 = vunpack.c.h.b16 %v1015
        %v2104 = vunpack.c.l.b16 %v1016
        %v2105 = vunpack.c.h.b16 %v1016
        %v2106 = vunpack.c.l.b16 %v1017
        %v2107 = vunpack.c.h.b16 %v1017
        %v2108 = vunpack.c.l.b16 %v1018
        %v2109 = vunpack.c.h.b16 %v1018
        %v2110 = vunpack.c.l.b16 %v1019
        %v2111 = vunpack.c.h.b16 %v1019
        %v2112 = vunpack.c.l.b16 %v1020
        %v2113 = vunpack.c.h.b16 %v1020
        %v2114 = vunpack.c.l.b16 %v1021
        %v2115 = vunpack.c.h.b16 %v1021
        %v2116 = vunpack.c.l.b16 %v1022
        %v2117 = vunpack.c.h.b16 %v1022
        %v2118 = vunpack.c.l.b16 %v1023
        %v2119 = vunpack.c.h.b16 %v1023
        %v2120 = vunpack.c.l.b16 %v1024
        %v2121 = vunpack.c.h.b16 %v1024
        %v2122 = vunpack.c.l.b16 %v1025
        %v2123 = vunpack.c.h.b16 %v1025
        %v2124 = vunpack.c.l.b16 %v1026
        %v2125 = vunpack.c.h.b16 %v1026
        %v2126 = vunpack.c.l.b16 %v1027
        %v2127 = vunpack.c.h.b16 %v1027
        %v2128 = vunpack.c.l.b16 %v1028
        %v2129 = vunpack.c.h.b16 %v1028
        %v2130 = vunpack.c.l.b16 %v1029
        %v2131 = vunpack.c.h.b16 %v1029
        %v2132 = vunpack.c.l.b16 %v1030
        %v2133 = vunpack.c.h.b16 %v1030
        %v2134 = vunpack.c.l.b16 %v1031
        %v2135 = vunpack.c.h.b16 %v1031
        %v2136 = vunpack.c.l.b16 %v1032
        %v2137 = vunpack.c.h.b16 %v1032
        %v2138 = vunpack.c.l.b16 %v1033
        %v2139 = vunpack.c.h.b16 %v1033
        %v2140 = vunpack.c.l.b16 %v1034
        %v2141 = vunpack.c.h.b16 %v1034
        %v2142 = vunpack.c.l.b16 %v1035
        %v2143 = vunpack.c.h.b16 %v1035
        %v2144 = vunpack.c.l.b16 %v1036
        %v2145 = vunpack.c.h.b16 %v1036
        %v2146 = vunpack.c.l.b16 %v1037
        %v2147 = vunpack.c.h.b16 %v1037
        %v2148 = vunpack.c.l.b16 %v1038
        %v2149 = vunpack.c.h.b16 %v1038
        %v2150 = vunpack.c.l.b16 %v1039
        %v2151 = vunpack.c.h.b16 %v1039
        %v2152 = vunpack.c.l.b16 %v1040
        %v2153 = vunpack.c.h.b16 %v1040
        %v2154 = vunpack.c.l.b16 %v1041
        %v2155 = vunpack.c.h.b16 %v1041
        %v2156 = vunpack.c.l.b16 %v1042
        %v2157 = vunpack.c.h.b16 %v1042
        %v2158 = vunpack.c.l.b16 %v1043
        %v2159 = vunpack.c.h.b16 %v1043
        %v2160 = vunpack.c.l.b16 %v1044
        %v2161 = vunpack.c.h.b16 %v1044
        %v2162 = vunpack.c.l.b16 %v1045
        %v2163 = vunpack.c.h.b16 %v1045
        %v2164 = vunpack.c.l.b16 %v1046
        %v2165 = vunpack.c.h.b16 %v1046
        %v2166 = vunpack.c.l.b16 %v1047
        %v2167 = vunpack.c.h.b16 %v1047
        %v2168 = vunpack.c.l.b16 %v1048
        %v2169 = vunpack.c.h.b16 %v1048
        %v2170 = vunpack.c.l.b16 %v1049
        %v2171 = vunpack.c.h.b16 %v1049
        %v2172 = vunpack.c.l.b16 %v1050
        %v2173 = vunpack.c.h.b16 %v1050
        %v2174 = vunpack.c.l.b16 %v1051
        %v2175 = vunpack.c.h.b16 %v1051
        %v2176 = vunpack.c.l.b16 %v1052
        %v2177 = vunpack.c.h.b16 %v1052
        %v2178 = vunpack.c.l.b16 %v1053
        %v2179 = vunpack.c.h.b16 %v1053
        %v2180 = vunpack.c.l.b16 %v1054
        %v2181 = vunpack.c.h.b16 %v1054
        %v2182 = vunpack.c.l.b16 %v1055
        %v2183 = vunpack.c.h.b16 %v1055
        %v2184 = vunpack.c.l.b16 %v1056
        %v2185 = vunpack.c.h.b16 %v1056
        %v2186 = vunpack.c.l.b16 %v1057
        %v2187 = vunpack.c.h.b16 %v1057
        %v2188 = vunpack.c.l.b16 %v1058
        %v2189 = vunpack.c.h.b16 %v1058
        %v2190 = vunpack.c.l.b16 %v1059
        %v2191 = vunpack.c.h.b16 %v1059
        %v2192 = vunpack.c.l.b16 %v1060
        %v2193 = vunpack.c.h.b16 %v1060
        %v2194 = vunpack.c.l.b16 %v1061
        %v2195 = vunpack.c.h.b16 %v1061
        %v2196 = vunpack.c.l.b16 %v1062
        %v2197 = vunpack.c.h.b16 %v1062
        %v2198 = vunpack.c.l.b16 %v1063
        %v2199 = vunpack.c.h.b16 %v1063
        %v2200 = vunpack.c.l.b16 %v1064
        %v2201 = vunpack.c.h.b16 %v1064
        %v2202 = vunpack.c.l.b16 %v1065
        %v2203 = vunpack.c.h.b16 %v1065
        %v2204 = vunpack.c.l.b16 %v1066
        %v2205 = vunpack.c.h.b16 %v1066
        %v2206 = vunpack.c.l.b16 %v1067
        %v2207 = vunpack.c.h.b16 %v1067
        %v2208 = vunpack.c.l.b16 %v1068
        %v2209 = vunpack.c.h.b16 %v1068
        %v2210 = vunpack.c.l.b16 %v1069
        %v2211 = vunpack.c.h.b16 %v1069
        %v2212 = vunpack.c.l.b16 %v1070
        %v2213 = vunpack.c.h.b16 %v1070
        %v2214 = vunpack.c.l.b16 %v1071
        %v2215 = vunpack.c.h.b16 %v1071
        %v2216 = vunpack.c.l.b16 %v1072
        %v2217 = vunpack.c.h.b16 %v1072
        %v2218 = vunpack.c.l.b16 %v1073
        %v2219 = vunpack.c.h.b16 %v1073
        %v2220 = vunpack.c.l.b16 %v1074
        %v2221 = vunpack.c.h.b16 %v1074
        %v2222 = vunpack.c.l.b16 %v1075
        %v2223 = vunpack.c.h.b16 %v1075
        %v2224 = vunpack.c.l.b16 %v1076
        %v2225 = vunpack.c.h.b16 %v1076
        %v2226 = vunpack.c.l.b16 %v1077
        %v2227 = vunpack.c.h.b16 %v1077
        %v2228 = vunpack.c.l.b16 %v1078
        %v2229 = vunpack.c.h.b16 %v1078
        %v2230 = vunpack.c.l.b16 %v1079
        %v2231 = vunpack.c.h.b16 %v1079
        %v2232 = vunpack.c.l.b16 %v1080
        %v2233 = vunpack.c.h.b16 %v1080
        %v2234 = vunpack.c.l.b16 %v1081
        %v2235 = vunpack.c.h.b16 %v1081
        %v2236 = vunpack.c.l.b16 %v1082
        %v2237 = vunpack.c.h.b16 %v1082
        %v2238 = vunpack.c.l.b16 %v1083
        %v2239 = vunpack.c.h.b16 %v1083
        %v2240 = vunpack.c.l.b16 %v1084
        %v2241 = vunpack.c.h.b16 %v1084
        %v2242 = vunpack.c.l.b16 %v1085
        %v2243 = vunpack.c.h.b16 %v1085
        %v2244 = vunpack.c.l.b16 %v1086
        %v2245 = vunpack.c.h.b16 %v1086
        %v2246 = vunpack.c.l.b16 %v1087
        %v2247 = vunpack.c.h.b16 %v1087
        %v2248 = vunpack.c.l.b16 %v1088
        %v2249 = vunpack.c.h.b16 %v1088
        %v2250 = vunpack.c.l.b16 %v1089
        %v2251 = vunpack.c.h.b16 %v1089
        %v2252 = vunpack.c.l.b16 %v1090
        %v2253 = vunpack.c.h.b16 %v1090
        %v2254 = vunpack.c.l.b16 %v1091
        %v2255 = vunpack.c.h.b16 %v1091
        %v2256 = vpack.c.b16 %v1490, %v1488
        %v2257 = vpack.c.b16 %v1491, %v1489
        %v2258 = vpack.c.b16 %v1494, %v1492
        %v2259 = vpack.c.b16 %v1495, %v1493
        %v2260 = vpack.c.b16 %v1498, %v1496
        %v2261 = vpack.c.b16 %v1499, %v1497
        %v2262 = vpack.c.b16 %v1502, %v1500
        %v2263 = vpack.c.b16 %v1503, %v1501
        %v2264 = vpack.c.b16 %v1506, %v1504
        %v2265 = vpack.c.b16 %v1507, %v1505
        %v2266 = vpack.c.b16 %v1510, %v1508
        %v2267 = vpack.c.b16 %v1511, %v1509
        %v2268 = vpack.c.b16 %v1514, %v1512
        %v2269 = vpack.c.b16 %v1515, %v1513
        %v2270 = vpack.c.b16 %v1518, %v1516
        %v2271 = vpack.c.b16 %v1519, %v1517
        %v2272 = vpack.c.b16 %v1522, %v1520
        %v2273 = vpack.c.b16 %v1523, %v1521
        %v2274 = vpack.c.b16 %v1526, %v1524
        %v2275 = vpack.c.b16 %v1527, %v1525
        %v2276 = vpack.c.b16 %v1530, %v1528
        %v2277 = vpack.c.b16 %v1531, %v1529
        %v2278 = vpack.c.b16 %v1534, %v1532
        %v2279 = vpack.c.b16 %v1535, %v1533
        %v2280 = vpack.c.b16 %v1538, %v1536
        %v2281 = vpack.c.b16 %v1539, %v1537
        %v2282 = vpack.c.b16 %v1542, %v1540
        %v2283 = vpack.c.b16 %v1543, %v1541
        %v2284 = vpack.c.b16 %v1546, %v1544
        %v2285 = vpack.c.b16 %v1547, %v1545
        %v2286 = vpack.c.b16 %v1550, %v1548
        %v2287 = vpack.c.b16 %v1551, %v1549
        %v2288 = vpack.c.b16 %v1554, %v1552
        %v2289 = vpack.c.b16 %v1555, %v1553
        %v2290 = vpack.c.b16 %v1558, %v1556
        %v2291 = vpack.c.b16 %v1559, %v1557
        %v2292 = vpack.c.b16 %v1562, %v1560
        %v2293 = vpack.c.b16 %v1563, %v1561
        %v2294 = vpack.c.b16 %v1566, %v1564
        %v2295 = vpack.c.b16 %v1567, %v1565
        %v2296 = vpack.c.b16 %v1570, %v1568
        %v2297 = vpack.c.b16 %v1571, %v1569
        %v2298 = vpack.c.b16 %v1574, %v1572
        %v2299 = vpack.c.b16 %v1575, %v1573
        %v2300 = vpack.c.b16 %v1578, %v1576
        %v2301 = vpack.c.b16 %v1579, %v1577
        %v2302 = vpack.c.b16 %v1582, %v1580
        %v2303 = vpack.c.b16 %v1583, %v1581
        %v2304 = vpack.c.b16 %v1586, %v1584
        %v2305 = vpack.c.b16 %v1587, %v1585
        %v2306 = vpack.c.b16 %v1590, %v1588
        %v2307 = vpack.c.b16 %v1591, %v1589
        %v2308 = vpack.c.b16 %v1594, %v1592
        %v2309 = vpack.c.b16 %v1595, %v1593
        %v2310 = vpack.c.b16 %v1598, %v1596
        %v2311 = vpack.c.b16 %v1599, %v1597
        %v2312 = vpack.c.b16 %v1602, %v1600
        %v2313 = vpack.c.b16 %v1603, %v1601
        %v2314 = vpack.c.b16 %v1606, %v1604
        %v2315 = vpack.c.b16 %v1607, %v1605
        %v2316 = vpack.c.b16 %v1610, %v1608
        %v2317 = vpack.c.b16 %v1611, %v1609
        %v2318 = vpack.c.b16 %v1614, %v1612
        %v2319 = vpack.c.b16 %v1615, %v1613
        %v2320 = vpack.c.b16 %v1618, %v1616
        %v2321 = vpack.c.b16 %v1619, %v1617
        %v2322 = vpack.c.b16 %v1622, %v1620
        %v2323 = vpack.c.b16 %v1623, %v1621
        %v2324 = vpack.c.b16 %v1626, %v1624
        %v2325 = vpack.c.b16 %v1627, %v1625
        %v2326 = vpack.c.b16 %v1630, %v1628
        %v2327 = vpack.c.b16 %v1631, %v1629
        %v2328 = vpack.c.b16 %v1634, %v1632
        %v2329 = vpack.c.b16 %v1635, %v1633
        %v2330 = vpack.c.b16 %v1638, %v1636
        %v2331 = vpack.c.b16 %v1639, %v1637
        %v2332 = vpack.c.b16 %v1642, %v1640
        %v2333 = vpack.c.b16 %v1643, %v1641
        %v2334 = vpack.c.b16 %v1646, %v1644
        %v2335 = vpack.c.b16 %v1647, %v1645
        %v2336 = vpack.c.b16 %v1650, %v1648
        %v2337 = vpack.c.b16 %v1651, %v1649
        %v2338 = vpack.c.b16 %v1654, %v1652
        %v2339 = vpack.c.b16 %v1655, %v1653
        %v2340 = vpack.c.b16 %v1658, %v1656
        %v2341 = vpack.c.b16 %v1659, %v1657
        %v2342 = vpack.c.b16 %v1662, %v1660
        %v2343 = vpack.c.b16 %v1663, %v1661
        %v2344 = vpack.c.b16 %v1666, %v1664
        %v2345 = vpack.c.b16 %v1667, %v1665
        %v2346 = vpack.c.b16 %v1670, %v1668
        %v2347 = vpack.c.b16 %v1671, %v1669
        %v2348 = vpack.c.b16 %v1674, %v1672
        %v2349 = vpack.c.b16 %v1675, %v1673
        %v2350 = vpack.c.b16 %v1678, %v1676
        %v2351 = vpack.c.b16 %v1679, %v1677
        %v2352 = vpack.c.b16 %v1682, %v1680
        %v2353 = vpack.c.b16 %v1683, %v1681
        %v2354 = vpack.c.b16 %v1686, %v1684
        %v2355 = vpack.c.b16 %v1687, %v1685
        %v2356 = vpack.c.b16 %v1690, %v1688
        %v2357 = vpack.c.b16 %v1691, %v1689
        %v2358 = vpack.c.b16 %v1694, %v1692
        %v2359 = vpack.c.b16 %v1695, %v1693
        %v2360 = vpack.c.b16 %v1698, %v1696
        %v2361 = vpack.c.b16 %v1699, %v1697
        %v2362 = vpack.c.b16 %v1702, %v1700
        %v2363 = vpack.c.b16 %v1703, %v1701
        %v2364 = vpack.c.b16 %v1706, %v1704
        %v2365 = vpack.c.b16 %v1707, %v1705
        %v2366 = vpack.c.b16 %v1710, %v1708
        %v2367 = vpack.c.b16 %v1711, %v1709
        %v2368 = vpack.c.b16 %v1714, %v1712
        %v2369 = vpack.c.b16 %v1715, %v1713
        %v2370 = vpack.c.b16 %v1718, %v1716
        %v2371 = vpack.c.b16 %v1719, %v1717
        %v2372 = vpack.c.b16 %v1722, %v1720
        %v2373 = vpack.c.b16 %v1723, %v1721
        %v2374 = vpack.c.b16 %v1726, %v1724
        %v2375 = vpack.c.b16 %v1727, %v1725
        %v2376 = vpack.c.b16 %v1730, %v1728
        %v2377 = vpack.c.b16 %v1731, %v1729
        %v2378 = vpack.c.b16 %v1734, %v1732
        %v2379 = vpack.c.b16 %v1735, %v1733
        %v2380 = vpack.c.b16 %v1738, %v1736
        %v2381 = vpack.c.b16 %v1739, %v1737
        %v2382 = vpack.c.b16 %v1742, %v1740
        %v2383 = vpack.c.b16 %v1743, %v1741
        %v2384 = vpack.c.b16 %v1746, %v1744
        %v2385 = vpack.c.b16 %v1747, %v1745
        %v2386 = vpack.c.b16 %v1750, %v1748
        %v2387 = vpack.c.b16 %v1751, %v1749
        %v2388 = vpack.c.b16 %v1754, %v1752
        %v2389 = vpack.c.b16 %v1755, %v1753
        %v2390 = vpack.c.b16 %v1758, %v1756
        %v2391 = vpack.c.b16 %v1759, %v1757
        %v2392 = vpack.c.b16 %v1762, %v1760
        %v2393 = vpack.c.b16 %v1763, %v1761
        %v2394 = vpack.c.b16 %v1766, %v1764
        %v2395 = vpack.c.b16 %v1767, %v1765
        %v2396 = vpack.c.b16 %v1770, %v1768
        %v2397 = vpack.c.b16 %v1771, %v1769
        %v2398 = vpack.c.b16 %v1774, %v1772
        %v2399 = vpack.c.b16 %v1775, %v1773
        %v2400 = vpack.c.b16 %v1778, %v1776
        %v2401 = vpack.c.b16 %v1779, %v1777
        %v2402 = vpack.c.b16 %v1782, %v1780
        %v2403 = vpack.c.b16 %v1783, %v1781
        %v2404 = vpack.c.b16 %v1786, %v1784
        %v2405 = vpack.c.b16 %v1787, %v1785
        %v2406 = vpack.c.b16 %v1790, %v1788
        %v2407 = vpack.c.b16 %v1791, %v1789
        %v2408 = vpack.c.b16 %v1794, %v1792
        %v2409 = vpack.c.b16 %v1795, %v1793
        %v2410 = vpack.c.b16 %v1798, %v1796
        %v2411 = vpack.c.b16 %v1799, %v1797
        %v2412 = vpack.c.b16 %v1802, %v1800
        %v2413 = vpack.c.b16 %v1803, %v1801
        %v2414 = vpack.c.b16 %v1806, %v1804
        %v2415 = vpack.c.b16 %v1807, %v1805
        %v2416 = vpack.c.b16 %v1810, %v1808
        %v2417 = vpack.c.b16 %v1811, %v1809
        %v2418 = vpack.c.b16 %v1814, %v1812
        %v2419 = vpack.c.b16 %v1815, %v1813
        %v2420 = vpack.c.b16 %v1818, %v1816
        %v2421 = vpack.c.b16 %v1819, %v1817
        %v2422 = vpack.c.b16 %v1822, %v1820
        %v2423 = vpack.c.b16 %v1823, %v1821
        %v2424 = vpack.c.b16 %v1826, %v1824
        %v2425 = vpack.c.b16 %v1827, %v1825
        %v2426 = vpack.c.b16 %v1830, %v1828
        %v2427 = vpack.c.b16 %v1831, %v1829
        %v2428 = vpack.c.b16 %v1834, %v1832
        %v2429 = vpack.c.b16 %v1835, %v1833
        %v2430 = vpack.c.b16 %v1838, %v1836
        %v2431 = vpack.c.b16 %v1839, %v1837
        %v2432 = vpack.c.b16 %v1842, %v1840
        %v2433 = vpack.c.b16 %v1843, %v1841
        %v2434 = vpack.c.b16 %v1846, %v1844
        %v2435 = vpack.c.b16 %v1847, %v1845
        %v2436 = vpack.c.b16 %v1850, %v1848
        %v2437 = vpack.c.b16 %v1851, %v1849
        %v2438 = vpack.c.b16 %v1854, %v1852
        %v2439 = vpack.c.b16 %v1855, %v1853
        %v2440 = vpack.c.b16 %v1858, %v1856
        %v2441 = vpack.c.b16 %v1859, %v1857
        %v2442 = vpack.c.b16 %v1862, %v1860
        %v2443 = vpack.c.b16 %v1863, %v1861
        %v2444 = vpack.c.b16 %v1866, %v1864
        %v2445 = vpack.c.b16 %v1867, %v1865
        %v2446 = vpack.c.b16 %v1870, %v1868
        %v2447 = vpack.c.b16 %v1871, %v1869
        %v2448 = vpack.c.b16 %v1874, %v1872
        %v2449 = vpack.c.b16 %v1875, %v1873
        %v2450 = vpack.c.b16 %v1878, %v1876
        %v2451 = vpack.c.b16 %v1879, %v1877
        %v2452 = vpack.c.b16 %v1882, %v1880
        %v2453 = vpack.c.b16 %v1883, %v1881
        %v2454 = vpack.c.b16 %v1886, %v1884
        %v2455 = vpack.c.b16 %v1887, %v1885
        %v2456 = vpack.c.b16 %v1890, %v1888
        %v2457 = vpack.c.b16 %v1891, %v1889
        %v2458 = vpack.c.b16 %v1894, %v1892
        %v2459 = vpack.c.b16 %v1895, %v1893
        %v2460 = vpack.c.b16 %v1898, %v1896
        %v2461 = vpack.c.b16 %v1899, %v1897
        %v2462 = vpack.c.b16 %v1902, %v1900
        %v2463 = vpack.c.b16 %v1903, %v1901
        %v2464 = vpack.c.b16 %v1906, %v1904
        %v2465 = vpack.c.b16 %v1907, %v1905
        %v2466 = vpack.c.b16 %v1910, %v1908
        %v2467 = vpack.c.b16 %v1911, %v1909
        %v2468 = vpack.c.b16 %v1914, %v1912
        %v2469 = vpack.c.b16 %v1915, %v1913
        %v2470 = vpack.c.b16 %v1918, %v1916
        %v2471 = vpack.c.b16 %v1919, %v1917
        %v2472 = vpack.c.b16 %v1922, %v1920
        %v2473 = vpack.c.b16 %v1923, %v1921
        %v2474 = vpack.c.b16 %v1926, %v1924
        %v2475 = vpack.c.b16 %v1927, %v1925
        %v2476 = vpack.c.b16 %v1930, %v1928
        %v2477 = vpack.c.b16 %v1931, %v1929
        %v2478 = vpack.c.b16 %v1934, %v1932
        %v2479 = vpack.c.b16 %v1935, %v1933
        %v2480 = vpack.c.b16 %v1938, %v1936
        %v2481 = vpack.c.b16 %v1939, %v1937
        %v2482 = vpack.c.b16 %v1942, %v1940
        %v2483 = vpack.c.b16 %v1943, %v1941
        %v2484 = vpack.c.b16 %v1946, %v1944
        %v2485 = vpack.c.b16 %v1947, %v1945
        %v2486 = vpack.c.b16 %v1950, %v1948
        %v2487 = vpack.c.b16 %v1951, %v1949
        %v2488 = vpack.c.b16 %v1954, %v1952
        %v2489 = vpack.c.b16 %v1955, %v1953
        %v2490 = vpack.c.b16 %v1958, %v1956
        %v2491 = vpack.c.b16 %v1959, %v1957
        %v2492 = vpack.c.b16 %v1962, %v1960
        %v2493 = vpack.c.b16 %v1963, %v1961
        %v2494 = vpack.c.b16 %v1966, %v1964
        %v2495 = vpack.c.b16 %v1967, %v1965
        %v2496 = vpack.c.b16 %v1970, %v1968
        %v2497 = vpack.c.b16 %v1971, %v1969
        %v2498 = vpack.c.b16 %v1974, %v1972
        %v2499 = vpack.c.b16 %v1975, %v1973
        %v2500 = vpack.c.b16 %v1978, %v1976
        %v2501 = vpack.c.b16 %v1979, %v1977
        %v2502 = vpack.c.b16 %v1982, %v1980
        %v2503 = vpack.c.b16 %v1983, %v1981
        %v2504 = vpack.c.b16 %v1986, %v1984
        %v2505 = vpack.c.b16 %v1987, %v1985
        %v2506 = vpack.c.b16 %v1990, %v1988
        %v2507 = vpack.c.b16 %v1991, %v1989
        %v2508 = vpack.c.b16 %v1994, %v1992
        %v2509 = vpack.c.b16 %v1995, %v1993
        %v2510 = vpack.c.b16 %v1998, %v1996
        %v2511 = vpack.c.b16 %v1999, %v1997
        %v2512 = vpack.c.b16 %v2002, %v2000
        %v2513 = vpack.c.b16 %v2003, %v2001
        %v2514 = vpack.c.b16 %v2006, %v2004
        %v2515 = vpack.c.b16 %v2007, %v2005
        %v2516 = vpack.c.b16 %v2010, %v2008
        %v2517 = vpack.c.b16 %v2011, %v2009
        %v2518 = vpack.c.b16 %v2014, %v2012
        %v2519 = vpack.c.b16 %v2015, %v2013
        %v2520 = vpack.c.b16 %v2018, %v2016
        %v2521 = vpack.c.b16 %v2019, %v2017
        %v2522 = vpack.c.b16 %v2022, %v2020
        %v2523 = vpack.c.b16 %v2023, %v2021
        %v2524 = vpack.c.b16 %v2026, %v2024
        %v2525 = vpack.c.b16 %v2027, %v2025
        %v2526 = vpack.c.b16 %v2030, %v2028
        %v2527 = vpack.c.b16 %v2031, %v2029
        %v2528 = vpack.c.b16 %v2034, %v2032
        %v2529 = vpack.c.b16 %v2035, %v2033
        %v2530 = vpack.c.b16 %v2038, %v2036
        %v2531 = vpack.c.b16 %v2039, %v2037
        %v2532 = vpack.c.b16 %v2042, %v2040
        %v2533 = vpack.c.b16 %v2043, %v2041
        %v2534 = vpack.c.b16 %v2046, %v2044
        %v2535 = vpack.c.b16 %v2047, %v2045
        %v2536 = vpack.c.b16 %v2050, %v2048
        %v2537 = vpack.c.b16 %v2051, %v2049
        %v2538 = vpack.c.b16 %v2054, %v2052
        %v2539 = vpack.c.b16 %v2055, %v2053
        %v2540 = vpack.c.b16 %v2058, %v2056
        %v2541 = vpack.c.b16 %v2059, %v2057
        %v2542 = vpack.c.b16 %v2062, %v2060
        %v2543 = vpack.c.b16 %v2063, %v2061
        %v2544 = vpack.c.b16 %v2066, %v2064
        %v2545 = vpack.c.b16 %v2067, %v2065
        %v2546 = vpack.c.b16 %v2070, %v2068
        %v2547 = vpack.c.b16 %v2071, %v2069
        %v2548 = vpack.c.b16 %v2074, %v2072
        %v2549 = vpack.c.b16 %v2075, %v2073
        %v2550 = vpack.c.b16 %v2078, %v2076
        %v2551 = vpack.c.b16 %v2079, %v2077
        %v2552 = vpack.c.b16 %v2082, %v2080
        %v2553 = vpack.c.b16 %v2083, %v2081
        %v2554 = vpack.c.b16 %v2086, %v2084
        %v2555 = vpack.c.b16 %v2087, %v2085
        %v2556 = vpack.c.b16 %v2090, %v2088
        %v2557 = vpack.c.b16 %v2091, %v2089
        %v2558 = vpack.c.b16 %v2094, %v2092
        %v2559 = vpack.c.b16 %v2095, %v2093
        %v2560 = vpack.c.b16 %v2098, %v2096
        %v2561 = vpack.c.b16 %v2099, %v2097
        %v2562 = vpack.c.b16 %v2102, %v2100
        %v2563 = vpack.c.b16 %v2103, %v2101
        %v2564 = vpack.c.b16 %v2106, %v2104
        %v2565 = vpack.c.b16 %v2107, %v2105
        %v2566 = vpack.c.b16 %v2110, %v2108
        %v2567 = vpack.c.b16 %v2111, %v2109
        %v2568 = vpack.c.b16 %v2114, %v2112
        %v2569 = vpack.c.b16 %v2115, %v2113
        %v2570 = vpack.c.b16 %v2118, %v2116
        %v2571 = vpack.c.b16 %v2119, %v2117
        %v2572 = vpack.c.b16 %v2122, %v2120
        %v2573 = vpack.c.b16 %v2123, %v2121
        %v2574 = vpack.c.b16 %v2126, %v2124
        %v2575 = vpack.c.b16 %v2127, %v2125
        %v2576 = vpack.c.b16 %v2130, %v2128
        %v2577 = vpack.c.b16 %v2131, %v2129
        %v2578 = vpack.c.b16 %v2134, %v2132
        %v2579 = vpack.c.b16 %v2135, %v2133
        %v2580 = vpack.c.b16 %v2138, %v2136
        %v2581 = vpack.c.b16 %v2139, %v2137
        %v2582 = vpack.c.b16 %v2142, %v2140
        %v2583 = vpack.c.b16 %v2143, %v2141
        %v2584 = vpack.c.b16 %v2146, %v2144
        %v2585 = vpack.c.b16 %v2147, %v2145
        %v2586 = vpack.c.b16 %v2150, %v2148
        %v2587 = vpack.c.b16 %v2151, %v2149
        %v2588 = vpack.c.b16 %v2154, %v2152
        %v2589 = vpack.c.b16 %v2155, %v2153
        %v2590 = vpack.c.b16 %v2158, %v2156
        %v2591 = vpack.c.b16 %v2159, %v2157
        %v2592 = vpack.c.b16 %v2162, %v2160
        %v2593 = vpack.c.b16 %v2163, %v2161
        %v2594 = vpack.c.b16 %v2166, %v2164
        %v2595 = vpack.c.b16 %v2167, %v2165
        %v2596 = vpack.c.b16 %v2170, %v2168
        %v2597 = vpack.c.b16 %v2171, %v2169
        %v2598 = vpack.c.b16 %v2174, %v2172
        %v2599 = vpack.c.b16 %v2175, %v2173
        %v2600 = vpack.c.b16 %v2178, %v2176
        %v2601 = vpack.c.b16 %v2179, %v2177
        %v2602 = vpack.c.b16 %v2182, %v2180
        %v2603 = vpack.c.b16 %v2183, %v2181
        %v2604 = vpack.c.b16 %v2186, %v2184
        %v2605 = vpack.c.b16 %v2187, %v2185
        %v2606 = vpack.c.b16 %v2190, %v2188
        %v2607 = vpack.c.b16 %v2191, %v2189
        %v2608 = vpack.c.b16 %v2194, %v2192
        %v2609 = vpack.c.b16 %v2195, %v2193
        %v2610 = vpack.c.b16 %v2198, %v2196
        %v2611 = vpack.c.b16 %v2199, %v2197
        %v2612 = vpack.c.b16 %v2202, %v2200
        %v2613 = vpack.c.b16 %v2203, %v2201
        %v2614 = vpack.c.b16 %v2206, %v2204
        %v2615 = vpack.c.b16 %v2207, %v2205
        %v2616 = vpack.c.b16 %v2210, %v2208
        %v2617 = vpack.c.b16 %v2211, %v2209
        %v2618 = vpack.c.b16 %v2214, %v2212
        %v2619 = vpack.c.b16 %v2215, %v2213
        %v2620 = vpack.c.b16 %v2218, %v2216
        %v2621 = vpack.c.b16 %v2219, %v2217
        %v2622 = vpack.c.b16 %v2222, %v2220
        %v2623 = vpack.c.b16 %v2223, %v2221
        %v2624 = vpack.c.b16 %v2226, %v2224
        %v2625 = vpack.c.b16 %v2227, %v2225
        %v2626 = vpack.c.b16 %v2230, %v2228
        %v2627 = vpack.c.b16 %v2231, %v2229
        %v2628 = vpack.c.b16 %v2234, %v2232
        %v2629 = vpack.c.b16 %v2235, %v2233
        %v2630 = vpack.c.b16 %v2238, %v2236
        %v2631 = vpack.c.b16 %v2239, %v2237
        %v2632 = vpack.c.b16 %v2242, %v2240
        %v2633 = vpack.c.b16 %v2243, %v2241
        %v2634 = vpack.c.b16 %v2246, %v2244
        %v2635 = vpack.c.b16 %v2247, %v2245
        %v2636 = vpack.c.b16 %v2250, %v2248
        %v2637 = vpack.c.b16 %v2251, %v2249
        %v2638 = vpack.c.b16 %v2254, %v2252
        %v2639 = vpack.c.b16 %v2255, %v2253
        %3024 = vmatprep.subr.bf16.mxu0 %v2271
        %3025 = vmatpush1.bf16.msra.mxu0 %v2270
        %3026 = vmatprep.subr.bf16.mxu0 %v2269
        %3027 = vmatpush1.bf16.msra.mxu0 %v2268
        %3028 = vmatprep.subr.bf16.mxu0 %v2267
        %3029 = vmatpush1.bf16.msra.mxu0 %v2266
        %3030 = vmatprep.subr.bf16.mxu0 %v2265
        %3031 = vmatpush1.bf16.msra.mxu0 %v2264
        %3032 = vmatprep.subr.bf16.mxu0 %v2263
        %3033 = vmatpush1.bf16.msra.mxu0 %v2262
        %3034 = vmatprep.subr.bf16.mxu0 %v2261
        %3035 = vmatpush1.bf16.msra.mxu0 %v2260
        %3036 = vmatprep.subr.bf16.mxu0 %v2259
        %3037 = vmatpush1.bf16.msra.mxu0 %v2258
        %3038 = vmatprep.subr.bf16.mxu0 %v2257
        %3039 = vmatpush1.bf16.msra.mxu0 %v2256
        %3040 = vmatprep.subr.bf16.mxu0 %v2287
        %3041 = vmatpush2.bf16.msra.mxu0 %v2286
        %3042 = vmatprep.subr.bf16.mxu0 %v2285
        %3043 = vmatpush2.bf16.msra.mxu0 %v2284
        %3044 = vmatprep.subr.bf16.mxu0 %v2283
        %3045 = vmatpush2.bf16.msra.mxu0 %v2282
        %3046 = vmatprep.subr.bf16.mxu0 %v2281
        %3047 = vmatpush2.bf16.msra.mxu0 %v2280
        %3048 = vmatprep.subr.bf16.mxu0 %v2279
        %3049 = vmatpush2.bf16.msra.mxu0 %v2278
        %3050 = vmatprep.subr.bf16.mxu0 %v2277
        %3051 = vmatpush2.bf16.msra.mxu0 %v2276
        %3052 = vmatprep.subr.bf16.mxu0 %v2275
        %3053 = vmatpush2.bf16.msra.mxu0 %v2274
        %3054 = vmatprep.subr.bf16.mxu0 %v2273
        %3055 = vmatpush2.bf16.msra.mxu0 %v2272
        %3056 = vmatprep.mubr.bf16.mxu0 %v685
        %3057 = vmatmul.mubr.bf16.gmra.mxu0 %v684
        %v3058 = vpop.f32.mrf.mxu0
        %v3059 = vadd.f32 %v1097, %v3058
        %v3060 = vpop.f32.mrf.mxu0
        %v3061 = vadd.f32 %v1101, %v3060
        %v3062 = vpop.f32.mrf.mxu0
        %v3063 = vpop.f32.mrf.mxu0
        %3064 = vdwg.mxu0
        %3065 = vmatprep.subr.bf16.mxu0 %v2303
        %3066 = vmatpush1.bf16.msra.mxu0 %v2302
        %3067 = vmatprep.subr.bf16.mxu0 %v2301
        %3068 = vmatpush1.bf16.msra.mxu0 %v2300
        %3069 = vmatprep.subr.bf16.mxu0 %v2299
        %3070 = vmatpush1.bf16.msra.mxu0 %v2298
        %3071 = vmatprep.subr.bf16.mxu0 %v2297
        %3072 = vmatpush1.bf16.msra.mxu0 %v2296
        %3073 = vmatprep.subr.bf16.mxu0 %v2295
        %3074 = vmatpush1.bf16.msra.mxu0 %v2294
        %3075 = vmatprep.subr.bf16.mxu0 %v2293
        %3076 = vmatpush1.bf16.msra.mxu0 %v2292
        %3077 = vmatprep.subr.bf16.mxu0 %v2291
        %3078 = vmatpush1.bf16.msra.mxu0 %v2290
        %3079 = vmatprep.subr.bf16.mxu0 %v2289
        %3080 = vmatpush1.bf16.msra.mxu0 %v2288
        %3081 = vmatprep.subr.bf16.mxu0 %v2319
        %3082 = vmatpush2.bf16.msra.mxu0 %v2318
        %3083 = vmatprep.subr.bf16.mxu0 %v2317
        %3084 = vmatpush2.bf16.msra.mxu0 %v2316
        %3085 = vmatprep.subr.bf16.mxu0 %v2315
        %3086 = vmatpush2.bf16.msra.mxu0 %v2314
        %3087 = vmatprep.subr.bf16.mxu0 %v2313
        %3088 = vmatpush2.bf16.msra.mxu0 %v2312
        %3089 = vmatprep.subr.bf16.mxu0 %v2311
        %3090 = vmatpush2.bf16.msra.mxu0 %v2310
        %3091 = vmatprep.subr.bf16.mxu0 %v2309
        %3092 = vmatpush2.bf16.msra.mxu0 %v2308
        %3093 = vmatprep.subr.bf16.mxu0 %v2307
        %3094 = vmatpush2.bf16.msra.mxu0 %v2306
        %3095 = vmatprep.subr.bf16.mxu0 %v2305
        %3096 = vmatpush2.bf16.msra.mxu0 %v2304
        %3097 = vmatprep.mubr.bf16.mxu0 %v687
        %3098 = vmatmul.mubr.bf16.gmra.mxu0 %v686
        %v3099 = vpop.f32.mrf.mxu0
        %v3100 = vadd.f32 %v3059, %v3099
        %v3101 = vpop.f32.mrf.mxu0
        %v3102 = vadd.f32 %v3061, %v3101
        %v3103 = vpop.f32.mrf.mxu0
        %v3104 = vpop.f32.mrf.mxu0
        %3105 = vdwg.mxu0
        %3106 = vmatprep.subr.bf16.mxu0 %v2335
        %3107 = vmatpush1.bf16.msra.mxu0 %v2334
        %3108 = vmatprep.subr.bf16.mxu0 %v2333
        %3109 = vmatpush1.bf16.msra.mxu0 %v2332
        %3110 = vmatprep.subr.bf16.mxu0 %v2331
        %3111 = vmatpush1.bf16.msra.mxu0 %v2330
        %3112 = vmatprep.subr.bf16.mxu0 %v2329
        %3113 = vmatpush1.bf16.msra.mxu0 %v2328
        %3114 = vmatprep.subr.bf16.mxu0 %v2327
        %3115 = vmatpush1.bf16.msra.mxu0 %v2326
        %3116 = vmatprep.subr.bf16.mxu0 %v2325
        %3117 = vmatpush1.bf16.msra.mxu0 %v2324
        %3118 = vmatprep.subr.bf16.mxu0 %v2323
        %3119 = vmatpush1.bf16.msra.mxu0 %v2322
        %3120 = vmatprep.subr.bf16.mxu0 %v2321
        %3121 = vmatpush1.bf16.msra.mxu0 %v2320
        %3122 = vmatprep.subr.bf16.mxu0 %v2351
        %3123 = vmatpush2.bf16.msra.mxu0 %v2350
        %3124 = vmatprep.subr.bf16.mxu0 %v2349
        %3125 = vmatpush2.bf16.msra.mxu0 %v2348
        %3126 = vmatprep.subr.bf16.mxu0 %v2347
        %3127 = vmatpush2.bf16.msra.mxu0 %v2346
        %3128 = vmatprep.subr.bf16.mxu0 %v2345
        %3129 = vmatpush2.bf16.msra.mxu0 %v2344
        %3130 = vmatprep.subr.bf16.mxu0 %v2343
        %3131 = vmatpush2.bf16.msra.mxu0 %v2342
        %3132 = vmatprep.subr.bf16.mxu0 %v2341
        %3133 = vmatpush2.bf16.msra.mxu0 %v2340
        %3134 = vmatprep.subr.bf16.mxu0 %v2339
        %3135 = vmatpush2.bf16.msra.mxu0 %v2338
        %3136 = vmatprep.subr.bf16.mxu0 %v2337
        %3137 = vmatpush2.bf16.msra.mxu0 %v2336
        %3138 = vmatprep.mubr.bf16.mxu0 %v689
        %3139 = vmatmul.mubr.bf16.gmra.mxu0 %v688
        %v3140 = vpop.f32.mrf.mxu0
        %v3141 = vadd.f32 %v3100, %v3140
        %v3142 = vpop.f32.mrf.mxu0
        %v3143 = vadd.f32 %v3102, %v3142
        %v3144 = vpop.f32.mrf.mxu0
        %v3145 = vpop.f32.mrf.mxu0
        %3146 = vdwg.mxu0
        %3147 = vmatprep.subr.bf16.mxu0 %v2367
        %3148 = vmatpush1.bf16.msra.mxu0 %v2366
        %3149 = vmatprep.subr.bf16.mxu0 %v2365
        %3150 = vmatpush1.bf16.msra.mxu0 %v2364
        %3151 = vmatprep.subr.bf16.mxu0 %v2363
        %3152 = vmatpush1.bf16.msra.mxu0 %v2362
        %3153 = vmatprep.subr.bf16.mxu0 %v2361
        %3154 = vmatpush1.bf16.msra.mxu0 %v2360
        %3155 = vmatprep.subr.bf16.mxu0 %v2359
        %3156 = vmatpush1.bf16.msra.mxu0 %v2358
        %3157 = vmatprep.subr.bf16.mxu0 %v2357
        %3158 = vmatpush1.bf16.msra.mxu0 %v2356
        %3159 = vmatprep.subr.bf16.mxu0 %v2355
        %3160 = vmatpush1.bf16.msra.mxu0 %v2354
        %3161 = vmatprep.subr.bf16.mxu0 %v2353
        %3162 = vmatpush1.bf16.msra.mxu0 %v2352
        %3163 = vmatprep.subr.bf16.mxu0 %v2383
        %3164 = vmatpush2.bf16.msra.mxu0 %v2382
        %3165 = vmatprep.subr.bf16.mxu0 %v2381
        %3166 = vmatpush2.bf16.msra.mxu0 %v2380
        %3167 = vmatprep.subr.bf16.mxu0 %v2379
        %3168 = vmatpush2.bf16.msra.mxu0 %v2378
        %3169 = vmatprep.subr.bf16.mxu0 %v2377
        %3170 = vmatpush2.bf16.msra.mxu0 %v2376
        %3171 = vmatprep.subr.bf16.mxu0 %v2375
        %3172 = vmatpush2.bf16.msra.mxu0 %v2374
        %3173 = vmatprep.subr.bf16.mxu0 %v2373
        %3174 = vmatpush2.bf16.msra.mxu0 %v2372
        %3175 = vmatprep.subr.bf16.mxu0 %v2371
        %3176 = vmatpush2.bf16.msra.mxu0 %v2370
        %3177 = vmatprep.subr.bf16.mxu0 %v2369
        %3178 = vmatpush2.bf16.msra.mxu0 %v2368
        %3179 = vmatprep.mubr.bf16.mxu0 %v691
        %3180 = vmatmul.mubr.bf16.gmra.mxu0 %v690
        %v3181 = vpop.f32.mrf.mxu0
        %v3182 = vadd.f32 %v3141, %v3181
        %v3183 = vpop.f32.mrf.mxu0
        %v3184 = vadd.f32 %v3143, %v3183
        %v3185 = vpop.f32.mrf.mxu0
        %v3186 = vpop.f32.mrf.mxu0
        %3187 = vdwg.mxu0
        %3188 = vmatprep.subr.bf16.mxu0 %v2399
        %3189 = vmatpush1.bf16.msra.mxu0 %v2398
        %3190 = vmatprep.subr.bf16.mxu0 %v2397
        %3191 = vmatpush1.bf16.msra.mxu0 %v2396
        %3192 = vmatprep.subr.bf16.mxu0 %v2395
        %3193 = vmatpush1.bf16.msra.mxu0 %v2394
        %3194 = vmatprep.subr.bf16.mxu0 %v2393
        %3195 = vmatpush1.bf16.msra.mxu0 %v2392
        %3196 = vmatprep.subr.bf16.mxu0 %v2391
        %3197 = vmatpush1.bf16.msra.mxu0 %v2390
        %3198 = vmatprep.subr.bf16.mxu0 %v2389
        %3199 = vmatpush1.bf16.msra.mxu0 %v2388
        %3200 = vmatprep.subr.bf16.mxu0 %v2387
        %3201 = vmatpush1.bf16.msra.mxu0 %v2386
        %3202 = vmatprep.subr.bf16.mxu0 %v2385
        %3203 = vmatpush1.bf16.msra.mxu0 %v2384
        %3204 = vmatprep.subr.bf16.mxu0 %v2415
        %3205 = vmatpush2.bf16.msra.mxu0 %v2414
        %3206 = vmatprep.subr.bf16.mxu0 %v2413
        %3207 = vmatpush2.bf16.msra.mxu0 %v2412
        %3208 = vmatprep.subr.bf16.mxu0 %v2411
        %3209 = vmatpush2.bf16.msra.mxu0 %v2410
        %3210 = vmatprep.subr.bf16.mxu0 %v2409
        %3211 = vmatpush2.bf16.msra.mxu0 %v2408
        %3212 = vmatprep.subr.bf16.mxu0 %v2407
        %3213 = vmatpush2.bf16.msra.mxu0 %v2406
        %3214 = vmatprep.subr.bf16.mxu0 %v2405
        %3215 = vmatpush2.bf16.msra.mxu0 %v2404
        %3216 = vmatprep.subr.bf16.mxu0 %v2403
        %3217 = vmatpush2.bf16.msra.mxu0 %v2402
        %3218 = vmatprep.subr.bf16.mxu0 %v2401
        %3219 = vmatpush2.bf16.msra.mxu0 %v2400
        %3220 = vmatprep.mubr.bf16.mxu0 %v693
        %3221 = vmatmul.mubr.bf16.gmra.mxu0 %v692
        %v3222 = vpop.f32.mrf.mxu0
        %v3223 = vadd.f32 %v3182, %v3222
        %v3224 = vpop.f32.mrf.mxu0
        %v3225 = vadd.f32 %v3184, %v3224
        %v3226 = vpop.f32.mrf.mxu0
        %v3227 = vpop.f32.mrf.mxu0
        %3228 = vdwg.mxu0
        %3229 = vmatprep.subr.bf16.mxu0 %v2431
        %3230 = vmatpush1.bf16.msra.mxu0 %v2430
        %3231 = vmatprep.subr.bf16.mxu0 %v2429
        %3232 = vmatpush1.bf16.msra.mxu0 %v2428
        %3233 = vmatprep.subr.bf16.mxu0 %v2427
        %3234 = vmatpush1.bf16.msra.mxu0 %v2426
        %3235 = vmatprep.subr.bf16.mxu0 %v2425
        %3236 = vmatpush1.bf16.msra.mxu0 %v2424
        %3237 = vmatprep.subr.bf16.mxu0 %v2423
        %3238 = vmatpush1.bf16.msra.mxu0 %v2422
        %3239 = vmatprep.subr.bf16.mxu0 %v2421
        %3240 = vmatpush1.bf16.msra.mxu0 %v2420
        %3241 = vmatprep.subr.bf16.mxu0 %v2419
        %3242 = vmatpush1.bf16.msra.mxu0 %v2418
        %3243 = vmatprep.subr.bf16.mxu0 %v2417
        %3244 = vmatpush1.bf16.msra.mxu0 %v2416
        %3245 = vmatprep.subr.bf16.mxu0 %v2447
        %3246 = vmatpush2.bf16.msra.mxu0 %v2446
        %3247 = vmatprep.subr.bf16.mxu0 %v2445
        %3248 = vmatpush2.bf16.msra.mxu0 %v2444
        %3249 = vmatprep.subr.bf16.mxu0 %v2443
        %3250 = vmatpush2.bf16.msra.mxu0 %v2442
        %3251 = vmatprep.subr.bf16.mxu0 %v2441
        %3252 = vmatpush2.bf16.msra.mxu0 %v2440
        %3253 = vmatprep.subr.bf16.mxu0 %v2439
        %3254 = vmatpush2.bf16.msra.mxu0 %v2438
        %3255 = vmatprep.subr.bf16.mxu0 %v2437
        %3256 = vmatpush2.bf16.msra.mxu0 %v2436
        %3257 = vmatprep.subr.bf16.mxu0 %v2435
        %3258 = vmatpush2.bf16.msra.mxu0 %v2434
        %3259 = vmatprep.subr.bf16.mxu0 %v2433
        %3260 = vmatpush2.bf16.msra.mxu0 %v2432
        %3261 = vmatprep.mubr.bf16.mxu0 %v695
        %3262 = vmatmul.mubr.bf16.gmra.mxu0 %v694
        %v3263 = vpop.f32.mrf.mxu0
        %v3264 = vadd.f32 %v3223, %v3263
        %v3265 = vpop.f32.mrf.mxu0
        %v3266 = vadd.f32 %v3225, %v3265
        %v3267 = vpop.f32.mrf.mxu0
        %v3268 = vpop.f32.mrf.mxu0
        %3269 = vdwg.mxu0
        %3270 = vmatprep.subr.bf16.mxu0 %v2463
        %3271 = vmatpush1.bf16.msra.mxu0 %v2462
        %3272 = vmatprep.subr.bf16.mxu0 %v2461
        %3273 = vmatpush1.bf16.msra.mxu0 %v2460
        %3274 = vmatprep.subr.bf16.mxu0 %v2459
        %3275 = vmatpush1.bf16.msra.mxu0 %v2458
        %3276 = vmatprep.subr.bf16.mxu0 %v2457
        %3277 = vmatpush1.bf16.msra.mxu0 %v2456
        %3278 = vmatprep.subr.bf16.mxu0 %v2455
        %3279 = vmatpush1.bf16.msra.mxu0 %v2454
        %3280 = vmatprep.subr.bf16.mxu0 %v2453
        %3281 = vmatpush1.bf16.msra.mxu0 %v2452
        %3282 = vmatprep.subr.bf16.mxu0 %v2451
        %3283 = vmatpush1.bf16.msra.mxu0 %v2450
        %3284 = vmatprep.subr.bf16.mxu0 %v2449
        %3285 = vmatpush1.bf16.msra.mxu0 %v2448
        %3286 = vmatprep.subr.bf16.mxu0 %v2479
        %3287 = vmatpush2.bf16.msra.mxu0 %v2478
        %3288 = vmatprep.subr.bf16.mxu0 %v2477
        %3289 = vmatpush2.bf16.msra.mxu0 %v2476
        %3290 = vmatprep.subr.bf16.mxu0 %v2475
        %3291 = vmatpush2.bf16.msra.mxu0 %v2474
        %3292 = vmatprep.subr.bf16.mxu0 %v2473
        %3293 = vmatpush2.bf16.msra.mxu0 %v2472
        %3294 = vmatprep.subr.bf16.mxu0 %v2471
        %3295 = vmatpush2.bf16.msra.mxu0 %v2470
        %3296 = vmatprep.subr.bf16.mxu0 %v2469
        %3297 = vmatpush2.bf16.msra.mxu0 %v2468
        %3298 = vmatprep.subr.bf16.mxu0 %v2467
        %3299 = vmatpush2.bf16.msra.mxu0 %v2466
        %3300 = vmatprep.subr.bf16.mxu0 %v2465
        %3301 = vmatpush2.bf16.msra.mxu0 %v2464
        %3302 = vmatprep.mubr.bf16.mxu0 %v697
        %3303 = vmatmul.mubr.bf16.gmra.mxu0 %v696
        %v3304 = vpop.f32.mrf.mxu0
        %v3305 = vadd.f32 %v3264, %v3304
        %v3306 = vpop.f32.mrf.mxu0
        %v3307 = vadd.f32 %v3266, %v3306
        %v3308 = vpop.f32.mrf.mxu0
        %v3309 = vpop.f32.mrf.mxu0
        %3310 = vdwg.mxu0
        %3311 = vmatprep.subr.bf16.mxu0 %v2495
        %3312 = vmatpush1.bf16.msra.mxu0 %v2494
        %3313 = vmatprep.subr.bf16.mxu0 %v2493
        %3314 = vmatpush1.bf16.msra.mxu0 %v2492
        %3315 = vmatprep.subr.bf16.mxu0 %v2491
        %3316 = vmatpush1.bf16.msra.mxu0 %v2490
        %3317 = vmatprep.subr.bf16.mxu0 %v2489
        %3318 = vmatpush1.bf16.msra.mxu0 %v2488
        %3319 = vmatprep.subr.bf16.mxu0 %v2487
        %3320 = vmatpush1.bf16.msra.mxu0 %v2486
        %3321 = vmatprep.subr.bf16.mxu0 %v2485
        %3322 = vmatpush1.bf16.msra.mxu0 %v2484
        %3323 = vmatprep.subr.bf16.mxu0 %v2483
        %3324 = vmatpush1.bf16.msra.mxu0 %v2482
        %3325 = vmatprep.subr.bf16.mxu0 %v2481
        %3326 = vmatpush1.bf16.msra.mxu0 %v2480
        %3327 = vmatprep.subr.bf16.mxu0 %v2511
        %3328 = vmatpush2.bf16.msra.mxu0 %v2510
        %3329 = vmatprep.subr.bf16.mxu0 %v2509
        %3330 = vmatpush2.bf16.msra.mxu0 %v2508
        %3331 = vmatprep.subr.bf16.mxu0 %v2507
        %3332 = vmatpush2.bf16.msra.mxu0 %v2506
        %3333 = vmatprep.subr.bf16.mxu0 %v2505
        %3334 = vmatpush2.bf16.msra.mxu0 %v2504
        %3335 = vmatprep.subr.bf16.mxu0 %v2503
        %3336 = vmatpush2.bf16.msra.mxu0 %v2502
        %3337 = vmatprep.subr.bf16.mxu0 %v2501
        %3338 = vmatpush2.bf16.msra.mxu0 %v2500
        %3339 = vmatprep.subr.bf16.mxu0 %v2499
        %3340 = vmatpush2.bf16.msra.mxu0 %v2498
        %3341 = vmatprep.subr.bf16.mxu0 %v2497
        %3342 = vmatpush2.bf16.msra.mxu0 %v2496
        %3343 = vmatprep.mubr.bf16.mxu0 %v699
        %3344 = vmatmul.mubr.bf16.gmra.mxu0 %v698
        %v3345 = vpop.f32.mrf.mxu0
        %v3346 = vadd.f32 %v3305, %v3345
        %v3347 = vpop.f32.mrf.mxu0
        %v3348 = vadd.f32 %v3307, %v3347
        %v3349 = vpop.f32.mrf.mxu0
        %v3350 = vpop.f32.mrf.mxu0
        %3351 = vdwg.mxu0
        %3352 = vmatprep.subr.bf16.mxu0 %v2527
        %3353 = vmatpush1.bf16.msra.mxu0 %v2526
        %3354 = vmatprep.subr.bf16.mxu0 %v2525
        %3355 = vmatpush1.bf16.msra.mxu0 %v2524
        %3356 = vmatprep.subr.bf16.mxu0 %v2523
        %3357 = vmatpush1.bf16.msra.mxu0 %v2522
        %3358 = vmatprep.subr.bf16.mxu0 %v2521
        %3359 = vmatpush1.bf16.msra.mxu0 %v2520
        %3360 = vmatprep.subr.bf16.mxu0 %v2519
        %3361 = vmatpush1.bf16.msra.mxu0 %v2518
        %3362 = vmatprep.subr.bf16.mxu0 %v2517
        %3363 = vmatpush1.bf16.msra.mxu0 %v2516
        %3364 = vmatprep.subr.bf16.mxu0 %v2515
        %3365 = vmatpush1.bf16.msra.mxu0 %v2514
        %3366 = vmatprep.subr.bf16.mxu0 %v2513
        %3367 = vmatpush1.bf16.msra.mxu0 %v2512
        %3368 = vmatprep.subr.bf16.mxu0 %v2543
        %3369 = vmatpush2.bf16.msra.mxu0 %v2542
        %3370 = vmatprep.subr.bf16.mxu0 %v2541
        %3371 = vmatpush2.bf16.msra.mxu0 %v2540
        %3372 = vmatprep.subr.bf16.mxu0 %v2539
        %3373 = vmatpush2.bf16.msra.mxu0 %v2538
        %3374 = vmatprep.subr.bf16.mxu0 %v2537
        %3375 = vmatpush2.bf16.msra.mxu0 %v2536
        %3376 = vmatprep.subr.bf16.mxu0 %v2535
        %3377 = vmatpush2.bf16.msra.mxu0 %v2534
        %3378 = vmatprep.subr.bf16.mxu0 %v2533
        %3379 = vmatpush2.bf16.msra.mxu0 %v2532
        %3380 = vmatprep.subr.bf16.mxu0 %v2531
        %3381 = vmatpush2.bf16.msra.mxu0 %v2530
        %3382 = vmatprep.subr.bf16.mxu0 %v2529
        %3383 = vmatpush2.bf16.msra.mxu0 %v2528
        %3384 = vmatprep.mubr.bf16.mxu0 %v701
        %3385 = vmatmul.mubr.bf16.gmra.mxu0 %v700
        %v3386 = vpop.f32.mrf.mxu0
        %v3387 = vadd.f32 %v3346, %v3386
        %v3388 = vpop.f32.mrf.mxu0
        %v3389 = vadd.f32 %v3348, %v3388
        %v3390 = vpop.f32.mrf.mxu0
        %v3391 = vpop.f32.mrf.mxu0
        %3392 = vdwg.mxu0
        %3393 = vmatprep.subr.bf16.mxu0 %v2559
        %3394 = vmatpush1.bf16.msra.mxu0 %v2558
        %3395 = vmatprep.subr.bf16.mxu0 %v2557
        %3396 = vmatpush1.bf16.msra.mxu0 %v2556
        %3397 = vmatprep.subr.bf16.mxu0 %v2555
        %3398 = vmatpush1.bf16.msra.mxu0 %v2554
        %3399 = vmatprep.subr.bf16.mxu0 %v2553
        %3400 = vmatpush1.bf16.msra.mxu0 %v2552
        %3401 = vmatprep.subr.bf16.mxu0 %v2551
        %3402 = vmatpush1.bf16.msra.mxu0 %v2550
        %3403 = vmatprep.subr.bf16.mxu0 %v2549
        %3404 = vmatpush1.bf16.msra.mxu0 %v2548
        %3405 = vmatprep.subr.bf16.mxu0 %v2547
        %3406 = vmatpush1.bf16.msra.mxu0 %v2546
        %3407 = vmatprep.subr.bf16.mxu0 %v2545
        %3408 = vmatpush1.bf16.msra.mxu0 %v2544
        %3409 = vmatprep.subr.bf16.mxu0 %v2575
        %3410 = vmatpush2.bf16.msra.mxu0 %v2574
        %3411 = vmatprep.subr.bf16.mxu0 %v2573
        %3412 = vmatpush2.bf16.msra.mxu0 %v2572
        %3413 = vmatprep.subr.bf16.mxu0 %v2571
        %3414 = vmatpush2.bf16.msra.mxu0 %v2570
        %3415 = vmatprep.subr.bf16.mxu0 %v2569
        %3416 = vmatpush2.bf16.msra.mxu0 %v2568
        %3417 = vmatprep.subr.bf16.mxu0 %v2567
        %3418 = vmatpush2.bf16.msra.mxu0 %v2566
        %3419 = vmatprep.subr.bf16.mxu0 %v2565
        %3420 = vmatpush2.bf16.msra.mxu0 %v2564
        %3421 = vmatprep.subr.bf16.mxu0 %v2563
        %3422 = vmatpush2.bf16.msra.mxu0 %v2562
        %3423 = vmatprep.subr.bf16.mxu0 %v2561
        %3424 = vmatpush2.bf16.msra.mxu0 %v2560
        %3425 = vmatprep.mubr.bf16.mxu0 %v703
        %3426 = vmatmul.mubr.bf16.gmra.mxu0 %v702
        %v3427 = vpop.f32.mrf.mxu0
        %v3428 = vadd.f32 %v3387, %v3427
        %v3429 = vpop.f32.mrf.mxu0
        %v3430 = vadd.f32 %v3389, %v3429
        %v3431 = vpop.f32.mrf.mxu0
        %v3432 = vpop.f32.mrf.mxu0
        %3433 = vdwg.mxu0
        %3434 = vmatprep.subr.bf16.mxu0 %v2591
        %3435 = vmatpush1.bf16.msra.mxu0 %v2590
        %3436 = vmatprep.subr.bf16.mxu0 %v2589
        %3437 = vmatpush1.bf16.msra.mxu0 %v2588
        %3438 = vmatprep.subr.bf16.mxu0 %v2587
        %3439 = vmatpush1.bf16.msra.mxu0 %v2586
        %3440 = vmatprep.subr.bf16.mxu0 %v2585
        %3441 = vmatpush1.bf16.msra.mxu0 %v2584
        %3442 = vmatprep.subr.bf16.mxu0 %v2583
        %3443 = vmatpush1.bf16.msra.mxu0 %v2582
        %3444 = vmatprep.subr.bf16.mxu0 %v2581
        %3445 = vmatpush1.bf16.msra.mxu0 %v2580
        %3446 = vmatprep.subr.bf16.mxu0 %v2579
        %3447 = vmatpush1.bf16.msra.mxu0 %v2578
        %3448 = vmatprep.subr.bf16.mxu0 %v2577
        %3449 = vmatpush1.bf16.msra.mxu0 %v2576
        %3450 = vmatprep.subr.bf16.mxu0 %v2607
        %3451 = vmatpush2.bf16.msra.mxu0 %v2606
        %3452 = vmatprep.subr.bf16.mxu0 %v2605
        %3453 = vmatpush2.bf16.msra.mxu0 %v2604
        %3454 = vmatprep.subr.bf16.mxu0 %v2603
        %3455 = vmatpush2.bf16.msra.mxu0 %v2602
        %3456 = vmatprep.subr.bf16.mxu0 %v2601
        %3457 = vmatpush2.bf16.msra.mxu0 %v2600
        %3458 = vmatprep.subr.bf16.mxu0 %v2599
        %3459 = vmatpush2.bf16.msra.mxu0 %v2598
        %3460 = vmatprep.subr.bf16.mxu0 %v2597
        %3461 = vmatpush2.bf16.msra.mxu0 %v2596
        %3462 = vmatprep.subr.bf16.mxu0 %v2595
        %3463 = vmatpush2.bf16.msra.mxu0 %v2594
        %3464 = vmatprep.subr.bf16.mxu0 %v2593
        %3465 = vmatpush2.bf16.msra.mxu0 %v2592
        %3466 = vmatprep.mubr.bf16.mxu0 %v705
        %3467 = vmatmul.mubr.bf16.gmra.mxu0 %v704
        %v3468 = vpop.f32.mrf.mxu0
        %v3469 = vadd.f32 %v3428, %v3468
        %v3470 = vpop.f32.mrf.mxu0
        %v3471 = vadd.f32 %v3430, %v3470
        %v3472 = vpop.f32.mrf.mxu0
        %v3473 = vpop.f32.mrf.mxu0
        %3474 = vdwg.mxu0
        %3475 = vmatprep.subr.bf16.mxu0 %v2623
        %3476 = vmatpush1.bf16.msra.mxu0 %v2622
        %3477 = vmatprep.subr.bf16.mxu0 %v2621
        %3478 = vmatpush1.bf16.msra.mxu0 %v2620
        %3479 = vmatprep.subr.bf16.mxu0 %v2619
        %3480 = vmatpush1.bf16.msra.mxu0 %v2618
        %3481 = vmatprep.subr.bf16.mxu0 %v2617
        %3482 = vmatpush1.bf16.msra.mxu0 %v2616
        %3483 = vmatprep.subr.bf16.mxu0 %v2615
        %3484 = vmatpush1.bf16.msra.mxu0 %v2614
        %3485 = vmatprep.subr.bf16.mxu0 %v2613
        %3486 = vmatpush1.bf16.msra.mxu0 %v2612
        %3487 = vmatprep.subr.bf16.mxu0 %v2611
        %3488 = vmatpush1.bf16.msra.mxu0 %v2610
        %3489 = vmatprep.subr.bf16.mxu0 %v2609
        %3490 = vmatpush1.bf16.msra.mxu0 %v2608
        %3491 = vmatprep.subr.bf16.mxu0 %v2639
        %3492 = vmatpush2.bf16.msra.mxu0 %v2638
        %3493 = vmatprep.subr.bf16.mxu0 %v2637
        %3494 = vmatpush2.bf16.msra.mxu0 %v2636
        %3495 = vmatprep.subr.bf16.mxu0 %v2635
        %3496 = vmatpush2.bf16.msra.mxu0 %v2634
        %3497 = vmatprep.subr.bf16.mxu0 %v2633
        %3498 = vmatpush2.bf16.msra.mxu0 %v2632
        %3499 = vmatprep.subr.bf16.mxu0 %v2631
        %3500 = vmatpush2.bf16.msra.mxu0 %v2630
        %3501 = vmatprep.subr.bf16.mxu0 %v2629
        %3502 = vmatpush2.bf16.msra.mxu0 %v2628
        %3503 = vmatprep.subr.bf16.mxu0 %v2627
        %3504 = vmatpush2.bf16.msra.mxu0 %v2626
        %3505 = vmatprep.subr.bf16.mxu0 %v2625
        %3506 = vmatpush2.bf16.msra.mxu0 %v2624
        %3507 = vmatprep.mubr.bf16.mxu0 %v707
        %3508 = vmatmul.mubr.bf16.gmra.mxu0 %v706
        %v3509 = vpop.f32.mrf.mxu0
        %v3510 = vadd.f32 %v3469, %v3509
        %v3511 = vpop.f32.mrf.mxu0
        %v3512 = vadd.f32 %v3471, %v3511
        %v3513 = vpop.f32.mrf.mxu0
        %v3514 = vpop.f32.mrf.mxu0
        %3515 = vdwg.mxu0
        %v3516 = vmax.f32 %v3510, 0.0
        %v3517 = vmax.f32 %v3512, 0.0
        %v3518 = vpack.c.bf16 %v3516, %v3516
        %v3519 = vpack.c.bf16 %v3517, %v3517
        %v3520 = vld [vmem:[%s3] sm:$0xf]
        %v3521 = vld [vmem:[%s3 + $0x4] sm:$0xf]
        %v3522 = vld [vmem:[%s3 + $0x8] sm:$0xf]
        %v3523 = vld [vmem:[%s3 + $0xc] sm:$0xf]
        %v3524 = vld [vmem:[%s3 + $0x10] sm:$0xf]
        %v3525 = vld [vmem:[%s3 + $0x14] sm:$0xf]
        %v3526 = vld [vmem:[%s3 + $0x18] sm:$0xf]
        %v3527 = vld [vmem:[%s3 + $0x1c] sm:$0xf]
        %v3528 = vld [vmem:[%s3 + $0x20] sm:$0xf]
        %v3529 = vld [vmem:[%s3 + $0x24] sm:$0xf]
        %v3530 = vld [vmem:[%s3 + $0x28] sm:$0xf]
        %v3531 = vld [vmem:[%s3 + $0x2c] sm:$0xf]
        %v3532 = vld [vmem:[%s3 + $0x30] sm:$0xf]
        %v3533 = vld [vmem:[%s3 + $0x34] sm:$0xf]
        %v3534 = vld [vmem:[%s3 + $0x38] sm:$0xf]
        %v3535 = vld [vmem:[%s3 + $0x3c] sm:$0xf]
        %v3536 = vld [vmem:[%s3 + $0x40] sm:$0xf]
        %v3537 = vld [vmem:[%s3 + $0x44] sm:$0xf]
        %v3538 = vld [vmem:[%s3 + $0x48] sm:$0xf]
        %v3539 = vld [vmem:[%s3 + $0x4c] sm:$0xf]
        %v3540 = vld [vmem:[%s3 + $0x50] sm:$0xf]
        %v3541 = vld [vmem:[%s3 + $0x54] sm:$0xf]
        %v3542 = vld [vmem:[%s3 + $0x58] sm:$0xf]
        %v3543 = vld [vmem:[%s3 + $0x5c] sm:$0xf]
        %v3544 = vld [vmem:[%s3 + $0x60] sm:$0xf]
        %v3545 = vld [vmem:[%s3 + $0x64] sm:$0xf]
        %v3546 = vld [vmem:[%s3 + $0x68] sm:$0xf]
        %v3547 = vld [vmem:[%s3 + $0x6c] sm:$0xf]
        %v3548 = vld [vmem:[%s3 + $0x70] sm:$0xf]
        %v3549 = vld [vmem:[%s3 + $0x74] sm:$0xf]
        %v3550 = vld [vmem:[%s3 + $0x78] sm:$0xf]
        %v3551 = vld [vmem:[%s3 + $0x7c] sm:$0xf]
        %v3552 = vld [vmem:[#allocation7] sm:$0x1]
        %v3554 = vlaneseq
        %v3555 = vshrl.u32 %v3554, 7
        %v3556 = vsub.s32 0, %v3555
        %v3557 = vrot.slane %v3552, %v3556
        %v3591 = vunpack.c.l.b16 %v3520
        %v3592 = vunpack.c.l.b16 %v3521
        %v3593 = vunpack.c.l.b16 %v3522
        %v3594 = vunpack.c.l.b16 %v3523
        %v3595 = vunpack.c.l.b16 %v3524
        %v3596 = vunpack.c.l.b16 %v3525
        %v3597 = vunpack.c.l.b16 %v3526
        %v3598 = vunpack.c.l.b16 %v3527
        %v3599 = vunpack.c.l.b16 %v3528
        %v3600 = vunpack.c.l.b16 %v3529
        %v3601 = vunpack.c.l.b16 %v3530
        %v3602 = vunpack.c.l.b16 %v3531
        %v3603 = vunpack.c.l.b16 %v3532
        %v3604 = vunpack.c.l.b16 %v3533
        %v3605 = vunpack.c.l.b16 %v3534
        %v3606 = vunpack.c.l.b16 %v3535
        %v3607 = vunpack.c.l.b16 %v3536
        %v3608 = vunpack.c.l.b16 %v3537
        %v3609 = vunpack.c.l.b16 %v3538
        %v3610 = vunpack.c.l.b16 %v3539
        %v3611 = vunpack.c.l.b16 %v3540
        %v3612 = vunpack.c.l.b16 %v3541
        %v3613 = vunpack.c.l.b16 %v3542
        %v3614 = vunpack.c.l.b16 %v3543
        %v3615 = vunpack.c.l.b16 %v3544
        %v3616 = vunpack.c.l.b16 %v3545
        %v3617 = vunpack.c.l.b16 %v3546
        %v3618 = vunpack.c.l.b16 %v3547
        %v3619 = vunpack.c.l.b16 %v3548
        %v3620 = vunpack.c.l.b16 %v3549
        %v3621 = vunpack.c.l.b16 %v3550
        %v3622 = vunpack.c.l.b16 %v3551
        %v3623 = vpack.c.b16 %v3592, %v3591
        %v3624 = vpack.c.b16 %v3594, %v3593
        %v3625 = vpack.c.b16 %v3596, %v3595
        %v3626 = vpack.c.b16 %v3598, %v3597
        %v3627 = vpack.c.b16 %v3600, %v3599
        %v3628 = vpack.c.b16 %v3602, %v3601
        %v3629 = vpack.c.b16 %v3604, %v3603
        %v3630 = vpack.c.b16 %v3606, %v3605
        %v3631 = vpack.c.b16 %v3608, %v3607
        %v3632 = vpack.c.b16 %v3610, %v3609
        %v3633 = vpack.c.b16 %v3612, %v3611
        %v3634 = vpack.c.b16 %v3614, %v3613
        %v3635 = vpack.c.b16 %v3616, %v3615
        %v3636 = vpack.c.b16 %v3618, %v3617
        %v3637 = vpack.c.b16 %v3620, %v3619
        %v3638 = vpack.c.b16 %v3622, %v3621
        %3655 = vmatprep.subr.bf16.mxu0 0
        %3656 = vmatpush1.bf16.msra.mxu0 %v3630
        %3657 = vmatprep.subr.bf16.mxu0 0
        %3658 = vmatpush1.bf16.msra.mxu0 %v3629
        %3659 = vmatprep.subr.bf16.mxu0 0
        %3660 = vmatpush1.bf16.msra.mxu0 %v3628
        %3661 = vmatprep.subr.bf16.mxu0 0
        %3662 = vmatpush1.bf16.msra.mxu0 %v3627
        %3663 = vmatprep.subr.bf16.mxu0 0
        %3664 = vmatpush1.bf16.msra.mxu0 %v3626
        %3665 = vmatprep.subr.bf16.mxu0 0
        %3666 = vmatpush1.bf16.msra.mxu0 %v3625
        %3667 = vmatprep.subr.bf16.mxu0 0
        %3668 = vmatpush1.bf16.msra.mxu0 %v3624
        %3669 = vmatprep.subr.bf16.mxu0 0
        %3670 = vmatpush1.bf16.msra.mxu0 %v3623
        %3671 = vmatprep.subr.bf16.mxu0 0
        %3672 = vmatpush2.bf16.msra.mxu0 %v3638
        %3673 = vmatprep.subr.bf16.mxu0 0
        %3674 = vmatpush2.bf16.msra.mxu0 %v3637
        %3675 = vmatprep.subr.bf16.mxu0 0
        %3676 = vmatpush2.bf16.msra.mxu0 %v3636
        %3677 = vmatprep.subr.bf16.mxu0 0
        %3678 = vmatpush2.bf16.msra.mxu0 %v3635
        %3679 = vmatprep.subr.bf16.mxu0 0
        %3680 = vmatpush2.bf16.msra.mxu0 %v3634
        %3681 = vmatprep.subr.bf16.mxu0 0
        %3682 = vmatpush2.bf16.msra.mxu0 %v3633
        %3683 = vmatprep.subr.bf16.mxu0 0
        %3684 = vmatpush2.bf16.msra.mxu0 %v3632
        %3685 = vmatprep.subr.bf16.mxu0 0
        %3686 = vmatpush2.bf16.msra.mxu0 %v3631
        %3687 = vmatprep.mubr.bf16.mxu0 %v3519
        %3688 = vmatmul.mubr.bf16.gmra.mxu0 %v3518
        %v3689 = vpop.f32.mrf.mxu0
        %v3690 = vadd.f32 %v3557, %v3689
        %v3691 = vpop.f32.mrf.mxu0
        %v3692 = vpop.f32.mrf.mxu0
        %v3693 = vpop.f32.mrf.mxu0
        %3694 = vdwg.mxu0
        %vm3695 = vcmask 254976
        %3696 = vst.msk [vmem:[%s10] sm:$0x3] %vm3695, %v3690
        %v3697 = vmul.f32 %v3690, 0.5
        %v3698 = vmul.f32 %v3697, 1.442695
        %v3699 = vpow.pop %v3698
        %v3701 = vrot.slane %v3690, 6
        %v3703 = vrot.slane %v3690, 4
        %v3705 = vrot.slane %v3690, 2
        %vm3707 = vcmask 1041408
        %v3708 = vsel %vm3707, %v3690, %v3701
        %vm3709 = vcmask 1043456
        %v3710 = vsel %vm3709, %v3708, %v3703
        %vm3711 = vcmask 1045504
        %v3712 = vsel %vm3711, %v3710, %v3705
        %v3714 = vrot.slane %v3699, 6
        %v3716 = vrot.slane %v3699, 4
        %v3718 = vrot.slane %v3699, 2
        %v3720 = vsel %vm3707, %v3699, %v3714
        %v3721 = vsel %vm3709, %v3720, %v3716
        %v3722 = vsel %vm3711, %v3721, %v3718
        %v3723 = vld [vmem:[#allocation8] sm:$0xff]
        %3725 = vrot.lane.b32.xlu0 %v3722, 112
        %v3726 = vpop.permute.xlu0 %3725
        %v3728 = vmul.f32 %v3723, %v3726
        %v3729 = vadd.f32 %v3712, %v3728
        %vm3730 = vcmask 130048
        %3731 = vst.msk [vmem:[#allocation15] sm:$0xff] %vm3730, %v3729
        %v3732 = vpack.c.bf16 %v3729, %v3729
        %v3733 = vld [vmem:[#allocation10] sm:$0xff]
        %v3734 = vld [vmem:[#allocation10 + $0x8] sm:$0xff]
        %v3735 = vld [vmem:[#allocation11] sm:$0x3]
        %v3737 = vlaneseq
        %v3738 = vshrl.u32 %v3737, 7
        %v3739 = vsub.s32 0, %v3738
        %v3740 = vrot.slane %v3735, %v3739
        %v3741 = vlaneseq
        %v3742 = vshrl.u32 %v3741, 7
        %v3743 = vsub.s32 1, %v3742
        %v3744 = vrot.slane %v3735, %v3743
        %v3749 = vunpack.c.l.b16 %v3733
        %v3750 = vunpack.c.h.b16 %v3733
        %v3751 = vunpack.c.l.b16 %v3734
        %v3752 = vunpack.c.h.b16 %v3734
        %v3753 = vpack.c.b16 %v3751, %v3749
        %v3754 = vpack.c.b16 %v3752, %v3750
        %v3758 = vsel %vm3730, %v3732, 0
        %3760 = vmatprep.subr.bf16.mxu0 0
        %3761 = vmatpush1.bf16.msra.mxu0 0
        %3762 = vmatprep.subr.bf16.mxu0 0
        %3763 = vmatpush1.bf16.msra.mxu0 0
        %3764 = vmatprep.subr.bf16.mxu0 0
        %3765 = vmatpush1.bf16.msra.mxu0 0
        %3766 = vmatprep.subr.bf16.mxu0 0
        %3767 = vmatpush1.bf16.msra.mxu0 0
        %3768 = vmatprep.subr.bf16.mxu0 0
        %3769 = vmatpush1.bf16.msra.mxu0 0
        %3770 = vmatprep.subr.bf16.mxu0 0
        %3771 = vmatpush1.bf16.msra.mxu0 0
        %3772 = vmatprep.subr.bf16.mxu0 0
        %3773 = vmatpush1.bf16.msra.mxu0 0
        %3774 = vmatprep.subr.bf16.mxu0 %v3754
        %3775 = vmatpush1.bf16.msra.mxu0 %v3753
        %3776 = vmatprep.subr.bf16.mxu0 0
        %3777 = vmatpush2.bf16.msra.mxu0 0
        %3778 = vmatprep.subr.bf16.mxu0 0
        %3779 = vmatpush2.bf16.msra.mxu0 0
        %3780 = vmatprep.subr.bf16.mxu0 0
        %3781 = vmatpush2.bf16.msra.mxu0 0
        %3782 = vmatprep.subr.bf16.mxu0 0
        %3783 = vmatpush2.bf16.msra.mxu0 0
        %3784 = vmatprep.subr.bf16.mxu0 0
        %3785 = vmatpush2.bf16.msra.mxu0 0
        %3786 = vmatprep.subr.bf16.mxu0 0
        %3787 = vmatpush2.bf16.msra.mxu0 0
        %3788 = vmatprep.subr.bf16.mxu0 0
        %3789 = vmatpush2.bf16.msra.mxu0 0
        %3790 = vmatprep.subr.bf16.mxu0 0
        %3791 = vmatpush2.bf16.msra.mxu0 0
        %3792 = vmatprep.mubr.bf16.mxu0 0
        %3793 = vmatmul.mubr.bf16.gmra.mxu0 %v3758
        %v3794 = vpop.f32.mrf.mxu0
        %v3795 = vadd.f32 %v3740, %v3794
        %v3796 = vpop.f32.mrf.mxu0
        %v3797 = vadd.f32 %v3744, %v3796
        %v3798 = vpop.f32.mrf.mxu0
        %v3799 = vpop.f32.mrf.mxu0
        %3800 = vdwg.mxu0
        %v3801 = vmax.f32 %v3795, 0.0
        %v3802 = vmax.f32 %v3797, 0.0
        %v3803 = vpack.c.bf16 %v3801, %v3801
        %v3804 = vpack.c.bf16 %v3802, %v3802
        %v3805 = vld [vmem:[%s482] sm:$0xff]
        %v3806 = vld [vmem:[%s482 + $0x8] sm:$0xff]
        %v3807 = vld [vmem:[%s482 + $0x10] sm:$0xff]
        %v3808 = vld [vmem:[%s482 + $0x18] sm:$0xff]
        %v3809 = vld [vmem:[%s482 + $0x20] sm:$0xff]
        %v3810 = vld [vmem:[%s482 + $0x28] sm:$0xff]
        %v3811 = vld [vmem:[%s482 + $0x30] sm:$0xff]
        %v3812 = vld [vmem:[%s482 + $0x38] sm:$0xff]
        %v3813 = vld [vmem:[%s482 + $0x40] sm:$0xff]
        %v3814 = vld [vmem:[%s482 + $0x48] sm:$0xff]
        %v3815 = vld [vmem:[%s482 + $0x50] sm:$0xff]
        %v3816 = vld [vmem:[%s482 + $0x58] sm:$0xff]
        %v3817 = vld [vmem:[%s482 + $0x60] sm:$0xff]
        %v3818 = vld [vmem:[%s482 + $0x68] sm:$0xff]
        %v3819 = vld [vmem:[%s482 + $0x70] sm:$0xff]
        %v3820 = vld [vmem:[%s482 + $0x78] sm:$0xff]
        %v3821 = vld [vmem:[%s482 + $0x80] sm:$0xff]
        %v3822 = vld [vmem:[%s482 + $0x88] sm:$0xff]
        %v3823 = vld [vmem:[%s482 + $0x90] sm:$0xff]
        %v3824 = vld [vmem:[%s482 + $0x98] sm:$0xff]
        %v3825 = vld [vmem:[%s482 + $0xa0] sm:$0xff]
        %v3826 = vld [vmem:[%s482 + $0xa8] sm:$0xff]
        %v3827 = vld [vmem:[%s482 + $0xb0] sm:$0xff]
        %v3828 = vld [vmem:[%s482 + $0xb8] sm:$0xff]
        %v3829 = vld [vmem:[%s482 + $0xc0] sm:$0xff]
        %v3830 = vld [vmem:[%s482 + $0xc8] sm:$0xff]
        %v3831 = vld [vmem:[%s482 + $0xd0] sm:$0xff]
        %v3832 = vld [vmem:[%s482 + $0xd8] sm:$0xff]
        %v3833 = vld [vmem:[%s482 + $0xe0] sm:$0xff]
        %v3834 = vld [vmem:[%s482 + $0xe8] sm:$0xff]
        %v3835 = vld [vmem:[%s482 + $0xf0] sm:$0xff]
        %v3836 = vld [vmem:[%s482 + $0xf8] sm:$0xff]
        %v3837 = vld [vmem:[%s482 + $0x100] sm:$0xff]
        %v3838 = vld [vmem:[%s482 + $0x108] sm:$0xff]
        %v3839 = vld [vmem:[%s482 + $0x110] sm:$0xff]
        %v3840 = vld [vmem:[%s482 + $0x118] sm:$0xff]
        %v3841 = vld [vmem:[%s482 + $0x120] sm:$0xff]
        %v3842 = vld [vmem:[%s482 + $0x128] sm:$0xff]
        %v3843 = vld [vmem:[%s482 + $0x130] sm:$0xff]
        %v3844 = vld [vmem:[%s482 + $0x138] sm:$0xff]
        %v3845 = vld [vmem:[%s482 + $0x140] sm:$0xff]
        %v3846 = vld [vmem:[%s482 + $0x148] sm:$0xff]
        %v3847 = vld [vmem:[%s482 + $0x150] sm:$0xff]
        %v3848 = vld [vmem:[%s482 + $0x158] sm:$0xff]
        %v3849 = vld [vmem:[%s482 + $0x160] sm:$0xff]
        %v3850 = vld [vmem:[%s482 + $0x168] sm:$0xff]
        %v3851 = vld [vmem:[%s482 + $0x170] sm:$0xff]
        %v3852 = vld [vmem:[%s482 + $0x178] sm:$0xff]
        %v3853 = vld [vmem:[%s482 + $0x180] sm:$0xff]
        %v3854 = vld [vmem:[%s482 + $0x188] sm:$0xff]
        %v3855 = vld [vmem:[%s482 + $0x190] sm:$0xff]
        %v3856 = vld [vmem:[%s482 + $0x198] sm:$0xff]
        %v3857 = vld [vmem:[%s482 + $0x1a0] sm:$0xff]
        %v3858 = vld [vmem:[%s482 + $0x1a8] sm:$0xff]
        %v3859 = vld [vmem:[%s482 + $0x1b0] sm:$0xff]
        %v3860 = vld [vmem:[%s482 + $0x1b8] sm:$0xff]
        %v3861 = vld [vmem:[%s482 + $0x1c0] sm:$0xff]
        %v3862 = vld [vmem:[%s482 + $0x1c8] sm:$0xff]
        %v3863 = vld [vmem:[%s482 + $0x1d0] sm:$0xff]
        %v3864 = vld [vmem:[%s482 + $0x1d8] sm:$0xff]
        %v3865 = vld [vmem:[%s482 + $0x1e0] sm:$0xff]
        %v3866 = vld [vmem:[%s482 + $0x1e8] sm:$0xff]
        %v3867 = vld [vmem:[%s482 + $0x1f0] sm:$0xff]
        %v3868 = vld [vmem:[%s482 + $0x1f8] sm:$0xff]
        %v3869 = vld [vmem:[%s482 + $0x200] sm:$0xff]
        %v3870 = vld [vmem:[%s482 + $0x208] sm:$0xff]
        %v3871 = vld [vmem:[%s482 + $0x210] sm:$0xff]
        %v3872 = vld [vmem:[%s482 + $0x218] sm:$0xff]
        %v3873 = vld [vmem:[%s482 + $0x220] sm:$0xff]
        %v3874 = vld [vmem:[%s482 + $0x228] sm:$0xff]
        %v3875 = vld [vmem:[%s482 + $0x230] sm:$0xff]
        %v3876 = vld [vmem:[%s482 + $0x238] sm:$0xff]
        %v3877 = vld [vmem:[%s482 + $0x240] sm:$0xff]
        %v3878 = vld [vmem:[%s482 + $0x248] sm:$0xff]
        %v3879 = vld [vmem:[%s482 + $0x250] sm:$0xff]
        %v3880 = vld [vmem:[%s482 + $0x258] sm:$0xff]
        %v3881 = vld [vmem:[%s482 + $0x260] sm:$0xff]
        %v3882 = vld [vmem:[%s482 + $0x268] sm:$0xff]
        %v3883 = vld [vmem:[%s482 + $0x270] sm:$0xff]
        %v3884 = vld [vmem:[%s482 + $0x278] sm:$0xff]
        %v3885 = vld [vmem:[%s482 + $0x280] sm:$0xff]
        %v3886 = vld [vmem:[%s482 + $0x288] sm:$0xff]
        %v3887 = vld [vmem:[%s482 + $0x290] sm:$0xff]
        %v3888 = vld [vmem:[%s482 + $0x298] sm:$0xff]
        %v3889 = vld [vmem:[%s482 + $0x2a0] sm:$0xff]
        %v3890 = vld [vmem:[%s482 + $0x2a8] sm:$0xff]
        %v3891 = vld [vmem:[%s482 + $0x2b0] sm:$0xff]
        %v3892 = vld [vmem:[%s482 + $0x2b8] sm:$0xff]
        %v3893 = vld [vmem:[%s482 + $0x2c0] sm:$0xff]
        %v3894 = vld [vmem:[%s482 + $0x2c8] sm:$0xff]
        %v3895 = vld [vmem:[%s482 + $0x2d0] sm:$0xff]
        %v3896 = vld [vmem:[%s482 + $0x2d8] sm:$0xff]
        %v3897 = vld [vmem:[%s482 + $0x2e0] sm:$0xff]
        %v3898 = vld [vmem:[%s482 + $0x2e8] sm:$0xff]
        %v3899 = vld [vmem:[%s482 + $0x2f0] sm:$0xff]
        %v3900 = vld [vmem:[%s482 + $0x2f8] sm:$0xff]
        %v3901 = vld [vmem:[%s482 + $0x300] sm:$0xff]
        %v3902 = vld [vmem:[%s482 + $0x308] sm:$0xff]
        %v3903 = vld [vmem:[%s482 + $0x310] sm:$0xff]
        %v3904 = vld [vmem:[%s482 + $0x318] sm:$0xff]
        %v3905 = vld [vmem:[%s482 + $0x320] sm:$0xff]
        %v3906 = vld [vmem:[%s482 + $0x328] sm:$0xff]
        %v3907 = vld [vmem:[%s482 + $0x330] sm:$0xff]
        %v3908 = vld [vmem:[%s482 + $0x338] sm:$0xff]
        %v3909 = vld [vmem:[%s482 + $0x340] sm:$0xff]
        %v3910 = vld [vmem:[%s482 + $0x348] sm:$0xff]
        %v3911 = vld [vmem:[%s482 + $0x350] sm:$0xff]
        %v3912 = vld [vmem:[%s482 + $0x358] sm:$0xff]
        %v3913 = vld [vmem:[%s482 + $0x360] sm:$0xff]
        %v3914 = vld [vmem:[%s482 + $0x368] sm:$0xff]
        %v3915 = vld [vmem:[%s482 + $0x370] sm:$0xff]
        %v3916 = vld [vmem:[%s482 + $0x378] sm:$0xff]
        %v3917 = vld [vmem:[%s482 + $0x380] sm:$0xff]
        %v3918 = vld [vmem:[%s482 + $0x388] sm:$0xff]
        %v3919 = vld [vmem:[%s482 + $0x390] sm:$0xff]
        %v3920 = vld [vmem:[%s482 + $0x398] sm:$0xff]
        %v3921 = vld [vmem:[%s482 + $0x3a0] sm:$0xff]
        %v3922 = vld [vmem:[%s482 + $0x3a8] sm:$0xff]
        %v3923 = vld [vmem:[%s482 + $0x3b0] sm:$0xff]
        %v3924 = vld [vmem:[%s482 + $0x3b8] sm:$0xff]
        %v3925 = vld [vmem:[%s482 + $0x3c0] sm:$0xff]
        %v3926 = vld [vmem:[%s482 + $0x3c8] sm:$0xff]
        %v3927 = vld [vmem:[%s482 + $0x3d0] sm:$0xff]
        %v3928 = vld [vmem:[%s482 + $0x3d8] sm:$0xff]
        %v3929 = vld [vmem:[%s482 + $0x3e0] sm:$0xff]
        %v3930 = vld [vmem:[%s482 + $0x3e8] sm:$0xff]
        %v3931 = vld [vmem:[%s482 + $0x3f0] sm:$0xff]
        %v3932 = vld [vmem:[%s482 + $0x3f8] sm:$0xff]
        %v3933 = vld [vmem:[%s482 + $0x400] sm:$0xff]
        %v3934 = vld [vmem:[%s482 + $0x408] sm:$0xff]
        %v3935 = vld [vmem:[%s482 + $0x410] sm:$0xff]
        %v3936 = vld [vmem:[%s482 + $0x418] sm:$0xff]
        %v3937 = vld [vmem:[%s482 + $0x420] sm:$0xff]
        %v3938 = vld [vmem:[%s482 + $0x428] sm:$0xff]
        %v3939 = vld [vmem:[%s482 + $0x430] sm:$0xff]
        %v3940 = vld [vmem:[%s482 + $0x438] sm:$0xff]
        %v3941 = vld [vmem:[%s482 + $0x440] sm:$0xff]
        %v3942 = vld [vmem:[%s482 + $0x448] sm:$0xff]
        %v3943 = vld [vmem:[%s482 + $0x450] sm:$0xff]
        %v3944 = vld [vmem:[%s482 + $0x458] sm:$0xff]
        %v3945 = vld [vmem:[%s482 + $0x460] sm:$0xff]
        %v3946 = vld [vmem:[%s482 + $0x468] sm:$0xff]
        %v3947 = vld [vmem:[%s482 + $0x470] sm:$0xff]
        %v3948 = vld [vmem:[%s482 + $0x478] sm:$0xff]
        %v3949 = vld [vmem:[%s482 + $0x480] sm:$0xff]
        %v3950 = vld [vmem:[%s482 + $0x488] sm:$0xff]
        %v3951 = vld [vmem:[%s482 + $0x490] sm:$0xff]
        %v3952 = vld [vmem:[%s482 + $0x498] sm:$0xff]
        %v3953 = vld [vmem:[%s482 + $0x4a0] sm:$0xff]
        %v3954 = vld [vmem:[%s482 + $0x4a8] sm:$0xff]
        %v3955 = vld [vmem:[%s482 + $0x4b0] sm:$0xff]
        %v3956 = vld [vmem:[%s482 + $0x4b8] sm:$0xff]
        %v3957 = vld [vmem:[%s482 + $0x4c0] sm:$0xff]
        %v3958 = vld [vmem:[%s482 + $0x4c8] sm:$0xff]
        %v3959 = vld [vmem:[%s482 + $0x4d0] sm:$0xff]
        %v3960 = vld [vmem:[%s482 + $0x4d8] sm:$0xff]
        %v3961 = vld [vmem:[%s482 + $0x4e0] sm:$0xff]
        %v3962 = vld [vmem:[%s482 + $0x4e8] sm:$0xff]
        %v3963 = vld [vmem:[%s482 + $0x4f0] sm:$0xff]
        %v3964 = vld [vmem:[%s482 + $0x4f8] sm:$0xff]
        %v3965 = vld [vmem:[%s482 + $0x500] sm:$0xff]
        %v3966 = vld [vmem:[%s482 + $0x508] sm:$0xff]
        %v3967 = vld [vmem:[%s482 + $0x510] sm:$0xff]
        %v3968 = vld [vmem:[%s482 + $0x518] sm:$0xff]
        %v3969 = vld [vmem:[%s482 + $0x520] sm:$0xff]
        %v3970 = vld [vmem:[%s482 + $0x528] sm:$0xff]
        %v3971 = vld [vmem:[%s482 + $0x530] sm:$0xff]
        %v3972 = vld [vmem:[%s482 + $0x538] sm:$0xff]
        %v3973 = vld [vmem:[%s482 + $0x540] sm:$0xff]
        %v3974 = vld [vmem:[%s482 + $0x548] sm:$0xff]
        %v3975 = vld [vmem:[%s482 + $0x550] sm:$0xff]
        %v3976 = vld [vmem:[%s482 + $0x558] sm:$0xff]
        %v3977 = vld [vmem:[%s482 + $0x560] sm:$0xff]
        %v3978 = vld [vmem:[%s482 + $0x568] sm:$0xff]
        %v3979 = vld [vmem:[%s482 + $0x570] sm:$0xff]
        %v3980 = vld [vmem:[%s482 + $0x578] sm:$0xff]
        %v3981 = vld [vmem:[%s482 + $0x580] sm:$0xff]
        %v3982 = vld [vmem:[%s482 + $0x588] sm:$0xff]
        %v3983 = vld [vmem:[%s482 + $0x590] sm:$0xff]
        %v3984 = vld [vmem:[%s482 + $0x598] sm:$0xff]
        %v3985 = vld [vmem:[%s482 + $0x5a0] sm:$0xff]
        %v3986 = vld [vmem:[%s482 + $0x5a8] sm:$0xff]
        %v3987 = vld [vmem:[%s482 + $0x5b0] sm:$0xff]
        %v3988 = vld [vmem:[%s482 + $0x5b8] sm:$0xff]
        %v3989 = vld [vmem:[%s482 + $0x5c0] sm:$0xff]
        %v3990 = vld [vmem:[%s482 + $0x5c8] sm:$0xff]
        %v3991 = vld [vmem:[%s482 + $0x5d0] sm:$0xff]
        %v3992 = vld [vmem:[%s482 + $0x5d8] sm:$0xff]
        %v3993 = vld [vmem:[%s482 + $0x5e0] sm:$0xff]
        %v3994 = vld [vmem:[%s482 + $0x5e8] sm:$0xff]
        %v3995 = vld [vmem:[%s482 + $0x5f0] sm:$0xff]
        %v3996 = vld [vmem:[%s482 + $0x5f8] sm:$0xff]
        %v3997 = vld [vmem:[%s491] sm:$0xff]
        %v3998 = vld [vmem:[%s491 + $0x8] sm:$0xf]
        %v4001 = vlaneseq
        %v4002 = vshrl.u32 %v4001, 7
        %v4003 = vsub.s32 0, %v4002
        %v4004 = vrot.slane %v3997, %v4003
        %v4005 = vlaneseq
        %v4006 = vshrl.u32 %v4005, 7
        %v4007 = vsub.s32 1, %v4006
        %v4008 = vrot.slane %v3997, %v4007
        %v4009 = vlaneseq
        %v4010 = vshrl.u32 %v4009, 7
        %v4011 = vsub.s32 2, %v4010
        %v4012 = vrot.slane %v3997, %v4011
        %v4013 = vlaneseq
        %v4014 = vshrl.u32 %v4013, 7
        %v4015 = vsub.s32 3, %v4014
        %v4016 = vrot.slane %v3997, %v4015
        %v4017 = vlaneseq
        %v4018 = vshrl.u32 %v4017, 7
        %v4019 = vsub.s32 4, %v4018
        %v4020 = vrot.slane %v3997, %v4019
        %v4021 = vlaneseq
        %v4022 = vshrl.u32 %v4021, 7
        %v4023 = vsub.s32 5, %v4022
        %v4024 = vrot.slane %v3997, %v4023
        %v4025 = vlaneseq
        %v4026 = vshrl.u32 %v4025, 7
        %v4027 = vsub.s32 6, %v4026
        %v4028 = vrot.slane %v3997, %v4027
        %v4029 = vlaneseq
        %v4030 = vshrl.u32 %v4029, 7
        %v4031 = vsub.s32 7, %v4030
        %v4032 = vrot.slane %v3997, %v4031
        %v4033 = vlaneseq
        %v4034 = vshrl.u32 %v4033, 7
        %v4035 = vsub.s32 0, %v4034
        %v4036 = vrot.slane %v3998, %v4035
        %v4037 = vlaneseq
        %v4038 = vshrl.u32 %v4037, 7
        %v4039 = vsub.s32 1, %v4038
        %v4040 = vrot.slane %v3998, %v4039
        %v4041 = vlaneseq
        %v4042 = vshrl.u32 %v4041, 7
        %v4043 = vsub.s32 2, %v4042
        %v4044 = vrot.slane %v3998, %v4043
        %v4045 = vlaneseq
        %v4046 = vshrl.u32 %v4045, 7
        %v4047 = vsub.s32 3, %v4046
        %v4048 = vrot.slane %v3998, %v4047
        %v4253 = vunpack.c.l.b16 %v3805
        %v4254 = vunpack.c.h.b16 %v3805
        %v4255 = vunpack.c.l.b16 %v3806
        %v4256 = vunpack.c.h.b16 %v3806
        %v4257 = vunpack.c.l.b16 %v3807
        %v4258 = vunpack.c.h.b16 %v3807
        %v4259 = vunpack.c.l.b16 %v3808
        %v4260 = vunpack.c.h.b16 %v3808
        %v4261 = vunpack.c.l.b16 %v3809
        %v4262 = vunpack.c.h.b16 %v3809
        %v4263 = vunpack.c.l.b16 %v3810
        %v4264 = vunpack.c.h.b16 %v3810
        %v4265 = vunpack.c.l.b16 %v3811
        %v4266 = vunpack.c.h.b16 %v3811
        %v4267 = vunpack.c.l.b16 %v3812
        %v4268 = vunpack.c.h.b16 %v3812
        %v4269 = vunpack.c.l.b16 %v3813
        %v4270 = vunpack.c.h.b16 %v3813
        %v4271 = vunpack.c.l.b16 %v3814
        %v4272 = vunpack.c.h.b16 %v3814
        %v4273 = vunpack.c.l.b16 %v3815
        %v4274 = vunpack.c.h.b16 %v3815
        %v4275 = vunpack.c.l.b16 %v3816
        %v4276 = vunpack.c.h.b16 %v3816
        %v4277 = vunpack.c.l.b16 %v3817
        %v4278 = vunpack.c.h.b16 %v3817
        %v4279 = vunpack.c.l.b16 %v3818
        %v4280 = vunpack.c.h.b16 %v3818
        %v4281 = vunpack.c.l.b16 %v3819
        %v4282 = vunpack.c.h.b16 %v3819
        %v4283 = vunpack.c.l.b16 %v3820
        %v4284 = vunpack.c.h.b16 %v3820
        %v4285 = vunpack.c.l.b16 %v3821
        %v4286 = vunpack.c.h.b16 %v3821
        %v4287 = vunpack.c.l.b16 %v3822
        %v4288 = vunpack.c.h.b16 %v3822
        %v4289 = vunpack.c.l.b16 %v3823
        %v4290 = vunpack.c.h.b16 %v3823
        %v4291 = vunpack.c.l.b16 %v3824
        %v4292 = vunpack.c.h.b16 %v3824
        %v4293 = vunpack.c.l.b16 %v3825
        %v4294 = vunpack.c.h.b16 %v3825
        %v4295 = vunpack.c.l.b16 %v3826
        %v4296 = vunpack.c.h.b16 %v3826
        %v4297 = vunpack.c.l.b16 %v3827
        %v4298 = vunpack.c.h.b16 %v3827
        %v4299 = vunpack.c.l.b16 %v3828
        %v4300 = vunpack.c.h.b16 %v3828
        %v4301 = vunpack.c.l.b16 %v3829
        %v4302 = vunpack.c.h.b16 %v3829
        %v4303 = vunpack.c.l.b16 %v3830
        %v4304 = vunpack.c.h.b16 %v3830
        %v4305 = vunpack.c.l.b16 %v3831
        %v4306 = vunpack.c.h.b16 %v3831
        %v4307 = vunpack.c.l.b16 %v3832
        %v4308 = vunpack.c.h.b16 %v3832
        %v4309 = vunpack.c.l.b16 %v3833
        %v4310 = vunpack.c.h.b16 %v3833
        %v4311 = vunpack.c.l.b16 %v3834
        %v4312 = vunpack.c.h.b16 %v3834
        %v4313 = vunpack.c.l.b16 %v3835
        %v4314 = vunpack.c.h.b16 %v3835
        %v4315 = vunpack.c.l.b16 %v3836
        %v4316 = vunpack.c.h.b16 %v3836
        %v4317 = vunpack.c.l.b16 %v3837
        %v4318 = vunpack.c.h.b16 %v3837
        %v4319 = vunpack.c.l.b16 %v3838
        %v4320 = vunpack.c.h.b16 %v3838
        %v4321 = vunpack.c.l.b16 %v3839
        %v4322 = vunpack.c.h.b16 %v3839
        %v4323 = vunpack.c.l.b16 %v3840
        %v4324 = vunpack.c.h.b16 %v3840
        %v4325 = vunpack.c.l.b16 %v3841
        %v4326 = vunpack.c.h.b16 %v3841
        %v4327 = vunpack.c.l.b16 %v3842
        %v4328 = vunpack.c.h.b16 %v3842
        %v4329 = vunpack.c.l.b16 %v3843
        %v4330 = vunpack.c.h.b16 %v3843
        %v4331 = vunpack.c.l.b16 %v3844
        %v4332 = vunpack.c.h.b16 %v3844
        %v4333 = vunpack.c.l.b16 %v3845
        %v4334 = vunpack.c.h.b16 %v3845
        %v4335 = vunpack.c.l.b16 %v3846
        %v4336 = vunpack.c.h.b16 %v3846
        %v4337 = vunpack.c.l.b16 %v3847
        %v4338 = vunpack.c.h.b16 %v3847
        %v4339 = vunpack.c.l.b16 %v3848
        %v4340 = vunpack.c.h.b16 %v3848
        %v4341 = vunpack.c.l.b16 %v3849
        %v4342 = vunpack.c.h.b16 %v3849
        %v4343 = vunpack.c.l.b16 %v3850
        %v4344 = vunpack.c.h.b16 %v3850
        %v4345 = vunpack.c.l.b16 %v3851
        %v4346 = vunpack.c.h.b16 %v3851
        %v4347 = vunpack.c.l.b16 %v3852
        %v4348 = vunpack.c.h.b16 %v3852
        %v4349 = vunpack.c.l.b16 %v3853
        %v4350 = vunpack.c.h.b16 %v3853
        %v4351 = vunpack.c.l.b16 %v3854
        %v4352 = vunpack.c.h.b16 %v3854
        %v4353 = vunpack.c.l.b16 %v3855
        %v4354 = vunpack.c.h.b16 %v3855
        %v4355 = vunpack.c.l.b16 %v3856
        %v4356 = vunpack.c.h.b16 %v3856
        %v4357 = vunpack.c.l.b16 %v3857
        %v4358 = vunpack.c.h.b16 %v3857
        %v4359 = vunpack.c.l.b16 %v3858
        %v4360 = vunpack.c.h.b16 %v3858
        %v4361 = vunpack.c.l.b16 %v3859
        %v4362 = vunpack.c.h.b16 %v3859
        %v4363 = vunpack.c.l.b16 %v3860
        %v4364 = vunpack.c.h.b16 %v3860
        %v4365 = vunpack.c.l.b16 %v3861
        %v4366 = vunpack.c.h.b16 %v3861
        %v4367 = vunpack.c.l.b16 %v3862
        %v4368 = vunpack.c.h.b16 %v3862
        %v4369 = vunpack.c.l.b16 %v3863
        %v4370 = vunpack.c.h.b16 %v3863
        %v4371 = vunpack.c.l.b16 %v3864
        %v4372 = vunpack.c.h.b16 %v3864
        %v4373 = vunpack.c.l.b16 %v3865
        %v4374 = vunpack.c.h.b16 %v3865
        %v4375 = vunpack.c.l.b16 %v3866
        %v4376 = vunpack.c.h.b16 %v3866
        %v4377 = vunpack.c.l.b16 %v3867
        %v4378 = vunpack.c.h.b16 %v3867
        %v4379 = vunpack.c.l.b16 %v3868
        %v4380 = vunpack.c.h.b16 %v3868
        %v4381 = vunpack.c.l.b16 %v3869
        %v4382 = vunpack.c.h.b16 %v3869
        %v4383 = vunpack.c.l.b16 %v3870
        %v4384 = vunpack.c.h.b16 %v3870
        %v4385 = vunpack.c.l.b16 %v3871
        %v4386 = vunpack.c.h.b16 %v3871
        %v4387 = vunpack.c.l.b16 %v3872
        %v4388 = vunpack.c.h.b16 %v3872
        %v4389 = vunpack.c.l.b16 %v3873
        %v4390 = vunpack.c.h.b16 %v3873
        %v4391 = vunpack.c.l.b16 %v3874
        %v4392 = vunpack.c.h.b16 %v3874
        %v4393 = vunpack.c.l.b16 %v3875
        %v4394 = vunpack.c.h.b16 %v3875
        %v4395 = vunpack.c.l.b16 %v3876
        %v4396 = vunpack.c.h.b16 %v3876
        %v4397 = vunpack.c.l.b16 %v3877
        %v4398 = vunpack.c.h.b16 %v3877
        %v4399 = vunpack.c.l.b16 %v3878
        %v4400 = vunpack.c.h.b16 %v3878
        %v4401 = vunpack.c.l.b16 %v3879
        %v4402 = vunpack.c.h.b16 %v3879
        %v4403 = vunpack.c.l.b16 %v3880
        %v4404 = vunpack.c.h.b16 %v3880
        %v4405 = vunpack.c.l.b16 %v3881
        %v4406 = vunpack.c.h.b16 %v3881
        %v4407 = vunpack.c.l.b16 %v3882
        %v4408 = vunpack.c.h.b16 %v3882
        %v4409 = vunpack.c.l.b16 %v3883
        %v4410 = vunpack.c.h.b16 %v3883
        %v4411 = vunpack.c.l.b16 %v3884
        %v4412 = vunpack.c.h.b16 %v3884
        %v4413 = vunpack.c.l.b16 %v3885
        %v4414 = vunpack.c.h.b16 %v3885
        %v4415 = vunpack.c.l.b16 %v3886
        %v4416 = vunpack.c.h.b16 %v3886
        %v4417 = vunpack.c.l.b16 %v3887
        %v4418 = vunpack.c.h.b16 %v3887
        %v4419 = vunpack.c.l.b16 %v3888
        %v4420 = vunpack.c.h.b16 %v3888
        %v4421 = vunpack.c.l.b16 %v3889
        %v4422 = vunpack.c.h.b16 %v3889
        %v4423 = vunpack.c.l.b16 %v3890
        %v4424 = vunpack.c.h.b16 %v3890
        %v4425 = vunpack.c.l.b16 %v3891
        %v4426 = vunpack.c.h.b16 %v3891
        %v4427 = vunpack.c.l.b16 %v3892
        %v4428 = vunpack.c.h.b16 %v3892
        %v4429 = vunpack.c.l.b16 %v3893
        %v4430 = vunpack.c.h.b16 %v3893
        %v4431 = vunpack.c.l.b16 %v3894
        %v4432 = vunpack.c.h.b16 %v3894
        %v4433 = vunpack.c.l.b16 %v3895
        %v4434 = vunpack.c.h.b16 %v3895
        %v4435 = vunpack.c.l.b16 %v3896
        %v4436 = vunpack.c.h.b16 %v3896
        %v4437 = vunpack.c.l.b16 %v3897
        %v4438 = vunpack.c.h.b16 %v3897
        %v4439 = vunpack.c.l.b16 %v3898
        %v4440 = vunpack.c.h.b16 %v3898
        %v4441 = vunpack.c.l.b16 %v3899
        %v4442 = vunpack.c.h.b16 %v3899
        %v4443 = vunpack.c.l.b16 %v3900
        %v4444 = vunpack.c.h.b16 %v3900
        %v4445 = vunpack.c.l.b16 %v3901
        %v4446 = vunpack.c.h.b16 %v3901
        %v4447 = vunpack.c.l.b16 %v3902
        %v4448 = vunpack.c.h.b16 %v3902
        %v4449 = vunpack.c.l.b16 %v3903
        %v4450 = vunpack.c.h.b16 %v3903
        %v4451 = vunpack.c.l.b16 %v3904
        %v4452 = vunpack.c.h.b16 %v3904
        %v4453 = vunpack.c.l.b16 %v3905
        %v4454 = vunpack.c.h.b16 %v3905
        %v4455 = vunpack.c.l.b16 %v3906
        %v4456 = vunpack.c.h.b16 %v3906
        %v4457 = vunpack.c.l.b16 %v3907
        %v4458 = vunpack.c.h.b16 %v3907
        %v4459 = vunpack.c.l.b16 %v3908
        %v4460 = vunpack.c.h.b16 %v3908
        %v4461 = vunpack.c.l.b16 %v3909
        %v4462 = vunpack.c.h.b16 %v3909
        %v4463 = vunpack.c.l.b16 %v3910
        %v4464 = vunpack.c.h.b16 %v3910
        %v4465 = vunpack.c.l.b16 %v3911
        %v4466 = vunpack.c.h.b16 %v3911
        %v4467 = vunpack.c.l.b16 %v3912
        %v4468 = vunpack.c.h.b16 %v3912
        %v4469 = vunpack.c.l.b16 %v3913
        %v4470 = vunpack.c.h.b16 %v3913
        %v4471 = vunpack.c.l.b16 %v3914
        %v4472 = vunpack.c.h.b16 %v3914
        %v4473 = vunpack.c.l.b16 %v3915
        %v4474 = vunpack.c.h.b16 %v3915
        %v4475 = vunpack.c.l.b16 %v3916
        %v4476 = vunpack.c.h.b16 %v3916
        %v4477 = vunpack.c.l.b16 %v3917
        %v4478 = vunpack.c.h.b16 %v3917
        %v4479 = vunpack.c.l.b16 %v3918
        %v4480 = vunpack.c.h.b16 %v3918
        %v4481 = vunpack.c.l.b16 %v3919
        %v4482 = vunpack.c.h.b16 %v3919
        %v4483 = vunpack.c.l.b16 %v3920
        %v4484 = vunpack.c.h.b16 %v3920
        %v4485 = vunpack.c.l.b16 %v3921
        %v4486 = vunpack.c.h.b16 %v3921
        %v4487 = vunpack.c.l.b16 %v3922
        %v4488 = vunpack.c.h.b16 %v3922
        %v4489 = vunpack.c.l.b16 %v3923
        %v4490 = vunpack.c.h.b16 %v3923
        %v4491 = vunpack.c.l.b16 %v3924
        %v4492 = vunpack.c.h.b16 %v3924
        %v4493 = vunpack.c.l.b16 %v3925
        %v4494 = vunpack.c.h.b16 %v3925
        %v4495 = vunpack.c.l.b16 %v3926
        %v4496 = vunpack.c.h.b16 %v3926
        %v4497 = vunpack.c.l.b16 %v3927
        %v4498 = vunpack.c.h.b16 %v3927
        %v4499 = vunpack.c.l.b16 %v3928
        %v4500 = vunpack.c.h.b16 %v3928
        %v4501 = vunpack.c.l.b16 %v3929
        %v4502 = vunpack.c.h.b16 %v3929
        %v4503 = vunpack.c.l.b16 %v3930
        %v4504 = vunpack.c.h.b16 %v3930
        %v4505 = vunpack.c.l.b16 %v3931
        %v4506 = vunpack.c.h.b16 %v3931
        %v4507 = vunpack.c.l.b16 %v3932
        %v4508 = vunpack.c.h.b16 %v3932
        %v4509 = vunpack.c.l.b16 %v3933
        %v4510 = vunpack.c.h.b16 %v3933
        %v4511 = vunpack.c.l.b16 %v3934
        %v4512 = vunpack.c.h.b16 %v3934
        %v4513 = vunpack.c.l.b16 %v3935
        %v4514 = vunpack.c.h.b16 %v3935
        %v4515 = vunpack.c.l.b16 %v3936
        %v4516 = vunpack.c.h.b16 %v3936
        %v4517 = vunpack.c.l.b16 %v3937
        %v4518 = vunpack.c.h.b16 %v3937
        %v4519 = vunpack.c.l.b16 %v3938
        %v4520 = vunpack.c.h.b16 %v3938
        %v4521 = vunpack.c.l.b16 %v3939
        %v4522 = vunpack.c.h.b16 %v3939
        %v4523 = vunpack.c.l.b16 %v3940
        %v4524 = vunpack.c.h.b16 %v3940
        %v4525 = vunpack.c.l.b16 %v3941
        %v4526 = vunpack.c.h.b16 %v3941
        %v4527 = vunpack.c.l.b16 %v3942
        %v4528 = vunpack.c.h.b16 %v3942
        %v4529 = vunpack.c.l.b16 %v3943
        %v4530 = vunpack.c.h.b16 %v3943
        %v4531 = vunpack.c.l.b16 %v3944
        %v4532 = vunpack.c.h.b16 %v3944
        %v4533 = vunpack.c.l.b16 %v3945
        %v4534 = vunpack.c.h.b16 %v3945
        %v4535 = vunpack.c.l.b16 %v3946
        %v4536 = vunpack.c.h.b16 %v3946
        %v4537 = vunpack.c.l.b16 %v3947
        %v4538 = vunpack.c.h.b16 %v3947
        %v4539 = vunpack.c.l.b16 %v3948
        %v4540 = vunpack.c.h.b16 %v3948
        %v4541 = vunpack.c.l.b16 %v3949
        %v4542 = vunpack.c.h.b16 %v3949
        %v4543 = vunpack.c.l.b16 %v3950
        %v4544 = vunpack.c.h.b16 %v3950
        %v4545 = vunpack.c.l.b16 %v3951
        %v4546 = vunpack.c.h.b16 %v3951
        %v4547 = vunpack.c.l.b16 %v3952
        %v4548 = vunpack.c.h.b16 %v3952
        %v4549 = vunpack.c.l.b16 %v3953
        %v4550 = vunpack.c.h.b16 %v3953
        %v4551 = vunpack.c.l.b16 %v3954
        %v4552 = vunpack.c.h.b16 %v3954
        %v4553 = vunpack.c.l.b16 %v3955
        %v4554 = vunpack.c.h.b16 %v3955
        %v4555 = vunpack.c.l.b16 %v3956
        %v4556 = vunpack.c.h.b16 %v3956
        %v4557 = vunpack.c.l.b16 %v3957
        %v4558 = vunpack.c.h.b16 %v3957
        %v4559 = vunpack.c.l.b16 %v3958
        %v4560 = vunpack.c.h.b16 %v3958
        %v4561 = vunpack.c.l.b16 %v3959
        %v4562 = vunpack.c.h.b16 %v3959
        %v4563 = vunpack.c.l.b16 %v3960
        %v4564 = vunpack.c.h.b16 %v3960
        %v4565 = vunpack.c.l.b16 %v3961
        %v4566 = vunpack.c.h.b16 %v3961
        %v4567 = vunpack.c.l.b16 %v3962
        %v4568 = vunpack.c.h.b16 %v3962
        %v4569 = vunpack.c.l.b16 %v3963
        %v4570 = vunpack.c.h.b16 %v3963
        %v4571 = vunpack.c.l.b16 %v3964
        %v4572 = vunpack.c.h.b16 %v3964
        %v4573 = vunpack.c.l.b16 %v3965
        %v4574 = vunpack.c.h.b16 %v3965
        %v4575 = vunpack.c.l.b16 %v3966
        %v4576 = vunpack.c.h.b16 %v3966
        %v4577 = vunpack.c.l.b16 %v3967
        %v4578 = vunpack.c.h.b16 %v3967
        %v4579 = vunpack.c.l.b16 %v3968
        %v4580 = vunpack.c.h.b16 %v3968
        %v4581 = vunpack.c.l.b16 %v3969
        %v4582 = vunpack.c.h.b16 %v3969
        %v4583 = vunpack.c.l.b16 %v3970
        %v4584 = vunpack.c.h.b16 %v3970
        %v4585 = vunpack.c.l.b16 %v3971
        %v4586 = vunpack.c.h.b16 %v3971
        %v4587 = vunpack.c.l.b16 %v3972
        %v4588 = vunpack.c.h.b16 %v3972
        %v4589 = vunpack.c.l.b16 %v3973
        %v4590 = vunpack.c.h.b16 %v3973
        %v4591 = vunpack.c.l.b16 %v3974
        %v4592 = vunpack.c.h.b16 %v3974
        %v4593 = vunpack.c.l.b16 %v3975
        %v4594 = vunpack.c.h.b16 %v3975
        %v4595 = vunpack.c.l.b16 %v3976
        %v4596 = vunpack.c.h.b16 %v3976
        %v4597 = vunpack.c.l.b16 %v3977
        %v4598 = vunpack.c.h.b16 %v3977
        %v4599 = vunpack.c.l.b16 %v3978
        %v4600 = vunpack.c.h.b16 %v3978
        %v4601 = vunpack.c.l.b16 %v3979
        %v4602 = vunpack.c.h.b16 %v3979
        %v4603 = vunpack.c.l.b16 %v3980
        %v4604 = vunpack.c.h.b16 %v3980
        %v4605 = vunpack.c.l.b16 %v3981
        %v4606 = vunpack.c.h.b16 %v3981
        %v4607 = vunpack.c.l.b16 %v3982
        %v4608 = vunpack.c.h.b16 %v3982
        %v4609 = vunpack.c.l.b16 %v3983
        %v4610 = vunpack.c.h.b16 %v3983
        %v4611 = vunpack.c.l.b16 %v3984
        %v4612 = vunpack.c.h.b16 %v3984
        %v4613 = vunpack.c.l.b16 %v3985
        %v4614 = vunpack.c.h.b16 %v3985
        %v4615 = vunpack.c.l.b16 %v3986
        %v4616 = vunpack.c.h.b16 %v3986
        %v4617 = vunpack.c.l.b16 %v3987
        %v4618 = vunpack.c.h.b16 %v3987
        %v4619 = vunpack.c.l.b16 %v3988
        %v4620 = vunpack.c.h.b16 %v3988
        %v4621 = vunpack.c.l.b16 %v3989
        %v4622 = vunpack.c.h.b16 %v3989
        %v4623 = vunpack.c.l.b16 %v3990
        %v4624 = vunpack.c.h.b16 %v3990
        %v4625 = vunpack.c.l.b16 %v3991
        %v4626 = vunpack.c.h.b16 %v3991
        %v4627 = vunpack.c.l.b16 %v3992
        %v4628 = vunpack.c.h.b16 %v3992
        %v4629 = vunpack.c.l.b16 %v3993
        %v4630 = vunpack.c.h.b16 %v3993
        %v4631 = vunpack.c.l.b16 %v3994
        %v4632 = vunpack.c.h.b16 %v3994
        %v4633 = vunpack.c.l.b16 %v3995
        %v4634 = vunpack.c.h.b16 %v3995
        %v4635 = vunpack.c.l.b16 %v3996
        %v4636 = vunpack.c.h.b16 %v3996
        %v4637 = vpack.c.b16 %v4265, %v4253
        %v4638 = vpack.c.b16 %v4266, %v4254
        %v4639 = vpack.c.b16 %v4267, %v4255
        %v4640 = vpack.c.b16 %v4268, %v4256
        %v4641 = vpack.c.b16 %v4269, %v4257
        %v4642 = vpack.c.b16 %v4270, %v4258
        %v4643 = vpack.c.b16 %v4271, %v4259
        %v4644 = vpack.c.b16 %v4272, %v4260
        %v4645 = vpack.c.b16 %v4273, %v4261
        %v4646 = vpack.c.b16 %v4274, %v4262
        %v4647 = vpack.c.b16 %v4275, %v4263
        %v4648 = vpack.c.b16 %v4276, %v4264
        %v4649 = vpack.c.b16 %v4289, %v4277
        %v4650 = vpack.c.b16 %v4290, %v4278
        %v4651 = vpack.c.b16 %v4291, %v4279
        %v4652 = vpack.c.b16 %v4292, %v4280
        %v4653 = vpack.c.b16 %v4293, %v4281
        %v4654 = vpack.c.b16 %v4294, %v4282
        %v4655 = vpack.c.b16 %v4295, %v4283
        %v4656 = vpack.c.b16 %v4296, %v4284
        %v4657 = vpack.c.b16 %v4297, %v4285
        %v4658 = vpack.c.b16 %v4298, %v4286
        %v4659 = vpack.c.b16 %v4299, %v4287
        %v4660 = vpack.c.b16 %v4300, %v4288
        %v4661 = vpack.c.b16 %v4313, %v4301
        %v4662 = vpack.c.b16 %v4314, %v4302
        %v4663 = vpack.c.b16 %v4315, %v4303
        %v4664 = vpack.c.b16 %v4316, %v4304
        %v4665 = vpack.c.b16 %v4317, %v4305
        %v4666 = vpack.c.b16 %v4318, %v4306
        %v4667 = vpack.c.b16 %v4319, %v4307
        %v4668 = vpack.c.b16 %v4320, %v4308
        %v4669 = vpack.c.b16 %v4321, %v4309
        %v4670 = vpack.c.b16 %v4322, %v4310
        %v4671 = vpack.c.b16 %v4323, %v4311
        %v4672 = vpack.c.b16 %v4324, %v4312
        %v4673 = vpack.c.b16 %v4337, %v4325
        %v4674 = vpack.c.b16 %v4338, %v4326
        %v4675 = vpack.c.b16 %v4339, %v4327
        %v4676 = vpack.c.b16 %v4340, %v4328
        %v4677 = vpack.c.b16 %v4341, %v4329
        %v4678 = vpack.c.b16 %v4342, %v4330
        %v4679 = vpack.c.b16 %v4343, %v4331
        %v4680 = vpack.c.b16 %v4344, %v4332
        %v4681 = vpack.c.b16 %v4345, %v4333
        %v4682 = vpack.c.b16 %v4346, %v4334
        %v4683 = vpack.c.b16 %v4347, %v4335
        %v4684 = vpack.c.b16 %v4348, %v4336
        %v4685 = vpack.c.b16 %v4361, %v4349
        %v4686 = vpack.c.b16 %v4362, %v4350
        %v4687 = vpack.c.b16 %v4363, %v4351
        %v4688 = vpack.c.b16 %v4364, %v4352
        %v4689 = vpack.c.b16 %v4365, %v4353
        %v4690 = vpack.c.b16 %v4366, %v4354
        %v4691 = vpack.c.b16 %v4367, %v4355
        %v4692 = vpack.c.b16 %v4368, %v4356
        %v4693 = vpack.c.b16 %v4369, %v4357
        %v4694 = vpack.c.b16 %v4370, %v4358
        %v4695 = vpack.c.b16 %v4371, %v4359
        %v4696 = vpack.c.b16 %v4372, %v4360
        %v4697 = vpack.c.b16 %v4385, %v4373
        %v4698 = vpack.c.b16 %v4386, %v4374
        %v4699 = vpack.c.b16 %v4387, %v4375
        %v4700 = vpack.c.b16 %v4388, %v4376
        %v4701 = vpack.c.b16 %v4389, %v4377
        %v4702 = vpack.c.b16 %v4390, %v4378
        %v4703 = vpack.c.b16 %v4391, %v4379
        %v4704 = vpack.c.b16 %v4392, %v4380
        %v4705 = vpack.c.b16 %v4393, %v4381
        %v4706 = vpack.c.b16 %v4394, %v4382
        %v4707 = vpack.c.b16 %v4395, %v4383
        %v4708 = vpack.c.b16 %v4396, %v4384
        %v4709 = vpack.c.b16 %v4409, %v4397
        %v4710 = vpack.c.b16 %v4410, %v4398
        %v4711 = vpack.c.b16 %v4411, %v4399
        %v4712 = vpack.c.b16 %v4412, %v4400
        %v4713 = vpack.c.b16 %v4413, %v4401
        %v4714 = vpack.c.b16 %v4414, %v4402
        %v4715 = vpack.c.b16 %v4415, %v4403
        %v4716 = vpack.c.b16 %v4416, %v4404
        %v4717 = vpack.c.b16 %v4417, %v4405
        %v4718 = vpack.c.b16 %v4418, %v4406
        %v4719 = vpack.c.b16 %v4419, %v4407
        %v4720 = vpack.c.b16 %v4420, %v4408
        %v4721 = vpack.c.b16 %v4433, %v4421
        %v4722 = vpack.c.b16 %v4434, %v4422
        %v4723 = vpack.c.b16 %v4435, %v4423
        %v4724 = vpack.c.b16 %v4436, %v4424
        %v4725 = vpack.c.b16 %v4437, %v4425
        %v4726 = vpack.c.b16 %v4438, %v4426
        %v4727 = vpack.c.b16 %v4439, %v4427
        %v4728 = vpack.c.b16 %v4440, %v4428
        %v4729 = vpack.c.b16 %v4441, %v4429
        %v4730 = vpack.c.b16 %v4442, %v4430
        %v4731 = vpack.c.b16 %v4443, %v4431
        %v4732 = vpack.c.b16 %v4444, %v4432
        %v4733 = vpack.c.b16 %v4457, %v4445
        %v4734 = vpack.c.b16 %v4458, %v4446
        %v4735 = vpack.c.b16 %v4459, %v4447
        %v4736 = vpack.c.b16 %v4460, %v4448
        %v4737 = vpack.c.b16 %v4461, %v4449
        %v4738 = vpack.c.b16 %v4462, %v4450
        %v4739 = vpack.c.b16 %v4463, %v4451
        %v4740 = vpack.c.b16 %v4464, %v4452
        %v4741 = vpack.c.b16 %v4465, %v4453
        %v4742 = vpack.c.b16 %v4466, %v4454
        %v4743 = vpack.c.b16 %v4467, %v4455
        %v4744 = vpack.c.b16 %v4468, %v4456
        %v4745 = vpack.c.b16 %v4481, %v4469
        %v4746 = vpack.c.b16 %v4482, %v4470
        %v4747 = vpack.c.b16 %v4483, %v4471
        %v4748 = vpack.c.b16 %v4484, %v4472
        %v4749 = vpack.c.b16 %v4485, %v4473
        %v4750 = vpack.c.b16 %v4486, %v4474
        %v4751 = vpack.c.b16 %v4487, %v4475
        %v4752 = vpack.c.b16 %v4488, %v4476
        %v4753 = vpack.c.b16 %v4489, %v4477
        %v4754 = vpack.c.b16 %v4490, %v4478
        %v4755 = vpack.c.b16 %v4491, %v4479
        %v4756 = vpack.c.b16 %v4492, %v4480
        %v4757 = vpack.c.b16 %v4505, %v4493
        %v4758 = vpack.c.b16 %v4506, %v4494
        %v4759 = vpack.c.b16 %v4507, %v4495
        %v4760 = vpack.c.b16 %v4508, %v4496
        %v4761 = vpack.c.b16 %v4509, %v4497
        %v4762 = vpack.c.b16 %v4510, %v4498
        %v4763 = vpack.c.b16 %v4511, %v4499
        %v4764 = vpack.c.b16 %v4512, %v4500
        %v4765 = vpack.c.b16 %v4513, %v4501
        %v4766 = vpack.c.b16 %v4514, %v4502
        %v4767 = vpack.c.b16 %v4515, %v4503
        %v4768 = vpack.c.b16 %v4516, %v4504
        %v4769 = vpack.c.b16 %v4529, %v4517
        %v4770 = vpack.c.b16 %v4530, %v4518
        %v4771 = vpack.c.b16 %v4531, %v4519
        %v4772 = vpack.c.b16 %v4532, %v4520
        %v4773 = vpack.c.b16 %v4533, %v4521
        %v4774 = vpack.c.b16 %v4534, %v4522
        %v4775 = vpack.c.b16 %v4535, %v4523
        %v4776 = vpack.c.b16 %v4536, %v4524
        %v4777 = vpack.c.b16 %v4537, %v4525
        %v4778 = vpack.c.b16 %v4538, %v4526
        %v4779 = vpack.c.b16 %v4539, %v4527
        %v4780 = vpack.c.b16 %v4540, %v4528
        %v4781 = vpack.c.b16 %v4553, %v4541
        %v4782 = vpack.c.b16 %v4554, %v4542
        %v4783 = vpack.c.b16 %v4555, %v4543
        %v4784 = vpack.c.b16 %v4556, %v4544
        %v4785 = vpack.c.b16 %v4557, %v4545
        %v4786 = vpack.c.b16 %v4558, %v4546
        %v4787 = vpack.c.b16 %v4559, %v4547
        %v4788 = vpack.c.b16 %v4560, %v4548
        %v4789 = vpack.c.b16 %v4561, %v4549
        %v4790 = vpack.c.b16 %v4562, %v4550
        %v4791 = vpack.c.b16 %v4563, %v4551
        %v4792 = vpack.c.b16 %v4564, %v4552
        %v4793 = vpack.c.b16 %v4577, %v4565
        %v4794 = vpack.c.b16 %v4578, %v4566
        %v4795 = vpack.c.b16 %v4579, %v4567
        %v4796 = vpack.c.b16 %v4580, %v4568
        %v4797 = vpack.c.b16 %v4581, %v4569
        %v4798 = vpack.c.b16 %v4582, %v4570
        %v4799 = vpack.c.b16 %v4583, %v4571
        %v4800 = vpack.c.b16 %v4584, %v4572
        %v4801 = vpack.c.b16 %v4585, %v4573
        %v4802 = vpack.c.b16 %v4586, %v4574
        %v4803 = vpack.c.b16 %v4587, %v4575
        %v4804 = vpack.c.b16 %v4588, %v4576
        %v4805 = vpack.c.b16 %v4601, %v4589
        %v4806 = vpack.c.b16 %v4602, %v4590
        %v4807 = vpack.c.b16 %v4603, %v4591
        %v4808 = vpack.c.b16 %v4604, %v4592
        %v4809 = vpack.c.b16 %v4605, %v4593
        %v4810 = vpack.c.b16 %v4606, %v4594
        %v4811 = vpack.c.b16 %v4607, %v4595
        %v4812 = vpack.c.b16 %v4608, %v4596
        %v4813 = vpack.c.b16 %v4609, %v4597
        %v4814 = vpack.c.b16 %v4610, %v4598
        %v4815 = vpack.c.b16 %v4611, %v4599
        %v4816 = vpack.c.b16 %v4612, %v4600
        %v4817 = vpack.c.b16 %v4625, %v4613
        %v4818 = vpack.c.b16 %v4626, %v4614
        %v4819 = vpack.c.b16 %v4627, %v4615
        %v4820 = vpack.c.b16 %v4628, %v4616
        %v4821 = vpack.c.b16 %v4629, %v4617
        %v4822 = vpack.c.b16 %v4630, %v4618
        %v4823 = vpack.c.b16 %v4631, %v4619
        %v4824 = vpack.c.b16 %v4632, %v4620
        %v4825 = vpack.c.b16 %v4633, %v4621
        %v4826 = vpack.c.b16 %v4634, %v4622
        %v4827 = vpack.c.b16 %v4635, %v4623
        %v4828 = vpack.c.b16 %v4636, %v4624
        %5021 = vmatprep.subr.bf16.mxu0 %v4722
        %5022 = vmatpush1.bf16.msra.mxu0 %v4721
        %5023 = vmatprep.subr.bf16.mxu0 %v4710
        %5024 = vmatpush1.bf16.msra.mxu0 %v4709
        %5025 = vmatprep.subr.bf16.mxu0 %v4698
        %5026 = vmatpush1.bf16.msra.mxu0 %v4697
        %5027 = vmatprep.subr.bf16.mxu0 %v4686
        %5028 = vmatpush1.bf16.msra.mxu0 %v4685
        %5029 = vmatprep.subr.bf16.mxu0 %v4674
        %5030 = vmatpush1.bf16.msra.mxu0 %v4673
        %5031 = vmatprep.subr.bf16.mxu0 %v4662
        %5032 = vmatpush1.bf16.msra.mxu0 %v4661
        %5033 = vmatprep.subr.bf16.mxu0 %v4650
        %5034 = vmatpush1.bf16.msra.mxu0 %v4649
        %5035 = vmatprep.subr.bf16.mxu0 %v4638
        %5036 = vmatpush1.bf16.msra.mxu0 %v4637
        %5037 = vmatprep.subr.bf16.mxu0 %v4818
        %5038 = vmatpush2.bf16.msra.mxu0 %v4817
        %5039 = vmatprep.subr.bf16.mxu0 %v4806
        %5040 = vmatpush2.bf16.msra.mxu0 %v4805
        %5041 = vmatprep.subr.bf16.mxu0 %v4794
        %5042 = vmatpush2.bf16.msra.mxu0 %v4793
        %5043 = vmatprep.subr.bf16.mxu0 %v4782
        %5044 = vmatpush2.bf16.msra.mxu0 %v4781
        %5045 = vmatprep.subr.bf16.mxu0 %v4770
        %5046 = vmatpush2.bf16.msra.mxu0 %v4769
        %5047 = vmatprep.subr.bf16.mxu0 %v4758
        %5048 = vmatpush2.bf16.msra.mxu0 %v4757
        %5049 = vmatprep.subr.bf16.mxu0 %v4746
        %5050 = vmatpush2.bf16.msra.mxu0 %v4745
        %5051 = vmatprep.subr.bf16.mxu0 %v4734
        %5052 = vmatpush2.bf16.msra.mxu0 %v4733
        %5053 = vmatprep.mubr.bf16.mxu0 %v3804
        %5054 = vmatmul.mubr.bf16.gmra.mxu0 %v3803
        %v5055 = vpop.f32.mrf.mxu0
        %v5056 = vadd.f32 %v4004, %v5055
        %v5057 = vpop.f32.mrf.mxu0
        %v5058 = vadd.f32 %v4008, %v5057
        %v5059 = vpop.f32.mrf.mxu0
        %v5060 = vpop.f32.mrf.mxu0
        %5061 = vdwg.mxu0
        %5062 = vmatprep.subr.bf16.mxu0 %v4724
        %5063 = vmatpush1.bf16.msra.mxu0 %v4723
        %5064 = vmatprep.subr.bf16.mxu0 %v4712
        %5065 = vmatpush1.bf16.msra.mxu0 %v4711
        %5066 = vmatprep.subr.bf16.mxu0 %v4700
        %5067 = vmatpush1.bf16.msra.mxu0 %v4699
        %5068 = vmatprep.subr.bf16.mxu0 %v4688
        %5069 = vmatpush1.bf16.msra.mxu0 %v4687
        %5070 = vmatprep.subr.bf16.mxu0 %v4676
        %5071 = vmatpush1.bf16.msra.mxu0 %v4675
        %5072 = vmatprep.subr.bf16.mxu0 %v4664
        %5073 = vmatpush1.bf16.msra.mxu0 %v4663
        %5074 = vmatprep.subr.bf16.mxu0 %v4652
        %5075 = vmatpush1.bf16.msra.mxu0 %v4651
        %5076 = vmatprep.subr.bf16.mxu0 %v4640
        %5077 = vmatpush1.bf16.msra.mxu0 %v4639
        %5078 = vmatprep.subr.bf16.mxu0 %v4820
        %5079 = vmatpush2.bf16.msra.mxu0 %v4819
        %5080 = vmatprep.subr.bf16.mxu0 %v4808
        %5081 = vmatpush2.bf16.msra.mxu0 %v4807
        %5082 = vmatprep.subr.bf16.mxu0 %v4796
        %5083 = vmatpush2.bf16.msra.mxu0 %v4795
        %5084 = vmatprep.subr.bf16.mxu0 %v4784
        %5085 = vmatpush2.bf16.msra.mxu0 %v4783
        %5086 = vmatprep.subr.bf16.mxu0 %v4772
        %5087 = vmatpush2.bf16.msra.mxu0 %v4771
        %5088 = vmatprep.subr.bf16.mxu0 %v4760
        %5089 = vmatpush2.bf16.msra.mxu0 %v4759
        %5090 = vmatprep.subr.bf16.mxu0 %v4748
        %5091 = vmatpush2.bf16.msra.mxu0 %v4747
        %5092 = vmatprep.subr.bf16.mxu0 %v4736
        %5093 = vmatpush2.bf16.msra.mxu0 %v4735
        %5094 = vmatprep.mubr.bf16.mxu0 %v3804
        %5095 = vmatmul.mubr.bf16.gmra.mxu0 %v3803
        %v5096 = vpop.f32.mrf.mxu0
        %v5097 = vadd.f32 %v4012, %v5096
        %v5098 = vpop.f32.mrf.mxu0
        %v5099 = vadd.f32 %v4016, %v5098
        %v5100 = vpop.f32.mrf.mxu0
        %v5101 = vpop.f32.mrf.mxu0
        %5102 = vdwg.mxu0
        %5103 = vmatprep.subr.bf16.mxu0 %v4726
        %5104 = vmatpush1.bf16.msra.mxu0 %v4725
        %5105 = vmatprep.subr.bf16.mxu0 %v4714
        %5106 = vmatpush1.bf16.msra.mxu0 %v4713
        %5107 = vmatprep.subr.bf16.mxu0 %v4702
        %5108 = vmatpush1.bf16.msra.mxu0 %v4701
        %5109 = vmatprep.subr.bf16.mxu0 %v4690
        %5110 = vmatpush1.bf16.msra.mxu0 %v4689
        %5111 = vmatprep.subr.bf16.mxu0 %v4678
        %5112 = vmatpush1.bf16.msra.mxu0 %v4677
        %5113 = vmatprep.subr.bf16.mxu0 %v4666
        %5114 = vmatpush1.bf16.msra.mxu0 %v4665
        %5115 = vmatprep.subr.bf16.mxu0 %v4654
        %5116 = vmatpush1.bf16.msra.mxu0 %v4653
        %5117 = vmatprep.subr.bf16.mxu0 %v4642
        %5118 = vmatpush1.bf16.msra.mxu0 %v4641
        %5119 = vmatprep.subr.bf16.mxu0 %v4822
        %5120 = vmatpush2.bf16.msra.mxu0 %v4821
        %5121 = vmatprep.subr.bf16.mxu0 %v4810
        %5122 = vmatpush2.bf16.msra.mxu0 %v4809
        %5123 = vmatprep.subr.bf16.mxu0 %v4798
        %5124 = vmatpush2.bf16.msra.mxu0 %v4797
        %5125 = vmatprep.subr.bf16.mxu0 %v4786
        %5126 = vmatpush2.bf16.msra.mxu0 %v4785
        %5127 = vmatprep.subr.bf16.mxu0 %v4774
        %5128 = vmatpush2.bf16.msra.mxu0 %v4773
        %5129 = vmatprep.subr.bf16.mxu0 %v4762
        %5130 = vmatpush2.bf16.msra.mxu0 %v4761
        %5131 = vmatprep.subr.bf16.mxu0 %v4750
        %5132 = vmatpush2.bf16.msra.mxu0 %v4749
        %5133 = vmatprep.subr.bf16.mxu0 %v4738
        %5134 = vmatpush2.bf16.msra.mxu0 %v4737
        %5135 = vmatprep.mubr.bf16.mxu0 %v3804
        %5136 = vmatmul.mubr.bf16.gmra.mxu0 %v3803
        %v5137 = vpop.f32.mrf.mxu0
        %v5138 = vadd.f32 %v4020, %v5137
        %v5139 = vpop.f32.mrf.mxu0
        %v5140 = vadd.f32 %v4024, %v5139
        %v5141 = vpop.f32.mrf.mxu0
        %v5142 = vpop.f32.mrf.mxu0
        %5143 = vdwg.mxu0
        %5144 = vmatprep.subr.bf16.mxu0 %v4728
        %5145 = vmatpush1.bf16.msra.mxu0 %v4727
        %5146 = vmatprep.subr.bf16.mxu0 %v4716
        %5147 = vmatpush1.bf16.msra.mxu0 %v4715
        %5148 = vmatprep.subr.bf16.mxu0 %v4704
        %5149 = vmatpush1.bf16.msra.mxu0 %v4703
        %5150 = vmatprep.subr.bf16.mxu0 %v4692
        %5151 = vmatpush1.bf16.msra.mxu0 %v4691
        %5152 = vmatprep.subr.bf16.mxu0 %v4680
        %5153 = vmatpush1.bf16.msra.mxu0 %v4679
        %5154 = vmatprep.subr.bf16.mxu0 %v4668
        %5155 = vmatpush1.bf16.msra.mxu0 %v4667
        %5156 = vmatprep.subr.bf16.mxu0 %v4656
        %5157 = vmatpush1.bf16.msra.mxu0 %v4655
        %5158 = vmatprep.subr.bf16.mxu0 %v4644
        %5159 = vmatpush1.bf16.msra.mxu0 %v4643
        %5160 = vmatprep.subr.bf16.mxu0 %v4824
        %5161 = vmatpush2.bf16.msra.mxu0 %v4823
        %5162 = vmatprep.subr.bf16.mxu0 %v4812
        %5163 = vmatpush2.bf16.msra.mxu0 %v4811
        %5164 = vmatprep.subr.bf16.mxu0 %v4800
        %5165 = vmatpush2.bf16.msra.mxu0 %v4799
        %5166 = vmatprep.subr.bf16.mxu0 %v4788
        %5167 = vmatpush2.bf16.msra.mxu0 %v4787
        %5168 = vmatprep.subr.bf16.mxu0 %v4776
        %5169 = vmatpush2.bf16.msra.mxu0 %v4775
        %5170 = vmatprep.subr.bf16.mxu0 %v4764
        %5171 = vmatpush2.bf16.msra.mxu0 %v4763
        %5172 = vmatprep.subr.bf16.mxu0 %v4752
        %5173 = vmatpush2.bf16.msra.mxu0 %v4751
        %5174 = vmatprep.subr.bf16.mxu0 %v4740
        %5175 = vmatpush2.bf16.msra.mxu0 %v4739
        %5176 = vmatprep.mubr.bf16.mxu0 %v3804
        %5177 = vmatmul.mubr.bf16.gmra.mxu0 %v3803
        %v5178 = vpop.f32.mrf.mxu0
        %v5179 = vadd.f32 %v4028, %v5178
        %v5180 = vpop.f32.mrf.mxu0
        %v5181 = vadd.f32 %v4032, %v5180
        %v5182 = vpop.f32.mrf.mxu0
        %v5183 = vpop.f32.mrf.mxu0
        %5184 = vdwg.mxu0
        %5185 = vmatprep.subr.bf16.mxu0 %v4730
        %5186 = vmatpush1.bf16.msra.mxu0 %v4729
        %5187 = vmatprep.subr.bf16.mxu0 %v4718
        %5188 = vmatpush1.bf16.msra.mxu0 %v4717
        %5189 = vmatprep.subr.bf16.mxu0 %v4706
        %5190 = vmatpush1.bf16.msra.mxu0 %v4705
        %5191 = vmatprep.subr.bf16.mxu0 %v4694
        %5192 = vmatpush1.bf16.msra.mxu0 %v4693
        %5193 = vmatprep.subr.bf16.mxu0 %v4682
        %5194 = vmatpush1.bf16.msra.mxu0 %v4681
        %5195 = vmatprep.subr.bf16.mxu0 %v4670
        %5196 = vmatpush1.bf16.msra.mxu0 %v4669
        %5197 = vmatprep.subr.bf16.mxu0 %v4658
        %5198 = vmatpush1.bf16.msra.mxu0 %v4657
        %5199 = vmatprep.subr.bf16.mxu0 %v4646
        %5200 = vmatpush1.bf16.msra.mxu0 %v4645
        %5201 = vmatprep.subr.bf16.mxu0 %v4826
        %5202 = vmatpush2.bf16.msra.mxu0 %v4825
        %5203 = vmatprep.subr.bf16.mxu0 %v4814
        %5204 = vmatpush2.bf16.msra.mxu0 %v4813
        %5205 = vmatprep.subr.bf16.mxu0 %v4802
        %5206 = vmatpush2.bf16.msra.mxu0 %v4801
        %5207 = vmatprep.subr.bf16.mxu0 %v4790
        %5208 = vmatpush2.bf16.msra.mxu0 %v4789
        %5209 = vmatprep.subr.bf16.mxu0 %v4778
        %5210 = vmatpush2.bf16.msra.mxu0 %v4777
        %5211 = vmatprep.subr.bf16.mxu0 %v4766
        %5212 = vmatpush2.bf16.msra.mxu0 %v4765
        %5213 = vmatprep.subr.bf16.mxu0 %v4754
        %5214 = vmatpush2.bf16.msra.mxu0 %v4753
        %5215 = vmatprep.subr.bf16.mxu0 %v4742
        %5216 = vmatpush2.bf16.msra.mxu0 %v4741
        %5217 = vmatprep.mubr.bf16.mxu0 %v3804
        %5218 = vmatmul.mubr.bf16.gmra.mxu0 %v3803
        %v5219 = vpop.f32.mrf.mxu0
        %v5220 = vadd.f32 %v4036, %v5219
        %v5221 = vpop.f32.mrf.mxu0
        %v5222 = vadd.f32 %v4040, %v5221
        %v5223 = vpop.f32.mrf.mxu0
        %v5224 = vpop.f32.mrf.mxu0
        %5225 = vdwg.mxu0
        %5226 = vmatprep.subr.bf16.mxu0 %v4732
        %5227 = vmatpush1.bf16.msra.mxu0 %v4731
        %5228 = vmatprep.subr.bf16.mxu0 %v4720
        %5229 = vmatpush1.bf16.msra.mxu0 %v4719
        %5230 = vmatprep.subr.bf16.mxu0 %v4708
        %5231 = vmatpush1.bf16.msra.mxu0 %v4707
        %5232 = vmatprep.subr.bf16.mxu0 %v4696
        %5233 = vmatpush1.bf16.msra.mxu0 %v4695
        %5234 = vmatprep.subr.bf16.mxu0 %v4684
        %5235 = vmatpush1.bf16.msra.mxu0 %v4683
        %5236 = vmatprep.subr.bf16.mxu0 %v4672
        %5237 = vmatpush1.bf16.msra.mxu0 %v4671
        %5238 = vmatprep.subr.bf16.mxu0 %v4660
        %5239 = vmatpush1.bf16.msra.mxu0 %v4659
        %5240 = vmatprep.subr.bf16.mxu0 %v4648
        %5241 = vmatpush1.bf16.msra.mxu0 %v4647
        %5242 = vmatprep.subr.bf16.mxu0 %v4828
        %5243 = vmatpush2.bf16.msra.mxu0 %v4827
        %5244 = vmatprep.subr.bf16.mxu0 %v4816
        %5245 = vmatpush2.bf16.msra.mxu0 %v4815
        %5246 = vmatprep.subr.bf16.mxu0 %v4804
        %5247 = vmatpush2.bf16.msra.mxu0 %v4803
        %5248 = vmatprep.subr.bf16.mxu0 %v4792
        %5249 = vmatpush2.bf16.msra.mxu0 %v4791
        %5250 = vmatprep.subr.bf16.mxu0 %v4780
        %5251 = vmatpush2.bf16.msra.mxu0 %v4779
        %5252 = vmatprep.subr.bf16.mxu0 %v4768
        %5253 = vmatpush2.bf16.msra.mxu0 %v4767
        %5254 = vmatprep.subr.bf16.mxu0 %v4756
        %5255 = vmatpush2.bf16.msra.mxu0 %v4755
        %5256 = vmatprep.subr.bf16.mxu0 %v4744
        %5257 = vmatpush2.bf16.msra.mxu0 %v4743
        %5258 = vmatprep.mubr.bf16.mxu0 %v3804
        %5259 = vmatmul.mubr.bf16.gmra.mxu0 %v3803
        %v5260 = vpop.f32.mrf.mxu0
        %v5261 = vadd.f32 %v4044, %v5260
        %v5262 = vpop.f32.mrf.mxu0
        %v5263 = vadd.f32 %v4048, %v5262
        %v5264 = vpop.f32.mrf.mxu0
        %v5265 = vpop.f32.mrf.mxu0
        %5266 = vdwg.mxu0
        %v5267 = vxor.u32 %v5056, 2147483648
        %v5268 = vxor.u32 %v5058, 2147483648
        %v5269 = vxor.u32 %v5097, 2147483648
        %v5270 = vxor.u32 %v5099, 2147483648
        %v5271 = vxor.u32 %v5138, 2147483648
        %v5272 = vxor.u32 %v5140, 2147483648
        %v5273 = vxor.u32 %v5179, 2147483648
        %v5274 = vxor.u32 %v5181, 2147483648
        %v5275 = vxor.u32 %v5220, 2147483648
        %v5276 = vxor.u32 %v5222, 2147483648
        %v5277 = vxor.u32 %v5261, 2147483648
        %v5278 = vxor.u32 %v5263, 2147483648
        %v5279 = vmul.f32 %v5267, 1.442695
        %v5280 = vpow.pop %v5279
        %v5281 = vmul.f32 %v5268, 1.442695
        %v5282 = vpow.pop %v5281
        %v5283 = vmul.f32 %v5269, 1.442695
        %v5284 = vpow.pop %v5283
        %v5285 = vmul.f32 %v5270, 1.442695
        %v5286 = vpow.pop %v5285
        %v5287 = vmul.f32 %v5271, 1.442695
        %v5288 = vpow.pop %v5287
        %v5289 = vmul.f32 %v5272, 1.442695
        %v5290 = vpow.pop %v5289
        %v5291 = vmul.f32 %v5273, 1.442695
        %v5292 = vpow.pop %v5291
        %v5293 = vmul.f32 %v5274, 1.442695
        %v5294 = vpow.pop %v5293
        %v5295 = vmul.f32 %v5275, 1.442695
        %v5296 = vpow.pop %v5295
        %v5297 = vmul.f32 %v5276, 1.442695
        %v5298 = vpow.pop %v5297
        %v5299 = vmul.f32 %v5277, 1.442695
        %v5300 = vpow.pop %v5299
        %v5301 = vmul.f32 %v5278, 1.442695
        %v5302 = vpow.pop %v5301
        %v5303 = vadd.f32 %v5280, 1.0
        %v5304 = vadd.f32 %v5282, 1.0
        %v5305 = vadd.f32 %v5284, 1.0
        %v5306 = vadd.f32 %v5286, 1.0
        %v5307 = vadd.f32 %v5288, 1.0
        %v5308 = vadd.f32 %v5290, 1.0
        %v5309 = vadd.f32 %v5292, 1.0
        %v5310 = vadd.f32 %v5294, 1.0
        %v5311 = vadd.f32 %v5296, 1.0
        %v5312 = vadd.f32 %v5298, 1.0
        %v5313 = vadd.f32 %v5300, 1.0
        %v5314 = vadd.f32 %v5302, 1.0
        %v5315 = vrcp.pop %v5303
        %v5316 = vmul.f32 1.0, %v5315
        %v5317 = vrcp.pop %v5304
        %v5318 = vmul.f32 1.0, %v5317
        %v5319 = vrcp.pop %v5305
        %v5320 = vmul.f32 1.0, %v5319
        %v5321 = vrcp.pop %v5306
        %v5322 = vmul.f32 1.0, %v5321
        %v5323 = vrcp.pop %v5307
        %v5324 = vmul.f32 1.0, %v5323
        %v5325 = vrcp.pop %v5308
        %v5326 = vmul.f32 1.0, %v5325
        %v5327 = vrcp.pop %v5309
        %v5328 = vmul.f32 1.0, %v5327
        %v5329 = vrcp.pop %v5310
        %v5330 = vmul.f32 1.0, %v5329
        %v5331 = vrcp.pop %v5311
        %v5332 = vmul.f32 1.0, %v5331
        %v5333 = vrcp.pop %v5312
        %v5334 = vmul.f32 1.0, %v5333
        %v5335 = vrcp.pop %v5313
        %v5336 = vmul.f32 1.0, %v5335
        %v5337 = vrcp.pop %v5314
        %v5338 = vmul.f32 1.0, %v5337
        %5339 = vst [vmem:[%s543] sm:$0xff] %v5316
        %5340 = vst [vmem:[%s543 + $0x8] sm:$0xff] %v5318
        %5341 = vst [vmem:[%s543 + $0x10] sm:$0xff] %v5320
        %5342 = vst [vmem:[%s543 + $0x18] sm:$0xff] %v5322
        %5343 = vst [vmem:[%s543 + $0x20] sm:$0xff] %v5324
        %5344 = vst [vmem:[%s543 + $0x28] sm:$0xff] %v5326
        %5345 = vst [vmem:[%s543 + $0x30] sm:$0xff] %v5328
        %5346 = vst [vmem:[%s543 + $0x38] sm:$0xff] %v5330
        %5347 = vst [vmem:[%s543 + $0x40] sm:$0xff] %v5332
        %5348 = vst [vmem:[%s543 + $0x48] sm:$0xff] %v5334
        %5349 = vst [vmem:[%s543 + $0x50] sm:$0xff] %v5336
        %5350 = vst [vmem:[%s543 + $0x58] sm:$0xff] %v5338
        %s5351 = smul.u32 12, %s29
        %p5352 = scmp.lt.s32.totalorder %s5351, 23
        %s5353 = scalar_select %p5352, %s5351, 23
        %s5354 = smul.addr %s5353, 8
        %s5355 = scalar_lea.vmem %s12, %s5354
        // Predicated region
        $region93: #{iwae_forward.1} parent=59 // pred_check
          %p5356 = pneg %p262
        $region94: #{iwae_forward.1} parent=59 // pred_check_branch
          %5358 = sbr.rel (%p5356) target = $region96
        $region95: #{iwae_forward.1} parent=59 // pred_region
          _
        $region96: #{iwae_forward.1} parent=59 // pred_fallthru
          _
        // Predicated region
        $region97: #{iwae_forward.1} parent=59 // pred_check
          %p5359 = pneg %p283
        $region98: #{iwae_forward.1} parent=59 // pred_check_branch
          %5361 = sbr.rel (%p5359) target = $region100
        $region99: #{iwae_forward.1} parent=59 // pred_region
          %s5363 = ssub.s32 128, 128
          %5364 = vsyncadd [#allocation4], %s5363
          %s5366 = sshll.u32 [#allocation15], 4
          %s5367 = int_to_ptr.vmem [resolvable:$true] %s5366
          %5369 = dma.vmem_to_hbm [thread:$0]  %s5367, 128, %s11, [#allocation4]
        $region100: #{iwae_forward.1} parent=59 // pred_fallthru
          _
        // Predicated region
        $region101: #{iwae_forward.1} parent=59 // pred_check
          %p5370 = pneg %p309
        $region102: #{iwae_forward.1} parent=59 // pred_check_branch
          %5372 = sbr.rel (%p5370) target = $region104
        $region103: #{iwae_forward.1} parent=59 // pred_region
          %s5373 = smul.u32 12, %s29
        $region104: #{iwae_forward.1} parent=59 // pred_fallthru
          _
        // Predicated region
        $region105: #{iwae_forward.1} parent=59 // pred_check
          %p5374 = pneg %p262
        $region106: #{iwae_forward.1} parent=59 // pred_check_branch
          %5376 = sbr.rel (%p5374) target = $region108
        $region107: #{iwae_forward.1} parent=59 // pred_region
          _
        $region108: #{iwae_forward.1} parent=59 // pred_fallthru
          _
        // Predicated region
        $region109: #{iwae_forward.1} parent=59 // pred_check
          %p5377 = pneg %p283
        $region110: #{iwae_forward.1} parent=59 // pred_check_branch
          %5379 = sbr.rel (%p5377) target = $region112
        $region111: #{iwae_forward.1} parent=59 // pred_region
          %5380 = dma.done [#allocation4], 128
        $region112: #{iwae_forward.1} parent=59 // pred_fallthru
          _
      $region60: #{iwae_forward.1} parent=5 // pred_fallthru
        _
      %p5381 = scmp.le.s32.totalorder 2, %s24
      // Predicated region
      $region113: #{iwae_forward.1} parent=5 // pred_check
        %p5382 = pneg %p5381
      $region114: #{iwae_forward.1} parent=5 // pred_check_branch
        %5384 = sbr.rel (%p5382) target = $region116
      $region115: #{iwae_forward.1} parent=5 // pred_region
        %s5385 = ssub.s32 %s24, 2
        // Predicated region
        $region117: #{iwae_forward.1} parent=115 // pred_check
          %p5386 = pneg %p315
        $region118: #{iwae_forward.1} parent=115 // pred_check_branch
          %5388 = sbr.rel (%p5386) target = $region120
        $region119: #{iwae_forward.1} parent=115 // pred_region
          %s5389 = smul.u32 12, %s30
          %p5390 = scmp.lt.s32.totalorder %s5389, 23
          %s5391 = scalar_select %p5390, %s5389, 23
          %s5392 = smul.addr %s5391, 8
          %s5393 = scalar_lea.vmem %s12, %s5392
        $region120: #{iwae_forward.1} parent=115 // pred_fallthru
          _
      $region116: #{iwae_forward.1} parent=5 // pred_fallthru
        _
    $region6: #{iwae_forward.1} parent=1 // loop_footer
      %s28 = sadd.s32 1, %s24
    $region7: #{iwae_forward.1} parent=1 // loop_footer_branch
      %23 = sbr.rel target = $region3
    $region8: #{iwae_forward.1} parent=1 // loop_exit
      _
    %5394 = vsyncpa [#allocation3], 1
    %s5395 = scalar_lea.sflag [#allocation3], 1
    %5396 = vsyncpa %s5395, 1
    %5397 = vsyncpa [#allocation6], 1
    %5398 = vsyncpa [#allocation9], 1
    %5399 = vsyncpa [#allocation12], 1
    %5400 = vsyncpa [#allocation4], 1
    %s5401 = scalar_lea.sflag [#allocation4], 1
    %5402 = vsyncpa %s5401, 1

</llo_original>
